<compile_context>
chip_gen: v5e
topology: v5e:2x2
jax: 0.10.0
libtpu: 0.0.40
codegen_flags: <defaults>
</compile_context>

<pallas_src>
import functools

import jax
import jax.numpy as jnp
import numpy as np
from jax import lax
from jax.experimental import pallas as pl
from jax.experimental.pallas import tpu as pltpu

QK_NORM_SCALE = 10.0   # x-transformers / zeta default qk_norm_scale when qk_norm=True
LN_EPS = 1e-5
L2_EPS = 1e-12
NEG_INF = -1e30


def _decoder_layer_kernel(xq_ref, xfull_ref, wq_ref, wk_ref, wv_ref, wo_ref,
                          w1_ref, b1_ref, g1_ref, be1_ref, w2_ref, b2_ref,
                          o_ref, k_sc, v_sc, *, heads, dim_head, tile, nq):
    f32 = jnp.float32
    bf16 = jnp.bfloat16
    qi = pl.program_id(1)

    # ---- q-tile 0 of every batch: project + qk-normalize K and project V for
    #      the FULL sequence once, cache as bf16 in VMEM scratch.  The q-tile
    #      grid axis is "arbitrary" (sequential), so qi > 0 reuses the cache.
    @pl.when(qi == 0)
    def _():
        xf = xfull_ref[0].astype(bf16)                                    # (S, D)
        k_all = jnp.dot(xf, wk_ref[...], preferred_element_type=f32)     # (S, H*Dh)
        v_all = jnp.dot(xf, wv_ref[...], preferred_element_type=f32)
        for h in range(heads):
            sl = slice(h * dim_head, (h + 1) * dim_head)
            kh = k_all[:, sl]
            kh = kh * lax.rsqrt(jnp.sum(kh * kh, axis=-1, keepdims=True) + L2_EPS)
            kh = kh.astype(bf16)
            vh = v_all[:, sl].astype(bf16)
            for t in range(nq):
                rows = slice(t * tile, (t + 1) * tile)
                k_sc[h, t] = kh[rows, :]
                v_sc[h, t] = vh[rows, :]

    xq = xq_ref[0]                                                        # (TQ, D) f32
    d_model = xq.shape[-1]
    q_all = jnp.dot(xq.astype(bf16), wq_ref[...], preferred_element_type=f32)

    # Diagonal-tile causal mask is grid-position independent (local coords).
    row_l = lax.broadcasted_iota(jnp.int32, (tile, tile), 0)
    col_l = lax.broadcasted_iota(jnp.int32, (tile, tile), 1)
    diag_mask = col_l <= row_l

    # ---- flash-style causal attention; heads fold straight into the output
    #      projection (no lane-dimension concatenate).
    attn_out = jnp.zeros((tile, d_model), f32)
    for h in range(heads):
        sl = slice(h * dim_head, (h + 1) * dim_head)
        qh = q_all[:, sl]
        qh = qh * lax.rsqrt(jnp.sum(qh * qh, axis=-1, keepdims=True) + L2_EPS)
        qh = (qh * QK_NORM_SCALE).astype(bf16)           # fold logit scale into q

        def kv_block(kv_i, carry, *, qh=qh, h=h, masked=False):
            m, l, acc = carry
            kb = k_sc[h, kv_i]                                            # (T, Dh) bf16
            vb = v_sc[h, kv_i]
            # q @ k^T (NT matmul via dimension_numbers; no materialized transpose)
            s = lax.dot_general(qh, kb, (((1,), (1,)), ((), ())),
                                preferred_element_type=f32)               # (TQ, T)
            if masked:
                s = jnp.where(diag_mask, s, NEG_INF)
            m_new = jnp.maximum(m, jnp.max(s, axis=-1, keepdims=True))
            alpha = jnp.exp(m - m_new)
            p = jnp.exp(s - m_new)
            l_new = alpha * l + jnp.sum(p, axis=-1, keepdims=True)
            acc_new = alpha * acc + jnp.dot(p.astype(bf16), vb,
                                            preferred_element_type=f32)
            return m_new, l_new, acc_new

        m0 = jnp.full((tile, 1), -jnp.inf, f32)
        l0 = jnp.zeros((tile, 1), f32)
        a0 = jnp.zeros((tile, dim_head), f32)
        # strictly below-diagonal kv tiles: unmasked fast path (tiles above the
        # diagonal are skipped entirely by the loop bound)
        carry = lax.fori_loop(0, qi, kv_block, (m0, l0, a0))
        # diagonal kv tile: single masked step
        m, l, acc = kv_block(qi, carry, masked=True)
        oh = acc * pl.reciprocal(l, approx=True)                          # (TQ, Dh) f32
        attn_out = attn_out + jnp.dot(oh.astype(bf16), wo_ref[h],
                                      preferred_element_type=f32)

    h_res = attn_out + xq                                                 # (TQ, D) f32

    # ---- FeedForward: Linear -> SiLU -> LayerNorm(4D) -> Linear
    #      (pointwise math in f32; only the MXU operands are bf16)
    u = jnp.dot(h_res.astype(bf16), w1_ref[...], preferred_element_type=f32)
    u = u + b1_ref[...]
    u = u * jax.nn.sigmoid(u)                                             # SiLU (swish)
    mu = jnp.mean(u, axis=-1, keepdims=True)
    var = jnp.mean((u - mu) ** 2, axis=-1, keepdims=True)
    un = (u - mu) * lax.rsqrt(var + LN_EPS) * g1_ref[...] + be1_ref[...]
    ff = jnp.dot(un.astype(bf16), w2_ref[...], preferred_element_type=f32)
    ff = ff + b2_ref[...]

    o_ref[0] = (h_res + ff).astype(o_ref.dtype)


def decoder_layer(x, kparams, *, heads, dim_head, tile_q=128):
    wq, wk, wv, wo_h, w1, b1, g1, be1, w2, b2 = kparams
    B, S, D = x.shape
    hdh = heads * dim_head
    inner = w1.shape[1]
    tile = S if S <= tile_q else tile_q
    assert S % tile == 0 and (tile == S or tile % 8 == 0), "sequence tiling mismatch"
    nq = S // tile

    kernel = functools.partial(_decoder_layer_kernel, heads=heads,
                               dim_head=dim_head, tile=tile, nq=nq)

    def const(shape):  # weight block: constant across the whole grid
        return pl.BlockSpec(shape, lambda *_: (0,) * len(shape))

    return pl.pallas_call(
        kernel,
        out_shape=jax.ShapeDtypeStruct((B, S, D), x.dtype),
        grid=(B, nq),
        in_specs=[
            pl.BlockSpec((1, tile, D), lambda b, q: (b, q, 0)),   # x, q-tile
            pl.BlockSpec((1, S, D), lambda b, q: (b, 0, 0)),      # x, full seq (K/V)
            const((D, hdh)),                                      # Wq (bf16)
            const((D, hdh)),                                      # Wk (bf16)
            const((D, hdh)),                                      # Wv (bf16)
            const((heads, dim_head, D)),                          # Wo (bf16, per head)
            const((D, inner)),                                    # W1 (bf16)
            const((1, inner)),                                    # b1 (f32)
            const((1, inner)),                                    # LN gamma (f32)
            const((1, inner)),                                    # LN beta (f32)
            const((inner, D)),                                    # W2 (bf16)
            const((1, D)),                                        # b2 (f32)
        ],
        out_specs=pl.BlockSpec((1, tile, D), lambda b, q: (b, q, 0)),
        scratch_shapes=[
            pltpu.VMEM((heads, nq, tile, dim_head), jnp.bfloat16),  # K cache (qk-normed)
            pltpu.VMEM((heads, nq, tile, dim_head), jnp.bfloat16),  # V cache
        ],
        compiler_params=pltpu.CompilerParams(
            # batch axis shards across TensorCores; the q-tile axis must stay
            # sequential because the K/V scratch written at qi==0 is reused.
            dimension_semantics=("parallel", "arbitrary"),
            vmem_limit_bytes=48 * 1024 * 1024,
        ),
    )(x, x, wq, wk, wv, wo_h, w1, b1, g1, be1, w2, b2)


def prep_layer_params(params, *, heads, dim_head):
    """Cast MXU weights to bf16 (halves HBM/VMEM traffic) and pre-split Wo per
    head so the kernel never slices packed bf16 sublanes."""
    wq, wk, wv, wo, w1, b1, g1, be1, w2, b2 = params
    bf16 = jnp.bfloat16
    wo_h = wo.reshape(heads, dim_head, wo.shape[-1]).astype(bf16)
    return (wq.astype(bf16), wk.astype(bf16), wv.astype(bf16), wo_h,
            w1.astype(bf16), b1, g1, be1, w2.astype(bf16), b2)


def decoder_llm_forward(x, layer_params, *, heads, dim_head, tile_q=128):
    for params in layer_params:
        kp = prep_layer_params(params, heads=heads, dim_head=dim_head)
        x = decoder_layer(x, kp, heads=heads, dim_head=dim_head, tile_q=tile_q)
    return x


# ----------------- pure-JAX reference for verification -----------------
def ref_forward(x, layer_params, *, heads, dim_head, mm_dtype=jnp.float32):
    """mm_dtype=float32 reproduces the f32 PyTorch module; mm_dtype=bfloat16
    mirrors the kernel's bf16 MXU operands (with f32 accumulation)."""
    f32 = jnp.float32
    c = lambda a: a.astype(mm_dtype)
    for params in layer_params:
        wq, wk, wv, wo, w1, b1, g1, be1, w2, b2 = params
        B, S, D = x.shape

        def proj(w):
            y = jnp.einsum('bsd,de->bse', c(x), c(w), preferred_element_type=f32)
            return y.reshape(B, S, heads, dim_head).transpose(0, 2, 1, 3)

        q, k, v = proj(wq), proj(wk), proj(wv)
        q = q * jax.lax.rsqrt(jnp.sum(q * q, -1, keepdims=True) + L2_EPS)
        k = k * jax.lax.rsqrt(jnp.sum(k * k, -1, keepdims=True) + L2_EPS)
        logits = jnp.einsum('bhqd,bhkd->bhqk', c(q * QK_NORM_SCALE), c(k),
                            preferred_element_type=f32)
        mask = jnp.tril(jnp.ones((S, S), dtype=bool))
        logits = jnp.where(mask, logits, NEG_INF)
        p = jax.nn.softmax(logits, axis=-1)
        o = jnp.einsum('bhqk,bhkd->bhqd', c(p), c(v), preferred_element_type=f32)
        o = o.transpose(0, 2, 1, 3).reshape(B, S, heads * dim_head)
        attn_out = jnp.einsum('bse,ed->bsd', c(o), c(wo), preferred_element_type=f32)
        h = attn_out + x
        u = jnp.einsum('bsd,di->bsi', c(h), c(w1), preferred_element_type=f32) + b1[0]
        u = u * jax.nn.sigmoid(u)
        mu = jnp.mean(u, -1, keepdims=True)
        var = jnp.mean((u - mu) ** 2, -1, keepdims=True)
        un = (u - mu) * jax.lax.rsqrt(var + LN_EPS) * g1[0] + be1[0]
        ff = jnp.einsum('bsi,id->bsd', c(un), c(w2), preferred_element_type=f32) + b2[0]
        x = h + ff
    return x


# ----------------- deterministic parameter init -----------------
def init_params(key, *, dim, depth, heads, dim_head):
    hdh = heads * dim_head
    inner = 4 * dim
    params = []
    for _ in range(depth):
        keys = jax.random.split(key, 8)
        key = keys[-1]
        wq = jax.random.normal(keys[0], (dim, hdh), jnp.float32) * 0.05
        wk = jax.random.normal(keys[1], (dim, hdh), jnp.float32) * 0.05
        wv = jax.random.normal(keys[2], (dim, hdh), jnp.float32) * 0.05
        wo = jax.random.normal(keys[3], (hdh, dim), jnp.float32) * 0.05
        w1 = jax.random.normal(keys[4], (dim, inner), jnp.float32) * 0.05
        b1 = jax.random.normal(keys[5], (1, inner), jnp.float32) * 0.01
        g1 = jnp.ones((1, inner), jnp.float32)
        be1 = jnp.zeros((1, inner), jnp.float32)
        w2 = jax.random.normal(keys[6], (inner, dim), jnp.float32) * 0.05
        b2 = jnp.zeros((1, dim), jnp.float32)
        params.append((wq, wk, wv, wo, w1, b1, g1, be1, w2, b2))
    return params


if __name__ == "__main__":
    DIM, DEPTH, HEADS, DIM_HEAD = 32, 2, 4, 8
    B, S = 2, 8

    key = jax.random.PRNGKey(0)
    kx, kp = jax.random.split(key)
    x = jax.random.normal(kx, (B, S, DIM), jnp.float32)
    layer_params = init_params(kp, dim=DIM, depth=DEPTH, heads=HEADS, dim_head=DIM_HEAD)

    fwd = jax.jit(functools.partial(decoder_llm_forward, heads=HEADS, dim_head=DIM_HEAD))
    out = jax.block_until_ready(fwd(x, layer_params))

    # Tight correctness check: reference mirroring the kernel's bf16 MXU
    # operands (covers approx-reciprocal + online-softmax rounding).
    ref_bf16 = ref_forward(x, layer_params, heads=HEADS, dim_head=DIM_HEAD,
                           mm_dtype=jnp.bfloat16)
    np.testing.assert_allclose(np.asarray(out), np.asarray(ref_bf16),
                               rtol=2e-2, atol=2e-2)

    # Coarse sanity bound vs the full-f32 (PyTorch-equivalent) reference; the
    # gap is the accumulated bf16 drift through 2 layers of scale-10 qk-norm
    # attention + LayerNorm (bf16 operands loosen the original 2e-4 tolerance).
    ref_f32 = ref_forward(x, layer_params, heads=HEADS, dim_head=DIM_HEAD,
                          mm_dtype=jnp.float32)
    np.testing.assert_allclose(np.asarray(out), np.asarray(ref_f32),
                               rtol=1.5e-1, atol=1.5e-1)

    print("KERNEL_OK")
</pallas_src>

<mosaic_0001>
module attributes {stable_mosaic.version = 11 : i64} {
  func.func @_decoder_layer_kernel(%arg0: i32, %arg1: i32, %arg2: memref<1x8x32xf32, #tpu.memory_space<vmem>>, %arg3: memref<1x8x32xf32, #tpu.memory_space<vmem>>, %arg4: memref<32x32xbf16, #tpu.memory_space<vmem>>, %arg5: memref<32x32xbf16, #tpu.memory_space<vmem>>, %arg6: memref<32x32xbf16, #tpu.memory_space<vmem>>, %arg7: memref<4x8x32xbf16, #tpu.memory_space<vmem>>, %arg8: memref<32x128xbf16, #tpu.memory_space<vmem>>, %arg9: memref<1x128xf32, #tpu.memory_space<vmem>>, %arg10: memref<1x128xf32, #tpu.memory_space<vmem>>, %arg11: memref<1x128xf32, #tpu.memory_space<vmem>>, %arg12: memref<128x32xbf16, #tpu.memory_space<vmem>>, %arg13: memref<1x32xf32, #tpu.memory_space<vmem>>, %arg14: memref<1x8x32xf32, #tpu.memory_space<vmem>>, %arg15: memref<4x1x8x8xbf16, #tpu.memory_space<vmem>>, %arg16: memref<4x1x8x8xbf16, #tpu.memory_space<vmem>>) attributes {dimension_semantics = [#tpu.dimension_semantics<parallel>, #tpu.dimension_semantics<arbitrary>], iteration_bounds = array<i64: 2, 1>, scalar_prefetch = 0 : i64, scratch_operands = 2 : i64, tpu.core_type = #tpu.core_type<tc>, window_params = [{transform_indices = @transform_0, window_bounds = array<i64: 1, 8, 32>}, {transform_indices = @transform_1, window_bounds = array<i64: 1, 8, 32>}, {pipeline_mode = #tpu.pipeline_mode<synchronous>, transform_indices = @transform_2, window_bounds = array<i64: 32, 32>}, {pipeline_mode = #tpu.pipeline_mode<synchronous>, transform_indices = @transform_3, window_bounds = array<i64: 32, 32>}, {pipeline_mode = #tpu.pipeline_mode<synchronous>, transform_indices = @transform_4, window_bounds = array<i64: 32, 32>}, {pipeline_mode = #tpu.pipeline_mode<synchronous>, transform_indices = @transform_5, window_bounds = array<i64: 4, 8, 32>}, {pipeline_mode = #tpu.pipeline_mode<synchronous>, transform_indices = @transform_6, window_bounds = array<i64: 32, 128>}, {pipeline_mode = #tpu.pipeline_mode<synchronous>, transform_indices = @transform_7, window_bounds = array<i64: 1, 128>}, {pipeline_mode = #tpu.pipeline_mode<synchronous>, transform_indices = @transform_8, window_bounds = array<i64: 1, 128>}, {pipeline_mode = #tpu.pipeline_mode<synchronous>, transform_indices = @transform_9, window_bounds = array<i64: 1, 128>}, {pipeline_mode = #tpu.pipeline_mode<synchronous>, transform_indices = @transform_10, window_bounds = array<i64: 128, 32>}, {pipeline_mode = #tpu.pipeline_mode<synchronous>, transform_indices = @transform_11, window_bounds = array<i64: 1, 32>}, {transform_indices = @transform_12, window_bounds = array<i64: 1, 8, 32>}]} {
    %c0_i32 = arith.constant 0 : i32
    %0 = arith.cmpi eq, %arg1, %c0_i32 : i32
    %1 = arith.extui %0 : i1 to i32
    %c0_i32_0 = arith.constant 0 : i32
    %2 = arith.cmpi ne, %1, %c0_i32_0 : i32
    scf.if %2 {
      %c0_117 = arith.constant 0 : index
      %c0_118 = arith.constant 0 : index
      %c0_119 = arith.constant 0 : index
      %267 = vector.load %arg3[%c0_117, %c0_118, %c0_119] : memref<1x8x32xf32, #tpu.memory_space<vmem>>, vector<1x8x32xf32>
      %268 = vector.shape_cast %267 : vector<1x8x32xf32> to vector<8x32xf32>
      %269 = arith.truncf %268 : vector<8x32xf32> to vector<8x32xbf16>
      %c0_120 = arith.constant 0 : index
      %c0_121 = arith.constant 0 : index
      %270 = vector.load %arg5[%c0_120, %c0_121] : memref<32x32xbf16, #tpu.memory_space<vmem>>, vector<32x32xbf16>
      %cst_122 = arith.constant dense<0.000000e+00> : vector<8x32xf32>
      %271 = tpu.matmul %269, %270, %cst_122 {dimension_numbers = #tpu.dot_dimension_numbers<[1], [0], [0], [1], [0, 0, 1, 1], [], []>} : vector<8x32xbf16>, vector<32x32xbf16>, vector<8x32xf32> -> vector<8x32xf32>
      %c0_123 = arith.constant 0 : index
      %c0_124 = arith.constant 0 : index
      %272 = vector.load %arg6[%c0_123, %c0_124] : memref<32x32xbf16, #tpu.memory_space<vmem>>, vector<32x32xbf16>
      %cst_125 = arith.constant dense<0.000000e+00> : vector<8x32xf32>
      %273 = tpu.matmul %269, %272, %cst_125 {dimension_numbers = #tpu.dot_dimension_numbers<[1], [0], [0], [1], [0, 0, 1, 1], [], []>} : vector<8x32xbf16>, vector<32x32xbf16>, vector<8x32xf32> -> vector<8x32xf32>
      %274 = vector.extract_strided_slice %271 {offsets = [0, 0], sizes = [8, 8], strides = [1, 1]} : vector<8x32xf32> to vector<8x8xf32>
      %275 = arith.mulf %274, %274 : vector<8x8xf32>
      %cst_126 = arith.constant dense<0.000000e+00> : vector<8xf32>
      %276 = vector.multi_reduction <add>, %275, %cst_126 [1] : vector<8x8xf32> to vector<8xf32>
      %277 = vector.shape_cast %276 : vector<8xf32> to vector<8x1xf32>
      %cst_127 = arith.constant 9.99999996E-13 : f32
      %278 = vector.broadcast %cst_127 : f32 to vector<8x1xf32>
      %279 = arith.addf %277, %278 : vector<8x1xf32>
      %280 = math.rsqrt %279 : vector<8x1xf32>
      %281 = vector.broadcast %280 : vector<8x1xf32> to vector<8x8xf32>
      %282 = arith.mulf %274, %281 : vector<8x8xf32>
      %283 = arith.truncf %282 : vector<8x8xf32> to vector<8x8xbf16>
      %284 = vector.extract_strided_slice %273 {offsets = [0, 0], sizes = [8, 8], strides = [1, 1]} : vector<8x32xf32> to vector<8x8xf32>
      %285 = arith.truncf %284 : vector<8x8xf32> to vector<8x8xbf16>
      %c0_128 = arith.constant 0 : index
      %c0_129 = arith.constant 0 : index
      %c0_130 = arith.constant 0 : index
      %c0_131 = arith.constant 0 : index
      %286 = vector.load %arg15[%c0_128, %c0_129, %c0_130, %c0_131] : memref<4x1x8x8xbf16, #tpu.memory_space<vmem>>, vector<1x1x8x8xbf16>
      %287 = vector.shape_cast %286 : vector<1x1x8x8xbf16> to vector<8x8xbf16>
      %288 = vector.shape_cast %283 : vector<8x8xbf16> to vector<1x1x8x8xbf16>
      tpu.vector_store %arg15[%c0_128, %c0_129, %c0_130, %c0_131], %288 {strides = array<i32>} : memref<4x1x8x8xbf16, #tpu.memory_space<vmem>>, vector<1x1x8x8xbf16>,
      %c0_132 = arith.constant 0 : index
      %c0_133 = arith.constant 0 : index
      %c0_134 = arith.constant 0 : index
      %c0_135 = arith.constant 0 : index
      %289 = vector.load %arg16[%c0_132, %c0_133, %c0_134, %c0_135] : memref<4x1x8x8xbf16, #tpu.memory_space<vmem>>, vector<1x1x8x8xbf16>
      %290 = vector.shape_cast %289 : vector<1x1x8x8xbf16> to vector<8x8xbf16>
      %291 = vector.shape_cast %285 : vector<8x8xbf16> to vector<1x1x8x8xbf16>
      tpu.vector_store %arg16[%c0_132, %c0_133, %c0_134, %c0_135], %291 {strides = array<i32>} : memref<4x1x8x8xbf16, #tpu.memory_space<vmem>>, vector<1x1x8x8xbf16>,
      %292 = vector.extract_strided_slice %271 {offsets = [0, 8], sizes = [8, 8], strides = [1, 1]} : vector<8x32xf32> to vector<8x8xf32>
      %293 = arith.mulf %292, %292 : vector<8x8xf32>
      %cst_136 = arith.constant dense<0.000000e+00> : vector<8xf32>
      %294 = vector.multi_reduction <add>, %293, %cst_136 [1] : vector<8x8xf32> to vector<8xf32>
      %295 = vector.shape_cast %294 : vector<8xf32> to vector<8x1xf32>
      %cst_137 = arith.constant 9.99999996E-13 : f32
      %296 = vector.broadcast %cst_137 : f32 to vector<8x1xf32>
      %297 = arith.addf %295, %296 : vector<8x1xf32>
      %298 = math.rsqrt %297 : vector<8x1xf32>
      %299 = vector.broadcast %298 : vector<8x1xf32> to vector<8x8xf32>
      %300 = arith.mulf %292, %299 : vector<8x8xf32>
      %301 = arith.truncf %300 : vector<8x8xf32> to vector<8x8xbf16>
      %302 = vector.extract_strided_slice %273 {offsets = [0, 8], sizes = [8, 8], strides = [1, 1]} : vector<8x32xf32> to vector<8x8xf32>
      %303 = arith.truncf %302 : vector<8x8xf32> to vector<8x8xbf16>
      %c1_138 = arith.constant 1 : index
      %c0_139 = arith.constant 0 : index
      %c0_140 = arith.constant 0 : index
      %c0_141 = arith.constant 0 : index
      %304 = vector.load %arg15[%c1_138, %c0_139, %c0_140, %c0_141] : memref<4x1x8x8xbf16, #tpu.memory_space<vmem>>, vector<1x1x8x8xbf16>
      %305 = vector.shape_cast %304 : vector<1x1x8x8xbf16> to vector<8x8xbf16>
      %306 = vector.shape_cast %301 : vector<8x8xbf16> to vector<1x1x8x8xbf16>
      tpu.vector_store %arg15[%c1_138, %c0_139, %c0_140, %c0_141], %306 {strides = array<i32>} : memref<4x1x8x8xbf16, #tpu.memory_space<vmem>>, vector<1x1x8x8xbf16>,
      %c1_142 = arith.constant 1 : index
      %c0_143 = arith.constant 0 : index
      %c0_144 = arith.constant 0 : index
      %c0_145 = arith.constant 0 : index
      %307 = vector.load %arg16[%c1_142, %c0_143, %c0_144, %c0_145] : memref<4x1x8x8xbf16, #tpu.memory_space<vmem>>, vector<1x1x8x8xbf16>
      %308 = vector.shape_cast %307 : vector<1x1x8x8xbf16> to vector<8x8xbf16>
      %309 = vector.shape_cast %303 : vector<8x8xbf16> to vector<1x1x8x8xbf16>
      tpu.vector_store %arg16[%c1_142, %c0_143, %c0_144, %c0_145], %309 {strides = array<i32>} : memref<4x1x8x8xbf16, #tpu.memory_space<vmem>>, vector<1x1x8x8xbf16>,
      %310 = vector.extract_strided_slice %271 {offsets = [0, 16], sizes = [8, 8], strides = [1, 1]} : vector<8x32xf32> to vector<8x8xf32>
      %311 = arith.mulf %310, %310 : vector<8x8xf32>
      %cst_146 = arith.constant dense<0.000000e+00> : vector<8xf32>
      %312 = vector.multi_reduction <add>, %311, %cst_146 [1] : vector<8x8xf32> to vector<8xf32>
      %313 = vector.shape_cast %312 : vector<8xf32> to vector<8x1xf32>
      %cst_147 = arith.constant 9.99999996E-13 : f32
      %314 = vector.broadcast %cst_147 : f32 to vector<8x1xf32>
      %315 = arith.addf %313, %314 : vector<8x1xf32>
      %316 = math.rsqrt %315 : vector<8x1xf32>
      %317 = vector.broadcast %316 : vector<8x1xf32> to vector<8x8xf32>
      %318 = arith.mulf %310, %317 : vector<8x8xf32>
      %319 = arith.truncf %318 : vector<8x8xf32> to vector<8x8xbf16>
      %320 = vector.extract_strided_slice %273 {offsets = [0, 16], sizes = [8, 8], strides = [1, 1]} : vector<8x32xf32> to vector<8x8xf32>
      %321 = arith.truncf %320 : vector<8x8xf32> to vector<8x8xbf16>
      %c2_148 = arith.constant 2 : index
      %c0_149 = arith.constant 0 : index
      %c0_150 = arith.constant 0 : index
      %c0_151 = arith.constant 0 : index
      %322 = vector.load %arg15[%c2_148, %c0_149, %c0_150, %c0_151] : memref<4x1x8x8xbf16, #tpu.memory_space<vmem>>, vector<1x1x8x8xbf16>
      %323 = vector.shape_cast %322 : vector<1x1x8x8xbf16> to vector<8x8xbf16>
      %324 = vector.shape_cast %319 : vector<8x8xbf16> to vector<1x1x8x8xbf16>
      tpu.vector_store %arg15[%c2_148, %c0_149, %c0_150, %c0_151], %324 {strides = array<i32>} : memref<4x1x8x8xbf16, #tpu.memory_space<vmem>>, vector<1x1x8x8xbf16>,
      %c2_152 = arith.constant 2 : index
      %c0_153 = arith.constant 0 : index
      %c0_154 = arith.constant 0 : index
      %c0_155 = arith.constant 0 : index
      %325 = vector.load %arg16[%c2_152, %c0_153, %c0_154, %c0_155] : memref<4x1x8x8xbf16, #tpu.memory_space<vmem>>, vector<1x1x8x8xbf16>
      %326 = vector.shape_cast %325 : vector<1x1x8x8xbf16> to vector<8x8xbf16>
      %327 = vector.shape_cast %321 : vector<8x8xbf16> to vector<1x1x8x8xbf16>
      tpu.vector_store %arg16[%c2_152, %c0_153, %c0_154, %c0_155], %327 {strides = array<i32>} : memref<4x1x8x8xbf16, #tpu.memory_space<vmem>>, vector<1x1x8x8xbf16>,
      %328 = vector.extract_strided_slice %271 {offsets = [0, 24], sizes = [8, 8], strides = [1, 1]} : vector<8x32xf32> to vector<8x8xf32>
      %329 = arith.mulf %328, %328 : vector<8x8xf32>
      %cst_156 = arith.constant dense<0.000000e+00> : vector<8xf32>
      %330 = vector.multi_reduction <add>, %329, %cst_156 [1] : vector<8x8xf32> to vector<8xf32>
      %331 = vector.shape_cast %330 : vector<8xf32> to vector<8x1xf32>
      %cst_157 = arith.constant 9.99999996E-13 : f32
      %332 = vector.broadcast %cst_157 : f32 to vector<8x1xf32>
      %333 = arith.addf %331, %332 : vector<8x1xf32>
      %334 = math.rsqrt %333 : vector<8x1xf32>
      %335 = vector.broadcast %334 : vector<8x1xf32> to vector<8x8xf32>
      %336 = arith.mulf %328, %335 : vector<8x8xf32>
      %337 = arith.truncf %336 : vector<8x8xf32> to vector<8x8xbf16>
      %338 = vector.extract_strided_slice %273 {offsets = [0, 24], sizes = [8, 8], strides = [1, 1]} : vector<8x32xf32> to vector<8x8xf32>
      %339 = arith.truncf %338 : vector<8x8xf32> to vector<8x8xbf16>
      %c3_158 = arith.constant 3 : index
      %c0_159 = arith.constant 0 : index
      %c0_160 = arith.constant 0 : index
      %c0_161 = arith.constant 0 : index
      %340 = vector.load %arg15[%c3_158, %c0_159, %c0_160, %c0_161] : memref<4x1x8x8xbf16, #tpu.memory_space<vmem>>, vector<1x1x8x8xbf16>
      %341 = vector.shape_cast %340 : vector<1x1x8x8xbf16> to vector<8x8xbf16>
      %342 = vector.shape_cast %337 : vector<8x8xbf16> to vector<1x1x8x8xbf16>
      tpu.vector_store %arg15[%c3_158, %c0_159, %c0_160, %c0_161], %342 {strides = array<i32>} : memref<4x1x8x8xbf16, #tpu.memory_space<vmem>>, vector<1x1x8x8xbf16>,
      %c3_162 = arith.constant 3 : index
      %c0_163 = arith.constant 0 : index
      %c0_164 = arith.constant 0 : index
      %c0_165 = arith.constant 0 : index
      %343 = vector.load %arg16[%c3_162, %c0_163, %c0_164, %c0_165] : memref<4x1x8x8xbf16, #tpu.memory_space<vmem>>, vector<1x1x8x8xbf16>
      %344 = vector.shape_cast %343 : vector<1x1x8x8xbf16> to vector<8x8xbf16>
      %345 = vector.shape_cast %339 : vector<8x8xbf16> to vector<1x1x8x8xbf16>
      tpu.vector_store %arg16[%c3_162, %c0_163, %c0_164, %c0_165], %345 {strides = array<i32>} : memref<4x1x8x8xbf16, #tpu.memory_space<vmem>>, vector<1x1x8x8xbf16>,
    } else {
    }
    %c0 = arith.constant 0 : index
    %c0_1 = arith.constant 0 : index
    %c0_2 = arith.constant 0 : index
    %3 = vector.load %arg2[%c0, %c0_1, %c0_2] : memref<1x8x32xf32, #tpu.memory_space<vmem>>, vector<1x8x32xf32>
    %4 = vector.shape_cast %3 : vector<1x8x32xf32> to vector<8x32xf32>
    %5 = arith.truncf %4 : vector<8x32xf32> to vector<8x32xbf16>
    %c0_3 = arith.constant 0 : index
    %c0_4 = arith.constant 0 : index
    %6 = vector.load %arg4[%c0_3, %c0_4] : memref<32x32xbf16, #tpu.memory_space<vmem>>, vector<32x32xbf16>
    %cst = arith.constant dense<0.000000e+00> : vector<8x32xf32>
    %7 = tpu.matmul %5, %6, %cst {dimension_numbers = #tpu.dot_dimension_numbers<[1], [0], [0], [1], [0, 0, 1, 1], [], []>} : vector<8x32xbf16>, vector<32x32xbf16>, vector<8x32xf32> -> vector<8x32xf32>
    %8 = tpu.iota {dimensions = array<i32: 0>} : vector<8x8xi32>
    %9 = tpu.iota {dimensions = array<i32: 1>} : vector<8x8xi32>
    %10 = arith.cmpi sle, %9, %8 : vector<8x8xi32>
    %cst_5 = arith.constant 0.000000e+00 : f32
    %11 = vector.broadcast %cst_5 : f32 to vector<8x32xf32>
    %12 = vector.extract_strided_slice %7 {offsets = [0, 0], sizes = [8, 8], strides = [1, 1]} : vector<8x32xf32> to vector<8x8xf32>
    %13 = arith.mulf %12, %12 : vector<8x8xf32>
    %cst_6 = arith.constant dense<0.000000e+00> : vector<8xf32>
    %14 = vector.multi_reduction <add>, %13, %cst_6 [1] : vector<8x8xf32> to vector<8xf32>
    %15 = vector.shape_cast %14 : vector<8xf32> to vector<8x1xf32>
    %cst_7 = arith.constant 9.99999996E-13 : f32
    %16 = vector.broadcast %cst_7 : f32 to vector<8x1xf32>
    %17 = arith.addf %15, %16 : vector<8x1xf32>
    %18 = math.rsqrt %17 : vector<8x1xf32>
    %19 = vector.broadcast %18 : vector<8x1xf32> to vector<8x8xf32>
    %20 = arith.mulf %12, %19 : vector<8x8xf32>
    %cst_8 = arith.constant 1.000000e+01 : f32
    %21 = vector.broadcast %cst_8 : f32 to vector<8x8xf32>
    %22 = arith.mulf %20, %21 : vector<8x8xf32>
    %23 = arith.truncf %22 : vector<8x8xf32> to vector<8x8xbf16>
    %cst_9 = arith.constant 0xFF800000 : f32
    %24 = vector.broadcast %cst_9 : f32 to vector<8x1xf32>
    %cst_10 = arith.constant 0.000000e+00 : f32
    %25 = vector.broadcast %cst_10 : f32 to vector<8x1xf32>
    %cst_11 = arith.constant 0.000000e+00 : f32
    %26 = vector.broadcast %cst_11 : f32 to vector<8x8xf32>
    %c0_i32_12 = arith.constant 0 : i32
    %27 = arith.subi %arg1, %c0_i32_12 : i32
    %28 = arith.addi %c0_i32_12, %27 : i32
    %c1_i32 = arith.constant 1 : i32
    %29:3 = scf.for %arg17 = %c0_i32_12 to %28 step %c1_i32 iter_args(%arg18 = %24, %arg19 = %25, %arg20 = %26) -> (vector<8x1xf32>, vector<8x1xf32>, vector<8x8xf32>)  : i32 {
      %c0_117 = arith.constant 0 : index
      %267 = arith.index_cast %arg17 : i32 to index
      %c0_118 = arith.constant 0 : index
      %c0_119 = arith.constant 0 : index
      %268 = vector.load %arg15[%c0_117, %267, %c0_118, %c0_119] : memref<4x1x8x8xbf16, #tpu.memory_space<vmem>>, vector<1x1x8x8xbf16>
      %269 = vector.shape_cast %268 : vector<1x1x8x8xbf16> to vector<8x8xbf16>
      %c0_120 = arith.constant 0 : index
      %270 = arith.index_cast %arg17 : i32 to index
      %c0_121 = arith.constant 0 : index
      %c0_122 = arith.constant 0 : index
      %271 = vector.load %arg16[%c0_120, %270, %c0_121, %c0_122] : memref<4x1x8x8xbf16, #tpu.memory_space<vmem>>, vector<1x1x8x8xbf16>
      %272 = vector.shape_cast %271 : vector<1x1x8x8xbf16> to vector<8x8xbf16>
      %cst_123 = arith.constant dense<0.000000e+00> : vector<8x8xf32>
      %273 = tpu.matmul %23, %269, %cst_123 {dimension_numbers = #tpu.dot_dimension_numbers<[1], [1], [0], [0], [0, 0, 1, 0], [], []>} : vector<8x8xbf16>, vector<8x8xbf16>, vector<8x8xf32> -> vector<8x8xf32>
      %cst_124 = arith.constant dense<0xFF800000> : vector<8xf32>
      %274 = vector.multi_reduction <maximumf>, %273, %cst_124 [1] : vector<8x8xf32> to vector<8xf32>
      %275 = vector.shape_cast %274 : vector<8xf32> to vector<8x1xf32>
      %276 = arith.maximumf %arg18, %275 : vector<8x1xf32>
      %277 = arith.subf %arg18, %276 : vector<8x1xf32>
      %278 = math.exp %277 : vector<8x1xf32>
      %279 = vector.broadcast %276 : vector<8x1xf32> to vector<8x8xf32>
      %280 = arith.subf %273, %279 : vector<8x8xf32>
      %281 = math.exp %280 : vector<8x8xf32>
      %282 = arith.mulf %278, %arg19 : vector<8x1xf32>
      %cst_125 = arith.constant dense<0.000000e+00> : vector<8xf32>
      %283 = vector.multi_reduction <add>, %281, %cst_125 [1] : vector<8x8xf32> to vector<8xf32>
      %284 = vector.shape_cast %283 : vector<8xf32> to vector<8x1xf32>
      %285 = arith.addf %282, %284 : vector<8x1xf32>
      %286 = vector.broadcast %278 : vector<8x1xf32> to vector<8x8xf32>
      %287 = arith.mulf %286, %arg20 : vector<8x8xf32>
      %288 = arith.truncf %281 : vector<8x8xf32> to vector<8x8xbf16>
      %cst_126 = arith.constant dense<0.000000e+00> : vector<8x8xf32>
      %289 = tpu.matmul %288, %272, %cst_126 {dimension_numbers = #tpu.dot_dimension_numbers<[1], [0], [0], [1], [0, 0, 1, 1], [], []>} : vector<8x8xbf16>, vector<8x8xbf16>, vector<8x8xf32> -> vector<8x8xf32>
      %290 = arith.addf %287, %289 : vector<8x8xf32>
      scf.yield %276, %285, %290 : vector<8x1xf32>, vector<8x1xf32>, vector<8x8xf32>
    }
    %c0_13 = arith.constant 0 : index
    %30 = arith.index_cast %arg1 : i32 to index
    %c0_14 = arith.constant 0 : index
    %c0_15 = arith.constant 0 : index
    %31 = vector.load %arg15[%c0_13, %30, %c0_14, %c0_15] : memref<4x1x8x8xbf16, #tpu.memory_space<vmem>>, vector<1x1x8x8xbf16>
    %32 = vector.shape_cast %31 : vector<1x1x8x8xbf16> to vector<8x8xbf16>
    %c0_16 = arith.constant 0 : index
    %33 = arith.index_cast %arg1 : i32 to index
    %c0_17 = arith.constant 0 : index
    %c0_18 = arith.constant 0 : index
    %34 = vector.load %arg16[%c0_16, %33, %c0_17, %c0_18] : memref<4x1x8x8xbf16, #tpu.memory_space<vmem>>, vector<1x1x8x8xbf16>
    %35 = vector.shape_cast %34 : vector<1x1x8x8xbf16> to vector<8x8xbf16>
    %cst_19 = arith.constant dense<0.000000e+00> : vector<8x8xf32>
    %36 = tpu.matmul %23, %32, %cst_19 {dimension_numbers = #tpu.dot_dimension_numbers<[1], [1], [0], [0], [0, 0, 1, 0], [], []>} : vector<8x8xbf16>, vector<8x8xbf16>, vector<8x8xf32> -> vector<8x8xf32>
    %cst_20 = arith.constant -1.000000e+30 : f32
    %37 = vector.broadcast %cst_20 : f32 to vector<8x8xf32>
    %38 = arith.select %10, %36, %37 : vector<8x8xi1>, vector<8x8xf32>
    %cst_21 = arith.constant dense<0xFF800000> : vector<8xf32>
    %39 = vector.multi_reduction <maximumf>, %38, %cst_21 [1] : vector<8x8xf32> to vector<8xf32>
    %40 = vector.shape_cast %39 : vector<8xf32> to vector<8x1xf32>
    %41 = arith.maximumf %29#0, %40 : vector<8x1xf32>
    %42 = arith.subf %29#0, %41 : vector<8x1xf32>
    %43 = math.exp %42 : vector<8x1xf32>
    %44 = vector.broadcast %41 : vector<8x1xf32> to vector<8x8xf32>
    %45 = arith.subf %38, %44 : vector<8x8xf32>
    %46 = math.exp %45 : vector<8x8xf32>
    %47 = arith.mulf %43, %29#1 : vector<8x1xf32>
    %cst_22 = arith.constant dense<0.000000e+00> : vector<8xf32>
    %48 = vector.multi_reduction <add>, %46, %cst_22 [1] : vector<8x8xf32> to vector<8xf32>
    %49 = vector.shape_cast %48 : vector<8xf32> to vector<8x1xf32>
    %50 = arith.addf %47, %49 : vector<8x1xf32>
    %51 = vector.broadcast %43 : vector<8x1xf32> to vector<8x8xf32>
    %52 = arith.mulf %51, %29#2 : vector<8x8xf32>
    %53 = arith.truncf %46 : vector<8x8xf32> to vector<8x8xbf16>
    %cst_23 = arith.constant dense<0.000000e+00> : vector<8x8xf32>
    %54 = tpu.matmul %53, %35, %cst_23 {dimension_numbers = #tpu.dot_dimension_numbers<[1], [0], [0], [1], [0, 0, 1, 1], [], []>} : vector<8x8xbf16>, vector<8x8xbf16>, vector<8x8xf32> -> vector<8x8xf32>
    %55 = arith.addf %52, %54 : vector<8x8xf32>
    %56 = tpu.reciprocal %50 {approx = true} : vector<8x1xf32> -> vector<8x1xf32>
    %57 = vector.broadcast %56 : vector<8x1xf32> to vector<8x8xf32>
    %58 = arith.mulf %55, %57 : vector<8x8xf32>
    %59 = arith.truncf %58 : vector<8x8xf32> to vector<8x8xbf16>
    %c0_24 = arith.constant 0 : index
    %c0_25 = arith.constant 0 : index
    %c0_26 = arith.constant 0 : index
    %60 = vector.load %arg7[%c0_24, %c0_25, %c0_26] : memref<4x8x32xbf16, #tpu.memory_space<vmem>>, vector<1x8x32xbf16>
    %61 = vector.shape_cast %60 : vector<1x8x32xbf16> to vector<8x32xbf16>
    %cst_27 = arith.constant dense<0.000000e+00> : vector<8x32xf32>
    %62 = tpu.matmul %59, %61, %cst_27 {dimension_numbers = #tpu.dot_dimension_numbers<[1], [0], [0], [1], [0, 0, 1, 1], [], []>} : vector<8x8xbf16>, vector<8x32xbf16>, vector<8x32xf32> -> vector<8x32xf32>
    %63 = arith.addf %11, %62 : vector<8x32xf32>
    %64 = vector.extract_strided_slice %7 {offsets = [0, 8], sizes = [8, 8], strides = [1, 1]} : vector<8x32xf32> to vector<8x8xf32>
    %65 = arith.mulf %64, %64 : vector<8x8xf32>
    %cst_28 = arith.constant dense<0.000000e+00> : vector<8xf32>
    %66 = vector.multi_reduction <add>, %65, %cst_28 [1] : vector<8x8xf32> to vector<8xf32>
    %67 = vector.shape_cast %66 : vector<8xf32> to vector<8x1xf32>
    %cst_29 = arith.constant 9.99999996E-13 : f32
    %68 = vector.broadcast %cst_29 : f32 to vector<8x1xf32>
    %69 = arith.addf %67, %68 : vector<8x1xf32>
    %70 = math.rsqrt %69 : vector<8x1xf32>
    %71 = vector.broadcast %70 : vector<8x1xf32> to vector<8x8xf32>
    %72 = arith.mulf %64, %71 : vector<8x8xf32>
    %cst_30 = arith.constant 1.000000e+01 : f32
    %73 = vector.broadcast %cst_30 : f32 to vector<8x8xf32>
    %74 = arith.mulf %72, %73 : vector<8x8xf32>
    %75 = arith.truncf %74 : vector<8x8xf32> to vector<8x8xbf16>
    %cst_31 = arith.constant 0xFF800000 : f32
    %76 = vector.broadcast %cst_31 : f32 to vector<8x1xf32>
    %cst_32 = arith.constant 0.000000e+00 : f32
    %77 = vector.broadcast %cst_32 : f32 to vector<8x1xf32>
    %cst_33 = arith.constant 0.000000e+00 : f32
    %78 = vector.broadcast %cst_33 : f32 to vector<8x8xf32>
    %c0_i32_34 = arith.constant 0 : i32
    %79 = arith.subi %arg1, %c0_i32_34 : i32
    %80 = arith.addi %c0_i32_34, %79 : i32
    %c1_i32_35 = arith.constant 1 : i32
    %81:3 = scf.for %arg17 = %c0_i32_34 to %80 step %c1_i32_35 iter_args(%arg18 = %76, %arg19 = %77, %arg20 = %78) -> (vector<8x1xf32>, vector<8x1xf32>, vector<8x8xf32>)  : i32 {
      %c1_117 = arith.constant 1 : index
      %267 = arith.index_cast %arg17 : i32 to index
      %c0_118 = arith.constant 0 : index
      %c0_119 = arith.constant 0 : index
      %268 = vector.load %arg15[%c1_117, %267, %c0_118, %c0_119] : memref<4x1x8x8xbf16, #tpu.memory_space<vmem>>, vector<1x1x8x8xbf16>
      %269 = vector.shape_cast %268 : vector<1x1x8x8xbf16> to vector<8x8xbf16>
      %c1_120 = arith.constant 1 : index
      %270 = arith.index_cast %arg17 : i32 to index
      %c0_121 = arith.constant 0 : index
      %c0_122 = arith.constant 0 : index
      %271 = vector.load %arg16[%c1_120, %270, %c0_121, %c0_122] : memref<4x1x8x8xbf16, #tpu.memory_space<vmem>>, vector<1x1x8x8xbf16>
      %272 = vector.shape_cast %271 : vector<1x1x8x8xbf16> to vector<8x8xbf16>
      %cst_123 = arith.constant dense<0.000000e+00> : vector<8x8xf32>
      %273 = tpu.matmul %75, %269, %cst_123 {dimension_numbers = #tpu.dot_dimension_numbers<[1], [1], [0], [0], [0, 0, 1, 0], [], []>} : vector<8x8xbf16>, vector<8x8xbf16>, vector<8x8xf32> -> vector<8x8xf32>
      %cst_124 = arith.constant dense<0xFF800000> : vector<8xf32>
      %274 = vector.multi_reduction <maximumf>, %273, %cst_124 [1] : vector<8x8xf32> to vector<8xf32>
      %275 = vector.shape_cast %274 : vector<8xf32> to vector<8x1xf32>
      %276 = arith.maximumf %arg18, %275 : vector<8x1xf32>
      %277 = arith.subf %arg18, %276 : vector<8x1xf32>
      %278 = math.exp %277 : vector<8x1xf32>
      %279 = vector.broadcast %276 : vector<8x1xf32> to vector<8x8xf32>
      %280 = arith.subf %273, %279 : vector<8x8xf32>
      %281 = math.exp %280 : vector<8x8xf32>
      %282 = arith.mulf %278, %arg19 : vector<8x1xf32>
      %cst_125 = arith.constant dense<0.000000e+00> : vector<8xf32>
      %283 = vector.multi_reduction <add>, %281, %cst_125 [1] : vector<8x8xf32> to vector<8xf32>
      %284 = vector.shape_cast %283 : vector<8xf32> to vector<8x1xf32>
      %285 = arith.addf %282, %284 : vector<8x1xf32>
      %286 = vector.broadcast %278 : vector<8x1xf32> to vector<8x8xf32>
      %287 = arith.mulf %286, %arg20 : vector<8x8xf32>
      %288 = arith.truncf %281 : vector<8x8xf32> to vector<8x8xbf16>
      %cst_126 = arith.constant dense<0.000000e+00> : vector<8x8xf32>
      %289 = tpu.matmul %288, %272, %cst_126 {dimension_numbers = #tpu.dot_dimension_numbers<[1], [0], [0], [1], [0, 0, 1, 1], [], []>} : vector<8x8xbf16>, vector<8x8xbf16>, vector<8x8xf32> -> vector<8x8xf32>
      %290 = arith.addf %287, %289 : vector<8x8xf32>
      scf.yield %276, %285, %290 : vector<8x1xf32>, vector<8x1xf32>, vector<8x8xf32>
    }
    %c1 = arith.constant 1 : index
    %82 = arith.index_cast %arg1 : i32 to index
    %c0_36 = arith.constant 0 : index
    %c0_37 = arith.constant 0 : index
    %83 = vector.load %arg15[%c1, %82, %c0_36, %c0_37] : memref<4x1x8x8xbf16, #tpu.memory_space<vmem>>, vector<1x1x8x8xbf16>
    %84 = vector.shape_cast %83 : vector<1x1x8x8xbf16> to vector<8x8xbf16>
    %c1_38 = arith.constant 1 : index
    %85 = arith.index_cast %arg1 : i32 to index
    %c0_39 = arith.constant 0 : index
    %c0_40 = arith.constant 0 : index
    %86 = vector.load %arg16[%c1_38, %85, %c0_39, %c0_40] : memref<4x1x8x8xbf16, #tpu.memory_space<vmem>>, vector<1x1x8x8xbf16>
    %87 = vector.shape_cast %86 : vector<1x1x8x8xbf16> to vector<8x8xbf16>
    %cst_41 = arith.constant dense<0.000000e+00> : vector<8x8xf32>
    %88 = tpu.matmul %75, %84, %cst_41 {dimension_numbers = #tpu.dot_dimension_numbers<[1], [1], [0], [0], [0, 0, 1, 0], [], []>} : vector<8x8xbf16>, vector<8x8xbf16>, vector<8x8xf32> -> vector<8x8xf32>
    %cst_42 = arith.constant -1.000000e+30 : f32
    %89 = vector.broadcast %cst_42 : f32 to vector<8x8xf32>
    %90 = arith.select %10, %88, %89 : vector<8x8xi1>, vector<8x8xf32>
    %cst_43 = arith.constant dense<0xFF800000> : vector<8xf32>
    %91 = vector.multi_reduction <maximumf>, %90, %cst_43 [1] : vector<8x8xf32> to vector<8xf32>
    %92 = vector.shape_cast %91 : vector<8xf32> to vector<8x1xf32>
    %93 = arith.maximumf %81#0, %92 : vector<8x1xf32>
    %94 = arith.subf %81#0, %93 : vector<8x1xf32>
    %95 = math.exp %94 : vector<8x1xf32>
    %96 = vector.broadcast %93 : vector<8x1xf32> to vector<8x8xf32>
    %97 = arith.subf %90, %96 : vector<8x8xf32>
    %98 = math.exp %97 : vector<8x8xf32>
    %99 = arith.mulf %95, %81#1 : vector<8x1xf32>
    %cst_44 = arith.constant dense<0.000000e+00> : vector<8xf32>
    %100 = vector.multi_reduction <add>, %98, %cst_44 [1] : vector<8x8xf32> to vector<8xf32>
    %101 = vector.shape_cast %100 : vector<8xf32> to vector<8x1xf32>
    %102 = arith.addf %99, %101 : vector<8x1xf32>
    %103 = vector.broadcast %95 : vector<8x1xf32> to vector<8x8xf32>
    %104 = arith.mulf %103, %81#2 : vector<8x8xf32>
    %105 = arith.truncf %98 : vector<8x8xf32> to vector<8x8xbf16>
    %cst_45 = arith.constant dense<0.000000e+00> : vector<8x8xf32>
    %106 = tpu.matmul %105, %87, %cst_45 {dimension_numbers = #tpu.dot_dimension_numbers<[1], [0], [0], [1], [0, 0, 1, 1], [], []>} : vector<8x8xbf16>, vector<8x8xbf16>, vector<8x8xf32> -> vector<8x8xf32>
    %107 = arith.addf %104, %106 : vector<8x8xf32>
    %108 = tpu.reciprocal %102 {approx = true} : vector<8x1xf32> -> vector<8x1xf32>
    %109 = vector.broadcast %108 : vector<8x1xf32> to vector<8x8xf32>
    %110 = arith.mulf %107, %109 : vector<8x8xf32>
    %111 = arith.truncf %110 : vector<8x8xf32> to vector<8x8xbf16>
    %c1_46 = arith.constant 1 : index
    %c0_47 = arith.constant 0 : index
    %c0_48 = arith.constant 0 : index
    %112 = vector.load %arg7[%c1_46, %c0_47, %c0_48] : memref<4x8x32xbf16, #tpu.memory_space<vmem>>, vector<1x8x32xbf16>
    %113 = vector.shape_cast %112 : vector<1x8x32xbf16> to vector<8x32xbf16>
    %cst_49 = arith.constant dense<0.000000e+00> : vector<8x32xf32>
    %114 = tpu.matmul %111, %113, %cst_49 {dimension_numbers = #tpu.dot_dimension_numbers<[1], [0], [0], [1], [0, 0, 1, 1], [], []>} : vector<8x8xbf16>, vector<8x32xbf16>, vector<8x32xf32> -> vector<8x32xf32>
    %115 = arith.addf %63, %114 : vector<8x32xf32>
    %116 = vector.extract_strided_slice %7 {offsets = [0, 16], sizes = [8, 8], strides = [1, 1]} : vector<8x32xf32> to vector<8x8xf32>
    %117 = arith.mulf %116, %116 : vector<8x8xf32>
    %cst_50 = arith.constant dense<0.000000e+00> : vector<8xf32>
    %118 = vector.multi_reduction <add>, %117, %cst_50 [1] : vector<8x8xf32> to vector<8xf32>
    %119 = vector.shape_cast %118 : vector<8xf32> to vector<8x1xf32>
    %cst_51 = arith.constant 9.99999996E-13 : f32
    %120 = vector.broadcast %cst_51 : f32 to vector<8x1xf32>
    %121 = arith.addf %119, %120 : vector<8x1xf32>
    %122 = math.rsqrt %121 : vector<8x1xf32>
    %123 = vector.broadcast %122 : vector<8x1xf32> to vector<8x8xf32>
    %124 = arith.mulf %116, %123 : vector<8x8xf32>
    %cst_52 = arith.constant 1.000000e+01 : f32
    %125 = vector.broadcast %cst_52 : f32 to vector<8x8xf32>
    %126 = arith.mulf %124, %125 : vector<8x8xf32>
    %127 = arith.truncf %126 : vector<8x8xf32> to vector<8x8xbf16>
    %cst_53 = arith.constant 0xFF800000 : f32
    %128 = vector.broadcast %cst_53 : f32 to vector<8x1xf32>
    %cst_54 = arith.constant 0.000000e+00 : f32
    %129 = vector.broadcast %cst_54 : f32 to vector<8x1xf32>
    %cst_55 = arith.constant 0.000000e+00 : f32
    %130 = vector.broadcast %cst_55 : f32 to vector<8x8xf32>
    %c0_i32_56 = arith.constant 0 : i32
    %131 = arith.subi %arg1, %c0_i32_56 : i32
    %132 = arith.addi %c0_i32_56, %131 : i32
    %c1_i32_57 = arith.constant 1 : i32
    %133:3 = scf.for %arg17 = %c0_i32_56 to %132 step %c1_i32_57 iter_args(%arg18 = %128, %arg19 = %129, %arg20 = %130) -> (vector<8x1xf32>, vector<8x1xf32>, vector<8x8xf32>)  : i32 {
      %c2_117 = arith.constant 2 : index
      %267 = arith.index_cast %arg17 : i32 to index
      %c0_118 = arith.constant 0 : index
      %c0_119 = arith.constant 0 : index
      %268 = vector.load %arg15[%c2_117, %267, %c0_118, %c0_119] : memref<4x1x8x8xbf16, #tpu.memory_space<vmem>>, vector<1x1x8x8xbf16>
      %269 = vector.shape_cast %268 : vector<1x1x8x8xbf16> to vector<8x8xbf16>
      %c2_120 = arith.constant 2 : index
      %270 = arith.index_cast %arg17 : i32 to index
      %c0_121 = arith.constant 0 : index
      %c0_122 = arith.constant 0 : index
      %271 = vector.load %arg16[%c2_120, %270, %c0_121, %c0_122] : memref<4x1x8x8xbf16, #tpu.memory_space<vmem>>, vector<1x1x8x8xbf16>
      %272 = vector.shape_cast %271 : vector<1x1x8x8xbf16> to vector<8x8xbf16>
      %cst_123 = arith.constant dense<0.000000e+00> : vector<8x8xf32>
      %273 = tpu.matmul %127, %269, %cst_123 {dimension_numbers = #tpu.dot_dimension_numbers<[1], [1], [0], [0], [0, 0, 1, 0], [], []>} : vector<8x8xbf16>, vector<8x8xbf16>, vector<8x8xf32> -> vector<8x8xf32>
      %cst_124 = arith.constant dense<0xFF800000> : vector<8xf32>
      %274 = vector.multi_reduction <maximumf>, %273, %cst_124 [1] : vector<8x8xf32> to vector<8xf32>
      %275 = vector.shape_cast %274 : vector<8xf32> to vector<8x1xf32>
      %276 = arith.maximumf %arg18, %275 : vector<8x1xf32>
      %277 = arith.subf %arg18, %276 : vector<8x1xf32>
      %278 = math.exp %277 : vector<8x1xf32>
      %279 = vector.broadcast %276 : vector<8x1xf32> to vector<8x8xf32>
      %280 = arith.subf %273, %279 : vector<8x8xf32>
      %281 = math.exp %280 : vector<8x8xf32>
      %282 = arith.mulf %278, %arg19 : vector<8x1xf32>
      %cst_125 = arith.constant dense<0.000000e+00> : vector<8xf32>
      %283 = vector.multi_reduction <add>, %281, %cst_125 [1] : vector<8x8xf32> to vector<8xf32>
      %284 = vector.shape_cast %283 : vector<8xf32> to vector<8x1xf32>
      %285 = arith.addf %282, %284 : vector<8x1xf32>
      %286 = vector.broadcast %278 : vector<8x1xf32> to vector<8x8xf32>
      %287 = arith.mulf %286, %arg20 : vector<8x8xf32>
      %288 = arith.truncf %281 : vector<8x8xf32> to vector<8x8xbf16>
      %cst_126 = arith.constant dense<0.000000e+00> : vector<8x8xf32>
      %289 = tpu.matmul %288, %272, %cst_126 {dimension_numbers = #tpu.dot_dimension_numbers<[1], [0], [0], [1], [0, 0, 1, 1], [], []>} : vector<8x8xbf16>, vector<8x8xbf16>, vector<8x8xf32> -> vector<8x8xf32>
      %290 = arith.addf %287, %289 : vector<8x8xf32>
      scf.yield %276, %285, %290 : vector<8x1xf32>, vector<8x1xf32>, vector<8x8xf32>
    }
    %c2 = arith.constant 2 : index
    %134 = arith.index_cast %arg1 : i32 to index
    %c0_58 = arith.constant 0 : index
    %c0_59 = arith.constant 0 : index
    %135 = vector.load %arg15[%c2, %134, %c0_58, %c0_59] : memref<4x1x8x8xbf16, #tpu.memory_space<vmem>>, vector<1x1x8x8xbf16>
    %136 = vector.shape_cast %135 : vector<1x1x8x8xbf16> to vector<8x8xbf16>
    %c2_60 = arith.constant 2 : index
    %137 = arith.index_cast %arg1 : i32 to index
    %c0_61 = arith.constant 0 : index
    %c0_62 = arith.constant 0 : index
    %138 = vector.load %arg16[%c2_60, %137, %c0_61, %c0_62] : memref<4x1x8x8xbf16, #tpu.memory_space<vmem>>, vector<1x1x8x8xbf16>
    %139 = vector.shape_cast %138 : vector<1x1x8x8xbf16> to vector<8x8xbf16>
    %cst_63 = arith.constant dense<0.000000e+00> : vector<8x8xf32>
    %140 = tpu.matmul %127, %136, %cst_63 {dimension_numbers = #tpu.dot_dimension_numbers<[1], [1], [0], [0], [0, 0, 1, 0], [], []>} : vector<8x8xbf16>, vector<8x8xbf16>, vector<8x8xf32> -> vector<8x8xf32>
    %cst_64 = arith.constant -1.000000e+30 : f32
    %141 = vector.broadcast %cst_64 : f32 to vector<8x8xf32>
    %142 = arith.select %10, %140, %141 : vector<8x8xi1>, vector<8x8xf32>
    %cst_65 = arith.constant dense<0xFF800000> : vector<8xf32>
    %143 = vector.multi_reduction <maximumf>, %142, %cst_65 [1] : vector<8x8xf32> to vector<8xf32>
    %144 = vector.shape_cast %143 : vector<8xf32> to vector<8x1xf32>
    %145 = arith.maximumf %133#0, %144 : vector<8x1xf32>
    %146 = arith.subf %133#0, %145 : vector<8x1xf32>
    %147 = math.exp %146 : vector<8x1xf32>
    %148 = vector.broadcast %145 : vector<8x1xf32> to vector<8x8xf32>
    %149 = arith.subf %142, %148 : vector<8x8xf32>
    %150 = math.exp %149 : vector<8x8xf32>
    %151 = arith.mulf %147, %133#1 : vector<8x1xf32>
    %cst_66 = arith.constant dense<0.000000e+00> : vector<8xf32>
    %152 = vector.multi_reduction <add>, %150, %cst_66 [1] : vector<8x8xf32> to vector<8xf32>
    %153 = vector.shape_cast %152 : vector<8xf32> to vector<8x1xf32>
    %154 = arith.addf %151, %153 : vector<8x1xf32>
    %155 = vector.broadcast %147 : vector<8x1xf32> to vector<8x8xf32>
    %156 = arith.mulf %155, %133#2 : vector<8x8xf32>
    %157 = arith.truncf %150 : vector<8x8xf32> to vector<8x8xbf16>
    %cst_67 = arith.constant dense<0.000000e+00> : vector<8x8xf32>
    %158 = tpu.matmul %157, %139, %cst_67 {dimension_numbers = #tpu.dot_dimension_numbers<[1], [0], [0], [1], [0, 0, 1, 1], [], []>} : vector<8x8xbf16>, vector<8x8xbf16>, vector<8x8xf32> -> vector<8x8xf32>
    %159 = arith.addf %156, %158 : vector<8x8xf32>
    %160 = tpu.reciprocal %154 {approx = true} : vector<8x1xf32> -> vector<8x1xf32>
    %161 = vector.broadcast %160 : vector<8x1xf32> to vector<8x8xf32>
    %162 = arith.mulf %159, %161 : vector<8x8xf32>
    %163 = arith.truncf %162 : vector<8x8xf32> to vector<8x8xbf16>
    %c2_68 = arith.constant 2 : index
    %c0_69 = arith.constant 0 : index
    %c0_70 = arith.constant 0 : index
    %164 = vector.load %arg7[%c2_68, %c0_69, %c0_70] : memref<4x8x32xbf16, #tpu.memory_space<vmem>>, vector<1x8x32xbf16>
    %165 = vector.shape_cast %164 : vector<1x8x32xbf16> to vector<8x32xbf16>
    %cst_71 = arith.constant dense<0.000000e+00> : vector<8x32xf32>
    %166 = tpu.matmul %163, %165, %cst_71 {dimension_numbers = #tpu.dot_dimension_numbers<[1], [0], [0], [1], [0, 0, 1, 1], [], []>} : vector<8x8xbf16>, vector<8x32xbf16>, vector<8x32xf32> -> vector<8x32xf32>
    %167 = arith.addf %115, %166 : vector<8x32xf32>
    %168 = vector.extract_strided_slice %7 {offsets = [0, 24], sizes = [8, 8], strides = [1, 1]} : vector<8x32xf32> to vector<8x8xf32>
    %169 = arith.mulf %168, %168 : vector<8x8xf32>
    %cst_72 = arith.constant dense<0.000000e+00> : vector<8xf32>
    %170 = vector.multi_reduction <add>, %169, %cst_72 [1] : vector<8x8xf32> to vector<8xf32>
    %171 = vector.shape_cast %170 : vector<8xf32> to vector<8x1xf32>
    %cst_73 = arith.constant 9.99999996E-13 : f32
    %172 = vector.broadcast %cst_73 : f32 to vector<8x1xf32>
    %173 = arith.addf %171, %172 : vector<8x1xf32>
    %174 = math.rsqrt %173 : vector<8x1xf32>
    %175 = vector.broadcast %174 : vector<8x1xf32> to vector<8x8xf32>
    %176 = arith.mulf %168, %175 : vector<8x8xf32>
    %cst_74 = arith.constant 1.000000e+01 : f32
    %177 = vector.broadcast %cst_74 : f32 to vector<8x8xf32>
    %178 = arith.mulf %176, %177 : vector<8x8xf32>
    %179 = arith.truncf %178 : vector<8x8xf32> to vector<8x8xbf16>
    %cst_75 = arith.constant 0xFF800000 : f32
    %180 = vector.broadcast %cst_75 : f32 to vector<8x1xf32>
    %cst_76 = arith.constant 0.000000e+00 : f32
    %181 = vector.broadcast %cst_76 : f32 to vector<8x1xf32>
    %cst_77 = arith.constant 0.000000e+00 : f32
    %182 = vector.broadcast %cst_77 : f32 to vector<8x8xf32>
    %c0_i32_78 = arith.constant 0 : i32
    %183 = arith.subi %arg1, %c0_i32_78 : i32
    %184 = arith.addi %c0_i32_78, %183 : i32
    %c1_i32_79 = arith.constant 1 : i32
    %185:3 = scf.for %arg17 = %c0_i32_78 to %184 step %c1_i32_79 iter_args(%arg18 = %180, %arg19 = %181, %arg20 = %182) -> (vector<8x1xf32>, vector<8x1xf32>, vector<8x8xf32>)  : i32 {
      %c3_117 = arith.constant 3 : index
      %267 = arith.index_cast %arg17 : i32 to index
      %c0_118 = arith.constant 0 : index
      %c0_119 = arith.constant 0 : index
      %268 = vector.load %arg15[%c3_117, %267, %c0_118, %c0_119] : memref<4x1x8x8xbf16, #tpu.memory_space<vmem>>, vector<1x1x8x8xbf16>
      %269 = vector.shape_cast %268 : vector<1x1x8x8xbf16> to vector<8x8xbf16>
      %c3_120 = arith.constant 3 : index
      %270 = arith.index_cast %arg17 : i32 to index
      %c0_121 = arith.constant 0 : index
      %c0_122 = arith.constant 0 : index
      %271 = vector.load %arg16[%c3_120, %270, %c0_121, %c0_122] : memref<4x1x8x8xbf16, #tpu.memory_space<vmem>>, vector<1x1x8x8xbf16>
      %272 = vector.shape_cast %271 : vector<1x1x8x8xbf16> to vector<8x8xbf16>
      %cst_123 = arith.constant dense<0.000000e+00> : vector<8x8xf32>
      %273 = tpu.matmul %179, %269, %cst_123 {dimension_numbers = #tpu.dot_dimension_numbers<[1], [1], [0], [0], [0, 0, 1, 0], [], []>} : vector<8x8xbf16>, vector<8x8xbf16>, vector<8x8xf32> -> vector<8x8xf32>
      %cst_124 = arith.constant dense<0xFF800000> : vector<8xf32>
      %274 = vector.multi_reduction <maximumf>, %273, %cst_124 [1] : vector<8x8xf32> to vector<8xf32>
      %275 = vector.shape_cast %274 : vector<8xf32> to vector<8x1xf32>
      %276 = arith.maximumf %arg18, %275 : vector<8x1xf32>
      %277 = arith.subf %arg18, %276 : vector<8x1xf32>
      %278 = math.exp %277 : vector<8x1xf32>
      %279 = vector.broadcast %276 : vector<8x1xf32> to vector<8x8xf32>
      %280 = arith.subf %273, %279 : vector<8x8xf32>
      %281 = math.exp %280 : vector<8x8xf32>
      %282 = arith.mulf %278, %arg19 : vector<8x1xf32>
      %cst_125 = arith.constant dense<0.000000e+00> : vector<8xf32>
      %283 = vector.multi_reduction <add>, %281, %cst_125 [1] : vector<8x8xf32> to vector<8xf32>
      %284 = vector.shape_cast %283 : vector<8xf32> to vector<8x1xf32>
      %285 = arith.addf %282, %284 : vector<8x1xf32>
      %286 = vector.broadcast %278 : vector<8x1xf32> to vector<8x8xf32>
      %287 = arith.mulf %286, %arg20 : vector<8x8xf32>
      %288 = arith.truncf %281 : vector<8x8xf32> to vector<8x8xbf16>
      %cst_126 = arith.constant dense<0.000000e+00> : vector<8x8xf32>
      %289 = tpu.matmul %288, %272, %cst_126 {dimension_numbers = #tpu.dot_dimension_numbers<[1], [0], [0], [1], [0, 0, 1, 1], [], []>} : vector<8x8xbf16>, vector<8x8xbf16>, vector<8x8xf32> -> vector<8x8xf32>
      %290 = arith.addf %287, %289 : vector<8x8xf32>
      scf.yield %276, %285, %290 : vector<8x1xf32>, vector<8x1xf32>, vector<8x8xf32>
    }
    %c3 = arith.constant 3 : index
    %186 = arith.index_cast %arg1 : i32 to index
    %c0_80 = arith.constant 0 : index
    %c0_81 = arith.constant 0 : index
    %187 = vector.load %arg15[%c3, %186, %c0_80, %c0_81] : memref<4x1x8x8xbf16, #tpu.memory_space<vmem>>, vector<1x1x8x8xbf16>
    %188 = vector.shape_cast %187 : vector<1x1x8x8xbf16> to vector<8x8xbf16>
    %c3_82 = arith.constant 3 : index
    %189 = arith.index_cast %arg1 : i32 to index
    %c0_83 = arith.constant 0 : index
    %c0_84 = arith.constant 0 : index
    %190 = vector.load %arg16[%c3_82, %189, %c0_83, %c0_84] : memref<4x1x8x8xbf16, #tpu.memory_space<vmem>>, vector<1x1x8x8xbf16>
    %191 = vector.shape_cast %190 : vector<1x1x8x8xbf16> to vector<8x8xbf16>
    %cst_85 = arith.constant dense<0.000000e+00> : vector<8x8xf32>
    %192 = tpu.matmul %179, %188, %cst_85 {dimension_numbers = #tpu.dot_dimension_numbers<[1], [1], [0], [0], [0, 0, 1, 0], [], []>} : vector<8x8xbf16>, vector<8x8xbf16>, vector<8x8xf32> -> vector<8x8xf32>
    %cst_86 = arith.constant -1.000000e+30 : f32
    %193 = vector.broadcast %cst_86 : f32 to vector<8x8xf32>
    %194 = arith.select %10, %192, %193 : vector<8x8xi1>, vector<8x8xf32>
    %cst_87 = arith.constant dense<0xFF800000> : vector<8xf32>
    %195 = vector.multi_reduction <maximumf>, %194, %cst_87 [1] : vector<8x8xf32> to vector<8xf32>
    %196 = vector.shape_cast %195 : vector<8xf32> to vector<8x1xf32>
    %197 = arith.maximumf %185#0, %196 : vector<8x1xf32>
    %198 = arith.subf %185#0, %197 : vector<8x1xf32>
    %199 = math.exp %198 : vector<8x1xf32>
    %200 = vector.broadcast %197 : vector<8x1xf32> to vector<8x8xf32>
    %201 = arith.subf %194, %200 : vector<8x8xf32>
    %202 = math.exp %201 : vector<8x8xf32>
    %203 = arith.mulf %199, %185#1 : vector<8x1xf32>
    %cst_88 = arith.constant dense<0.000000e+00> : vector<8xf32>
    %204 = vector.multi_reduction <add>, %202, %cst_88 [1] : vector<8x8xf32> to vector<8xf32>
    %205 = vector.shape_cast %204 : vector<8xf32> to vector<8x1xf32>
    %206 = arith.addf %203, %205 : vector<8x1xf32>
    %207 = vector.broadcast %199 : vector<8x1xf32> to vector<8x8xf32>
    %208 = arith.mulf %207, %185#2 : vector<8x8xf32>
    %209 = arith.truncf %202 : vector<8x8xf32> to vector<8x8xbf16>
    %cst_89 = arith.constant dense<0.000000e+00> : vector<8x8xf32>
    %210 = tpu.matmul %209, %191, %cst_89 {dimension_numbers = #tpu.dot_dimension_numbers<[1], [0], [0], [1], [0, 0, 1, 1], [], []>} : vector<8x8xbf16>, vector<8x8xbf16>, vector<8x8xf32> -> vector<8x8xf32>
    %211 = arith.addf %208, %210 : vector<8x8xf32>
    %212 = tpu.reciprocal %206 {approx = true} : vector<8x1xf32> -> vector<8x1xf32>
    %213 = vector.broadcast %212 : vector<8x1xf32> to vector<8x8xf32>
    %214 = arith.mulf %211, %213 : vector<8x8xf32>
    %215 = arith.truncf %214 : vector<8x8xf32> to vector<8x8xbf16>
    %c3_90 = arith.constant 3 : index
    %c0_91 = arith.constant 0 : index
    %c0_92 = arith.constant 0 : index
    %216 = vector.load %arg7[%c3_90, %c0_91, %c0_92] : memref<4x8x32xbf16, #tpu.memory_space<vmem>>, vector<1x8x32xbf16>
    %217 = vector.shape_cast %216 : vector<1x8x32xbf16> to vector<8x32xbf16>
    %cst_93 = arith.constant dense<0.000000e+00> : vector<8x32xf32>
    %218 = tpu.matmul %215, %217, %cst_93 {dimension_numbers = #tpu.dot_dimension_numbers<[1], [0], [0], [1], [0, 0, 1, 1], [], []>} : vector<8x8xbf16>, vector<8x32xbf16>, vector<8x32xf32> -> vector<8x32xf32>
    %219 = arith.addf %167, %218 : vector<8x32xf32>
    %220 = arith.addf %219, %4 : vector<8x32xf32>
    %221 = arith.truncf %220 : vector<8x32xf32> to vector<8x32xbf16>
    %c0_94 = arith.constant 0 : index
    %c0_95 = arith.constant 0 : index
    %222 = vector.load %arg8[%c0_94, %c0_95] : memref<32x128xbf16, #tpu.memory_space<vmem>>, vector<32x128xbf16>
    %cst_96 = arith.constant dense<0.000000e+00> : vector<8x128xf32>
    %223 = tpu.matmul %221, %222, %cst_96 {dimension_numbers = #tpu.dot_dimension_numbers<[1], [0], [0], [1], [0, 0, 1, 1], [], []>} : vector<8x32xbf16>, vector<32x128xbf16>, vector<8x128xf32> -> vector<8x128xf32>
    %c0_97 = arith.constant 0 : index
    %c0_98 = arith.constant 0 : index
    %224 = vector.load %arg9[%c0_97, %c0_98] : memref<1x128xf32, #tpu.memory_space<vmem>>, vector<1x128xf32>
    %225 = vector.broadcast %224 : vector<1x128xf32> to vector<8x128xf32>
    %226 = arith.addf %223, %225 : vector<8x128xf32>
    %227 = arith.negf %226 : vector<8x128xf32>
    %228 = math.exp %227 : vector<8x128xf32>
    %cst_99 = arith.constant 1.000000e+00 : f32
    %229 = vector.broadcast %cst_99 : f32 to vector<8x128xf32>
    %230 = arith.addf %229, %228 : vector<8x128xf32>
    %231 = arith.divf %229, %230 : vector<8x128xf32>
    %232 = arith.mulf %226, %231 : vector<8x128xf32>
    %cst_100 = arith.constant dense<0.000000e+00> : vector<8xf32>
    %233 = vector.multi_reduction <add>, %232, %cst_100 [1] : vector<8x128xf32> to vector<8xf32>
    %234 = vector.shape_cast %233 : vector<8xf32> to vector<8x1xf32>
    %cst_101 = arith.constant 1.280000e+02 : f32
    %235 = vector.broadcast %cst_101 : f32 to vector<8x1xf32>
    %236 = arith.divf %234, %235 : vector<8x1xf32>
    %237 = vector.broadcast %236 : vector<8x1xf32> to vector<8x128xf32>
    %238 = arith.subf %232, %237 : vector<8x128xf32>
    %239 = arith.mulf %238, %238 : vector<8x128xf32>
    %cst_102 = arith.constant dense<0.000000e+00> : vector<8xf32>
    %240 = vector.multi_reduction <add>, %239, %cst_102 [1] : vector<8x128xf32> to vector<8xf32>
    %241 = vector.shape_cast %240 : vector<8xf32> to vector<8x1xf32>
    %cst_103 = arith.constant 1.280000e+02 : f32
    %242 = vector.broadcast %cst_103 : f32 to vector<8x1xf32>
    %243 = arith.divf %241, %242 : vector<8x1xf32>
    %244 = vector.broadcast %236 : vector<8x1xf32> to vector<8x128xf32>
    %245 = arith.subf %232, %244 : vector<8x128xf32>
    %cst_104 = arith.constant 9.99999974E-6 : f32
    %246 = vector.broadcast %cst_104 : f32 to vector<8x1xf32>
    %247 = arith.addf %243, %246 : vector<8x1xf32>
    %248 = math.rsqrt %247 : vector<8x1xf32>
    %249 = vector.broadcast %248 : vector<8x1xf32> to vector<8x128xf32>
    %250 = arith.mulf %245, %249 : vector<8x128xf32>
    %c0_105 = arith.constant 0 : index
    %c0_106 = arith.constant 0 : index
    %251 = vector.load %arg10[%c0_105, %c0_106] : memref<1x128xf32, #tpu.memory_space<vmem>>, vector<1x128xf32>
    %252 = vector.broadcast %251 : vector<1x128xf32> to vector<8x128xf32>
    %253 = arith.mulf %250, %252 : vector<8x128xf32>
    %c0_107 = arith.constant 0 : index
    %c0_108 = arith.constant 0 : index
    %254 = vector.load %arg11[%c0_107, %c0_108] : memref<1x128xf32, #tpu.memory_space<vmem>>, vector<1x128xf32>
    %255 = vector.broadcast %254 : vector<1x128xf32> to vector<8x128xf32>
    %256 = arith.addf %253, %255 : vector<8x128xf32>
    %257 = arith.truncf %256 : vector<8x128xf32> to vector<8x128xbf16>
    %c0_109 = arith.constant 0 : index
    %c0_110 = arith.constant 0 : index
    %258 = vector.load %arg12[%c0_109, %c0_110] : memref<128x32xbf16, #tpu.memory_space<vmem>>, vector<128x32xbf16>
    %cst_111 = arith.constant dense<0.000000e+00> : vector<8x32xf32>
    %259 = tpu.matmul %257, %258, %cst_111 {dimension_numbers = #tpu.dot_dimension_numbers<[1], [0], [0], [1], [0, 0, 1, 1], [], []>} : vector<8x128xbf16>, vector<128x32xbf16>, vector<8x32xf32> -> vector<8x32xf32>
    %c0_112 = arith.constant 0 : index
    %c0_113 = arith.constant 0 : index
    %260 = vector.load %arg13[%c0_112, %c0_113] : memref<1x32xf32, #tpu.memory_space<vmem>>, vector<1x32xf32>
    %261 = vector.broadcast %260 : vector<1x32xf32> to vector<8x32xf32>
    %262 = arith.addf %259, %261 : vector<8x32xf32>
    %263 = arith.addf %220, %262 : vector<8x32xf32>
    %c0_114 = arith.constant 0 : index
    %c0_115 = arith.constant 0 : index
    %c0_116 = arith.constant 0 : index
    %264 = vector.load %arg14[%c0_114, %c0_115, %c0_116] : memref<1x8x32xf32, #tpu.memory_space<vmem>>, vector<1x8x32xf32>
    %265 = vector.shape_cast %264 : vector<1x8x32xf32> to vector<8x32xf32>
    %266 = vector.shape_cast %263 : vector<8x32xf32> to vector<1x8x32xf32>
    tpu.vector_store %arg14[%c0_114, %c0_115, %c0_116], %266 {strides = array<i32>} : memref<1x8x32xf32, #tpu.memory_space<vmem>>, vector<1x8x32xf32>,
    return
  }
  func.func @transform_0(%arg0: i32, %arg1: i32) -> (i32, i32, i32) {
    %c0_i32 = arith.constant 0 : i32
    %c0_i32_0 = arith.constant 0 : i32
    return %arg0, %arg1, %c0_i32 : i32, i32, i32
  }
  func.func @transform_1(%arg0: i32, %arg1: i32) -> (i32, i32, i32) {
    %c0_i32 = arith.constant 0 : i32
    %c0_i32_0 = arith.constant 0 : i32
    %c0_i32_1 = arith.constant 0 : i32
    return %arg0, %c0_i32, %c0_i32_0 : i32, i32, i32
  }
  func.func @transform_2(%arg0: i32, %arg1: i32) -> (i32, i32) {
    %c0_i32 = arith.constant 0 : i32
    %c0_i32_0 = arith.constant 0 : i32
    %c0_i32_1 = arith.constant 0 : i32
    return %c0_i32, %c0_i32_0 : i32, i32
  }
  func.func @transform_3(%arg0: i32, %arg1: i32) -> (i32, i32) {
    %c0_i32 = arith.constant 0 : i32
    %c0_i32_0 = arith.constant 0 : i32
    %c0_i32_1 = arith.constant 0 : i32
    return %c0_i32, %c0_i32_0 : i32, i32
  }
  func.func @transform_4(%arg0: i32, %arg1: i32) -> (i32, i32) {
    %c0_i32 = arith.constant 0 : i32
    %c0_i32_0 = arith.constant 0 : i32
    %c0_i32_1 = arith.constant 0 : i32
    return %c0_i32, %c0_i32_0 : i32, i32
  }
  func.func @transform_5(%arg0: i32, %arg1: i32) -> (i32, i32, i32) {
    %c0_i32 = arith.constant 0 : i32
    %c0_i32_0 = arith.constant 0 : i32
    %c0_i32_1 = arith.constant 0 : i32
    %c0_i32_2 = arith.constant 0 : i32
    return %c0_i32, %c0_i32_0, %c0_i32_1 : i32, i32, i32
  }
  func.func @transform_6(%arg0: i32, %arg1: i32) -> (i32, i32) {
    %c0_i32 = arith.constant 0 : i32
    %c0_i32_0 = arith.constant 0 : i32
    %c0_i32_1 = arith.constant 0 : i32
    return %c0_i32, %c0_i32_0 : i32, i32
  }
  func.func @transform_7(%arg0: i32, %arg1: i32) -> (i32, i32) {
    %c0_i32 = arith.constant 0 : i32
    %c0_i32_0 = arith.constant 0 : i32
    %c0_i32_1 = arith.constant 0 : i32
    return %c0_i32, %c0_i32_0 : i32, i32
  }
  func.func @transform_8(%arg0: i32, %arg1: i32) -> (i32, i32) {
    %c0_i32 = arith.constant 0 : i32
    %c0_i32_0 = arith.constant 0 : i32
    %c0_i32_1 = arith.constant 0 : i32
    return %c0_i32, %c0_i32_0 : i32, i32
  }
  func.func @transform_9(%arg0: i32, %arg1: i32) -> (i32, i32) {
    %c0_i32 = arith.constant 0 : i32
    %c0_i32_0 = arith.constant 0 : i32
    %c0_i32_1 = arith.constant 0 : i32
    return %c0_i32, %c0_i32_0 : i32, i32
  }
  func.func @transform_10(%arg0: i32, %arg1: i32) -> (i32, i32) {
    %c0_i32 = arith.constant 0 : i32
    %c0_i32_0 = arith.constant 0 : i32
    %c0_i32_1 = arith.constant 0 : i32
    return %c0_i32, %c0_i32_0 : i32, i32
  }
  func.func @transform_11(%arg0: i32, %arg1: i32) -> (i32, i32) {
    %c0_i32 = arith.constant 0 : i32
    %c0_i32_0 = arith.constant 0 : i32
    %c0_i32_1 = arith.constant 0 : i32
    return %c0_i32, %c0_i32_0 : i32, i32
  }
  func.func @transform_12(%arg0: i32, %arg1: i32) -> (i32, i32, i32) {
    %c0_i32 = arith.constant 0 : i32
    %c0_i32_0 = arith.constant 0 : i32
    return %arg0, %arg1, %c0_i32 : i32, i32, i32
  }
}

module attributes {stable_mosaic.version = 11 : i64} {
  func.func @_decoder_layer_kernel(%arg0: i32, %arg1: i32, %arg2: memref<1x8x32xf32, #tpu.memory_space<vmem>>, %arg3: memref<1x8x32xf32, #tpu.memory_space<vmem>>, %arg4: memref<32x32xbf16, #tpu.memory_space<vmem>>, %arg5: memref<32x32xbf16, #tpu.memory_space<vmem>>, %arg6: memref<32x32xbf16, #tpu.memory_space<vmem>>, %arg7: memref<4x8x32xbf16, #tpu.memory_space<vmem>>, %arg8: memref<32x128xbf16, #tpu.memory_space<vmem>>, %arg9: memref<1x128xf32, #tpu.memory_space<vmem>>, %arg10: memref<1x128xf32, #tpu.memory_space<vmem>>, %arg11: memref<1x128xf32, #tpu.memory_space<vmem>>, %arg12: memref<128x32xbf16, #tpu.memory_space<vmem>>, %arg13: memref<1x32xf32, #tpu.memory_space<vmem>>, %arg14: memref<1x8x32xf32, #tpu.memory_space<vmem>>, %arg15: memref<4x1x8x8xbf16, #tpu.memory_space<vmem>>, %arg16: memref<4x1x8x8xbf16, #tpu.memory_space<vmem>>) attributes {dimension_semantics = [#tpu.dimension_semantics<parallel>, #tpu.dimension_semantics<arbitrary>], iteration_bounds = array<i64: 2, 1>, scalar_prefetch = 0 : i64, scratch_operands = 2 : i64, tpu.core_type = #tpu.core_type<tc>, window_params = [{transform_indices = @transform_0, window_bounds = array<i64: 1, 8, 32>}, {transform_indices = @transform_1, window_bounds = array<i64: 1, 8, 32>}, {pipeline_mode = #tpu.pipeline_mode<synchronous>, transform_indices = @transform_2, window_bounds = array<i64: 32, 32>}, {pipeline_mode = #tpu.pipeline_mode<synchronous>, transform_indices = @transform_3, window_bounds = array<i64: 32, 32>}, {pipeline_mode = #tpu.pipeline_mode<synchronous>, transform_indices = @transform_4, window_bounds = array<i64: 32, 32>}, {pipeline_mode = #tpu.pipeline_mode<synchronous>, transform_indices = @transform_5, window_bounds = array<i64: 4, 8, 32>}, {pipeline_mode = #tpu.pipeline_mode<synchronous>, transform_indices = @transform_6, window_bounds = array<i64: 32, 128>}, {pipeline_mode = #tpu.pipeline_mode<synchronous>, transform_indices = @transform_7, window_bounds = array<i64: 1, 128>}, {pipeline_mode = #tpu.pipeline_mode<synchronous>, transform_indices = @transform_8, window_bounds = array<i64: 1, 128>}, {pipeline_mode = #tpu.pipeline_mode<synchronous>, transform_indices = @transform_9, window_bounds = array<i64: 1, 128>}, {pipeline_mode = #tpu.pipeline_mode<synchronous>, transform_indices = @transform_10, window_bounds = array<i64: 128, 32>}, {pipeline_mode = #tpu.pipeline_mode<synchronous>, transform_indices = @transform_11, window_bounds = array<i64: 1, 32>}, {transform_indices = @transform_12, window_bounds = array<i64: 1, 8, 32>}]} {
    %c0_i32 = arith.constant 0 : i32
    %0 = arith.cmpi eq, %arg1, %c0_i32 : i32
    %1 = arith.extui %0 : i1 to i32
    %c0_i32_0 = arith.constant 0 : i32
    %2 = arith.cmpi ne, %1, %c0_i32_0 : i32
    scf.if %2 {
      %c0_117 = arith.constant 0 : index
      %c0_118 = arith.constant 0 : index
      %c0_119 = arith.constant 0 : index
      %267 = vector.load %arg3[%c0_117, %c0_118, %c0_119] : memref<1x8x32xf32, #tpu.memory_space<vmem>>, vector<1x8x32xf32>
      %268 = vector.shape_cast %267 : vector<1x8x32xf32> to vector<8x32xf32>
      %269 = arith.truncf %268 : vector<8x32xf32> to vector<8x32xbf16>
      %c0_120 = arith.constant 0 : index
      %c0_121 = arith.constant 0 : index
      %270 = vector.load %arg5[%c0_120, %c0_121] : memref<32x32xbf16, #tpu.memory_space<vmem>>, vector<32x32xbf16>
      %cst_122 = arith.constant dense<0.000000e+00> : vector<8x32xf32>
      %271 = tpu.matmul %269, %270, %cst_122 {dimension_numbers = #tpu.dot_dimension_numbers<[1], [0], [0], [1], [0, 0, 1, 1], [], []>} : vector<8x32xbf16>, vector<32x32xbf16>, vector<8x32xf32> -> vector<8x32xf32>
      %c0_123 = arith.constant 0 : index
      %c0_124 = arith.constant 0 : index
      %272 = vector.load %arg6[%c0_123, %c0_124] : memref<32x32xbf16, #tpu.memory_space<vmem>>, vector<32x32xbf16>
      %cst_125 = arith.constant dense<0.000000e+00> : vector<8x32xf32>
      %273 = tpu.matmul %269, %272, %cst_125 {dimension_numbers = #tpu.dot_dimension_numbers<[1], [0], [0], [1], [0, 0, 1, 1], [], []>} : vector<8x32xbf16>, vector<32x32xbf16>, vector<8x32xf32> -> vector<8x32xf32>
      %274 = vector.extract_strided_slice %271 {offsets = [0, 0], sizes = [8, 8], strides = [1, 1]} : vector<8x32xf32> to vector<8x8xf32>
      %275 = arith.mulf %274, %274 : vector<8x8xf32>
      %cst_126 = arith.constant dense<0.000000e+00> : vector<8xf32>
      %276 = vector.multi_reduction <add>, %275, %cst_126 [1] : vector<8x8xf32> to vector<8xf32>
      %277 = vector.shape_cast %276 : vector<8xf32> to vector<8x1xf32>
      %cst_127 = arith.constant 9.99999996E-13 : f32
      %278 = vector.broadcast %cst_127 : f32 to vector<8x1xf32>
      %279 = arith.addf %277, %278 : vector<8x1xf32>
      %280 = math.rsqrt %279 : vector<8x1xf32>
      %281 = vector.broadcast %280 : vector<8x1xf32> to vector<8x8xf32>
      %282 = arith.mulf %274, %281 : vector<8x8xf32>
      %283 = arith.truncf %282 : vector<8x8xf32> to vector<8x8xbf16>
      %284 = vector.extract_strided_slice %273 {offsets = [0, 0], sizes = [8, 8], strides = [1, 1]} : vector<8x32xf32> to vector<8x8xf32>
      %285 = arith.truncf %284 : vector<8x8xf32> to vector<8x8xbf16>
      %c0_128 = arith.constant 0 : index
      %c0_129 = arith.constant 0 : index
      %c0_130 = arith.constant 0 : index
      %c0_131 = arith.constant 0 : index
      %286 = vector.load %arg15[%c0_128, %c0_129, %c0_130, %c0_131] : memref<4x1x8x8xbf16, #tpu.memory_space<vmem>>, vector<1x1x8x8xbf16>
      %287 = vector.shape_cast %286 : vector<1x1x8x8xbf16> to vector<8x8xbf16>
      %288 = vector.shape_cast %283 : vector<8x8xbf16> to vector<1x1x8x8xbf16>
      tpu.vector_store %arg15[%c0_128, %c0_129, %c0_130, %c0_131], %288 {strides = array<i32>} : memref<4x1x8x8xbf16, #tpu.memory_space<vmem>>, vector<1x1x8x8xbf16>,
      %c0_132 = arith.constant 0 : index
      %c0_133 = arith.constant 0 : index
      %c0_134 = arith.constant 0 : index
      %c0_135 = arith.constant 0 : index
      %289 = vector.load %arg16[%c0_132, %c0_133, %c0_134, %c0_135] : memref<4x1x8x8xbf16, #tpu.memory_space<vmem>>, vector<1x1x8x8xbf16>
      %290 = vector.shape_cast %289 : vector<1x1x8x8xbf16> to vector<8x8xbf16>
      %291 = vector.shape_cast %285 : vector<8x8xbf16> to vector<1x1x8x8xbf16>
      tpu.vector_store %arg16[%c0_132, %c0_133, %c0_134, %c0_135], %291 {strides = array<i32>} : memref<4x1x8x8xbf16, #tpu.memory_space<vmem>>, vector<1x1x8x8xbf16>,
      %292 = vector.extract_strided_slice %271 {offsets = [0, 8], sizes = [8, 8], strides = [1, 1]} : vector<8x32xf32> to vector<8x8xf32>
      %293 = arith.mulf %292, %292 : vector<8x8xf32>
      %cst_136 = arith.constant dense<0.000000e+00> : vector<8xf32>
      %294 = vector.multi_reduction <add>, %293, %cst_136 [1] : vector<8x8xf32> to vector<8xf32>
      %295 = vector.shape_cast %294 : vector<8xf32> to vector<8x1xf32>
      %cst_137 = arith.constant 9.99999996E-13 : f32
      %296 = vector.broadcast %cst_137 : f32 to vector<8x1xf32>
      %297 = arith.addf %295, %296 : vector<8x1xf32>
      %298 = math.rsqrt %297 : vector<8x1xf32>
      %299 = vector.broadcast %298 : vector<8x1xf32> to vector<8x8xf32>
      %300 = arith.mulf %292, %299 : vector<8x8xf32>
      %301 = arith.truncf %300 : vector<8x8xf32> to vector<8x8xbf16>
      %302 = vector.extract_strided_slice %273 {offsets = [0, 8], sizes = [8, 8], strides = [1, 1]} : vector<8x32xf32> to vector<8x8xf32>
      %303 = arith.truncf %302 : vector<8x8xf32> to vector<8x8xbf16>
      %c1_138 = arith.constant 1 : index
      %c0_139 = arith.constant 0 : index
      %c0_140 = arith.constant 0 : index
      %c0_141 = arith.constant 0 : index
      %304 = vector.load %arg15[%c1_138, %c0_139, %c0_140, %c0_141] : memref<4x1x8x8xbf16, #tpu.memory_space<vmem>>, vector<1x1x8x8xbf16>
      %305 = vector.shape_cast %304 : vector<1x1x8x8xbf16> to vector<8x8xbf16>
      %306 = vector.shape_cast %301 : vector<8x8xbf16> to vector<1x1x8x8xbf16>
      tpu.vector_store %arg15[%c1_138, %c0_139, %c0_140, %c0_141], %306 {strides = array<i32>} : memref<4x1x8x8xbf16, #tpu.memory_space<vmem>>, vector<1x1x8x8xbf16>,
      %c1_142 = arith.constant 1 : index
      %c0_143 = arith.constant 0 : index
      %c0_144 = arith.constant 0 : index
      %c0_145 = arith.constant 0 : index
      %307 = vector.load %arg16[%c1_142, %c0_143, %c0_144, %c0_145] : memref<4x1x8x8xbf16, #tpu.memory_space<vmem>>, vector<1x1x8x8xbf16>
      %308 = vector.shape_cast %307 : vector<1x1x8x8xbf16> to vector<8x8xbf16>
      %309 = vector.shape_cast %303 : vector<8x8xbf16> to vector<1x1x8x8xbf16>
      tpu.vector_store %arg16[%c1_142, %c0_143, %c0_144, %c0_145], %309 {strides = array<i32>} : memref<4x1x8x8xbf16, #tpu.memory_space<vmem>>, vector<1x1x8x8xbf16>,
      %310 = vector.extract_strided_slice %271 {offsets = [0, 16], sizes = [8, 8], strides = [1, 1]} : vector<8x32xf32> to vector<8x8xf32>
      %311 = arith.mulf %310, %310 : vector<8x8xf32>
      %cst_146 = arith.constant dense<0.000000e+00> : vector<8xf32>
      %312 = vector.multi_reduction <add>, %311, %cst_146 [1] : vector<8x8xf32> to vector<8xf32>
      %313 = vector.shape_cast %312 : vector<8xf32> to vector<8x1xf32>
      %cst_147 = arith.constant 9.99999996E-13 : f32
      %314 = vector.broadcast %cst_147 : f32 to vector<8x1xf32>
      %315 = arith.addf %313, %314 : vector<8x1xf32>
      %316 = math.rsqrt %315 : vector<8x1xf32>
      %317 = vector.broadcast %316 : vector<8x1xf32> to vector<8x8xf32>
      %318 = arith.mulf %310, %317 : vector<8x8xf32>
      %319 = arith.truncf %318 : vector<8x8xf32> to vector<8x8xbf16>
      %320 = vector.extract_strided_slice %273 {offsets = [0, 16], sizes = [8, 8], strides = [1, 1]} : vector<8x32xf32> to vector<8x8xf32>
      %321 = arith.truncf %320 : vector<8x8xf32> to vector<8x8xbf16>
      %c2_148 = arith.constant 2 : index
      %c0_149 = arith.constant 0 : index
      %c0_150 = arith.constant 0 : index
      %c0_151 = arith.constant 0 : index
      %322 = vector.load %arg15[%c2_148, %c0_149, %c0_150, %c0_151] : memref<4x1x8x8xbf16, #tpu.memory_space<vmem>>, vector<1x1x8x8xbf16>
      %323 = vector.shape_cast %322 : vector<1x1x8x8xbf16> to vector<8x8xbf16>
      %324 = vector.shape_cast %319 : vector<8x8xbf16> to vector<1x1x8x8xbf16>
      tpu.vector_store %arg15[%c2_148, %c0_149, %c0_150, %c0_151], %324 {strides = array<i32>} : memref<4x1x8x8xbf16, #tpu.memory_space<vmem>>, vector<1x1x8x8xbf16>,
      %c2_152 = arith.constant 2 : index
      %c0_153 = arith.constant 0 : index
      %c0_154 = arith.constant 0 : index
      %c0_155 = arith.constant 0 : index
      %325 = vector.load %arg16[%c2_152, %c0_153, %c0_154, %c0_155] : memref<4x1x8x8xbf16, #tpu.memory_space<vmem>>, vector<1x1x8x8xbf16>
      %326 = vector.shape_cast %325 : vector<1x1x8x8xbf16> to vector<8x8xbf16>
      %327 = vector.shape_cast %321 : vector<8x8xbf16> to vector<1x1x8x8xbf16>
      tpu.vector_store %arg16[%c2_152, %c0_153, %c0_154, %c0_155], %327 {strides = array<i32>} : memref<4x1x8x8xbf16, #tpu.memory_space<vmem>>, vector<1x1x8x8xbf16>,
      %328 = vector.extract_strided_slice %271 {offsets = [0, 24], sizes = [8, 8], strides = [1, 1]} : vector<8x32xf32> to vector<8x8xf32>
      %329 = arith.mulf %328, %328 : vector<8x8xf32>
      %cst_156 = arith.constant dense<0.000000e+00> : vector<8xf32>
      %330 = vector.multi_reduction <add>, %329, %cst_156 [1] : vector<8x8xf32> to vector<8xf32>
      %331 = vector.shape_cast %330 : vector<8xf32> to vector<8x1xf32>
      %cst_157 = arith.constant 9.99999996E-13 : f32
      %332 = vector.broadcast %cst_157 : f32 to vector<8x1xf32>
      %333 = arith.addf %331, %332 : vector<8x1xf32>
      %334 = math.rsqrt %333 : vector<8x1xf32>
      %335 = vector.broadcast %334 : vector<8x1xf32> to vector<8x8xf32>
      %336 = arith.mulf %328, %335 : vector<8x8xf32>
      %337 = arith.truncf %336 : vector<8x8xf32> to vector<8x8xbf16>
      %338 = vector.extract_strided_slice %273 {offsets = [0, 24], sizes = [8, 8], strides = [1, 1]} : vector<8x32xf32> to vector<8x8xf32>
      %339 = arith.truncf %338 : vector<8x8xf32> to vector<8x8xbf16>
      %c3_158 = arith.constant 3 : index
      %c0_159 = arith.constant 0 : index
      %c0_160 = arith.constant 0 : index
      %c0_161 = arith.constant 0 : index
      %340 = vector.load %arg15[%c3_158, %c0_159, %c0_160, %c0_161] : memref<4x1x8x8xbf16, #tpu.memory_space<vmem>>, vector<1x1x8x8xbf16>
      %341 = vector.shape_cast %340 : vector<1x1x8x8xbf16> to vector<8x8xbf16>
      %342 = vector.shape_cast %337 : vector<8x8xbf16> to vector<1x1x8x8xbf16>
      tpu.vector_store %arg15[%c3_158, %c0_159, %c0_160, %c0_161], %342 {strides = array<i32>} : memref<4x1x8x8xbf16, #tpu.memory_space<vmem>>, vector<1x1x8x8xbf16>,
      %c3_162 = arith.constant 3 : index
      %c0_163 = arith.constant 0 : index
      %c0_164 = arith.constant 0 : index
      %c0_165 = arith.constant 0 : index
      %343 = vector.load %arg16[%c3_162, %c0_163, %c0_164, %c0_165] : memref<4x1x8x8xbf16, #tpu.memory_space<vmem>>, vector<1x1x8x8xbf16>
      %344 = vector.shape_cast %343 : vector<1x1x8x8xbf16> to vector<8x8xbf16>
      %345 = vector.shape_cast %339 : vector<8x8xbf16> to vector<1x1x8x8xbf16>
      tpu.vector_store %arg16[%c3_162, %c0_163, %c0_164, %c0_165], %345 {strides = array<i32>} : memref<4x1x8x8xbf16, #tpu.memory_space<vmem>>, vector<1x1x8x8xbf16>,
    } else {
    }
    %c0 = arith.constant 0 : index
    %c0_1 = arith.constant 0 : index
    %c0_2 = arith.constant 0 : index
    %3 = vector.load %arg2[%c0, %c0_1, %c0_2] : memref<1x8x32xf32, #tpu.memory_space<vmem>>, vector<1x8x32xf32>
    %4 = vector.shape_cast %3 : vector<1x8x32xf32> to vector<8x32xf32>
    %5 = arith.truncf %4 : vector<8x32xf32> to vector<8x32xbf16>
    %c0_3 = arith.constant 0 : index
    %c0_4 = arith.constant 0 : index
    %6 = vector.load %arg4[%c0_3, %c0_4] : memref<32x32xbf16, #tpu.memory_space<vmem>>, vector<32x32xbf16>
    %cst = arith.constant dense<0.000000e+00> : vector<8x32xf32>
    %7 = tpu.matmul %5, %6, %cst {dimension_numbers = #tpu.dot_dimension_numbers<[1], [0], [0], [1], [0, 0, 1, 1], [], []>} : vector<8x32xbf16>, vector<32x32xbf16>, vector<8x32xf32> -> vector<8x32xf32>
    %8 = tpu.iota {dimensions = array<i32: 0>} : vector<8x8xi32>
    %9 = tpu.iota {dimensions = array<i32: 1>} : vector<8x8xi32>
    %10 = arith.cmpi sle, %9, %8 : vector<8x8xi32>
    %cst_5 = arith.constant 0.000000e+00 : f32
    %11 = vector.broadcast %cst_5 : f32 to vector<8x32xf32>
    %12 = vector.extract_strided_slice %7 {offsets = [0, 0], sizes = [8, 8], strides = [1, 1]} : vector<8x32xf32> to vector<8x8xf32>
    %13 = arith.mulf %12, %12 : vector<8x8xf32>
    %cst_6 = arith.constant dense<0.000000e+00> : vector<8xf32>
    %14 = vector.multi_reduction <add>, %13, %cst_6 [1] : vector<8x8xf32> to vector<8xf32>
    %15 = vector.shape_cast %14 : vector<8xf32> to vector<8x1xf32>
    %cst_7 = arith.constant 9.99999996E-13 : f32
    %16 = vector.broadcast %cst_7 : f32 to vector<8x1xf32>
    %17 = arith.addf %15, %16 : vector<8x1xf32>
    %18 = math.rsqrt %17 : vector<8x1xf32>
    %19 = vector.broadcast %18 : vector<8x1xf32> to vector<8x8xf32>
    %20 = arith.mulf %12, %19 : vector<8x8xf32>
    %cst_8 = arith.constant 1.000000e+01 : f32
    %21 = vector.broadcast %cst_8 : f32 to vector<8x8xf32>
    %22 = arith.mulf %20, %21 : vector<8x8xf32>
    %23 = arith.truncf %22 : vector<8x8xf32> to vector<8x8xbf16>
    %cst_9 = arith.constant 0xFF800000 : f32
    %24 = vector.broadcast %cst_9 : f32 to vector<8x1xf32>
    %cst_10 = arith.constant 0.000000e+00 : f32
    %25 = vector.broadcast %cst_10 : f32 to vector<8x1xf32>
    %cst_11 = arith.constant 0.000000e+00 : f32
    %26 = vector.broadcast %cst_11 : f32 to vector<8x8xf32>
    %c0_i32_12 = arith.constant 0 : i32
    %27 = arith.subi %arg1, %c0_i32_12 : i32
    %28 = arith.addi %c0_i32_12, %27 : i32
    %c1_i32 = arith.constant 1 : i32
    %29:3 = scf.for %arg17 = %c0_i32_12 to %28 step %c1_i32 iter_args(%arg18 = %24, %arg19 = %25, %arg20 = %26) -> (vector<8x1xf32>, vector<8x1xf32>, vector<8x8xf32>)  : i32 {
      %c0_117 = arith.constant 0 : index
      %267 = arith.index_cast %arg17 : i32 to index
      %c0_118 = arith.constant 0 : index
      %c0_119 = arith.constant 0 : index
      %268 = vector.load %arg15[%c0_117, %267, %c0_118, %c0_119] : memref<4x1x8x8xbf16, #tpu.memory_space<vmem>>, vector<1x1x8x8xbf16>
      %269 = vector.shape_cast %268 : vector<1x1x8x8xbf16> to vector<8x8xbf16>
      %c0_120 = arith.constant 0 : index
      %270 = arith.index_cast %arg17 : i32 to index
      %c0_121 = arith.constant 0 : index
      %c0_122 = arith.constant 0 : index
      %271 = vector.load %arg16[%c0_120, %270, %c0_121, %c0_122] : memref<4x1x8x8xbf16, #tpu.memory_space<vmem>>, vector<1x1x8x8xbf16>
      %272 = vector.shape_cast %271 : vector<1x1x8x8xbf16> to vector<8x8xbf16>
      %cst_123 = arith.constant dense<0.000000e+00> : vector<8x8xf32>
      %273 = tpu.matmul %23, %269, %cst_123 {dimension_numbers = #tpu.dot_dimension_numbers<[1], [1], [0], [0], [0, 0, 1, 0], [], []>} : vector<8x8xbf16>, vector<8x8xbf16>, vector<8x8xf32> -> vector<8x8xf32>
      %cst_124 = arith.constant dense<0xFF800000> : vector<8xf32>
      %274 = vector.multi_reduction <maximumf>, %273, %cst_124 [1] : vector<8x8xf32> to vector<8xf32>
      %275 = vector.shape_cast %274 : vector<8xf32> to vector<8x1xf32>
      %276 = arith.maximumf %arg18, %275 : vector<8x1xf32>
      %277 = arith.subf %arg18, %276 : vector<8x1xf32>
      %278 = math.exp %277 : vector<8x1xf32>
      %279 = vector.broadcast %276 : vector<8x1xf32> to vector<8x8xf32>
      %280 = arith.subf %273, %279 : vector<8x8xf32>
      %281 = math.exp %280 : vector<8x8xf32>
      %282 = arith.mulf %278, %arg19 : vector<8x1xf32>
      %cst_125 = arith.constant dense<0.000000e+00> : vector<8xf32>
      %283 = vector.multi_reduction <add>, %281, %cst_125 [1] : vector<8x8xf32> to vector<8xf32>
      %284 = vector.shape_cast %283 : vector<8xf32> to vector<8x1xf32>
      %285 = arith.addf %282, %284 : vector<8x1xf32>
      %286 = vector.broadcast %278 : vector<8x1xf32> to vector<8x8xf32>
      %287 = arith.mulf %286, %arg20 : vector<8x8xf32>
      %288 = arith.truncf %281 : vector<8x8xf32> to vector<8x8xbf16>
      %cst_126 = arith.constant dense<0.000000e+00> : vector<8x8xf32>
      %289 = tpu.matmul %288, %272, %cst_126 {dimension_numbers = #tpu.dot_dimension_numbers<[1], [0], [0], [1], [0, 0, 1, 1], [], []>} : vector<8x8xbf16>, vector<8x8xbf16>, vector<8x8xf32> -> vector<8x8xf32>
      %290 = arith.addf %287, %289 : vector<8x8xf32>
      scf.yield %276, %285, %290 : vector<8x1xf32>, vector<8x1xf32>, vector<8x8xf32>
    }
    %c0_13 = arith.constant 0 : index
    %30 = arith.index_cast %arg1 : i32 to index
    %c0_14 = arith.constant 0 : index
    %c0_15 = arith.constant 0 : index
    %31 = vector.load %arg15[%c0_13, %30, %c0_14, %c0_15] : memref<4x1x8x8xbf16, #tpu.memory_space<vmem>>, vector<1x1x8x8xbf16>
    %32 = vector.shape_cast %31 : vector<1x1x8x8xbf16> to vector<8x8xbf16>
    %c0_16 = arith.constant 0 : index
    %33 = arith.index_cast %arg1 : i32 to index
    %c0_17 = arith.constant 0 : index
    %c0_18 = arith.constant 0 : index
    %34 = vector.load %arg16[%c0_16, %33, %c0_17, %c0_18] : memref<4x1x8x8xbf16, #tpu.memory_space<vmem>>, vector<1x1x8x8xbf16>
    %35 = vector.shape_cast %34 : vector<1x1x8x8xbf16> to vector<8x8xbf16>
    %cst_19 = arith.constant dense<0.000000e+00> : vector<8x8xf32>
    %36 = tpu.matmul %23, %32, %cst_19 {dimension_numbers = #tpu.dot_dimension_numbers<[1], [1], [0], [0], [0, 0, 1, 0], [], []>} : vector<8x8xbf16>, vector<8x8xbf16>, vector<8x8xf32> -> vector<8x8xf32>
    %cst_20 = arith.constant -1.000000e+30 : f32
    %37 = vector.broadcast %cst_20 : f32 to vector<8x8xf32>
    %38 = arith.select %10, %36, %37 : vector<8x8xi1>, vector<8x8xf32>
    %cst_21 = arith.constant dense<0xFF800000> : vector<8xf32>
    %39 = vector.multi_reduction <maximumf>, %38, %cst_21 [1] : vector<8x8xf32> to vector<8xf32>
    %40 = vector.shape_cast %39 : vector<8xf32> to vector<8x1xf32>
    %41 = arith.maximumf %29#0, %40 : vector<8x1xf32>
    %42 = arith.subf %29#0, %41 : vector<8x1xf32>
    %43 = math.exp %42 : vector<8x1xf32>
    %44 = vector.broadcast %41 : vector<8x1xf32> to vector<8x8xf32>
    %45 = arith.subf %38, %44 : vector<8x8xf32>
    %46 = math.exp %45 : vector<8x8xf32>
    %47 = arith.mulf %43, %29#1 : vector<8x1xf32>
    %cst_22 = arith.constant dense<0.000000e+00> : vector<8xf32>
    %48 = vector.multi_reduction <add>, %46, %cst_22 [1] : vector<8x8xf32> to vector<8xf32>
    %49 = vector.shape_cast %48 : vector<8xf32> to vector<8x1xf32>
    %50 = arith.addf %47, %49 : vector<8x1xf32>
    %51 = vector.broadcast %43 : vector<8x1xf32> to vector<8x8xf32>
    %52 = arith.mulf %51, %29#2 : vector<8x8xf32>
    %53 = arith.truncf %46 : vector<8x8xf32> to vector<8x8xbf16>
    %cst_23 = arith.constant dense<0.000000e+00> : vector<8x8xf32>
    %54 = tpu.matmul %53, %35, %cst_23 {dimension_numbers = #tpu.dot_dimension_numbers<[1], [0], [0], [1], [0, 0, 1, 1], [], []>} : vector<8x8xbf16>, vector<8x8xbf16>, vector<8x8xf32> -> vector<8x8xf32>
    %55 = arith.addf %52, %54 : vector<8x8xf32>
    %56 = tpu.reciprocal %50 {approx = true} : vector<8x1xf32> -> vector<8x1xf32>
    %57 = vector.broadcast %56 : vector<8x1xf32> to vector<8x8xf32>
    %58 = arith.mulf %55, %57 : vector<8x8xf32>
    %59 = arith.truncf %58 : vector<8x8xf32> to vector<8x8xbf16>
    %c0_24 = arith.constant 0 : index
    %c0_25 = arith.constant 0 : index
    %c0_26 = arith.constant 0 : index
    %60 = vector.load %arg7[%c0_24, %c0_25, %c0_26] : memref<4x8x32xbf16, #tpu.memory_space<vmem>>, vector<1x8x32xbf16>
    %61 = vector.shape_cast %60 : vector<1x8x32xbf16> to vector<8x32xbf16>
    %cst_27 = arith.constant dense<0.000000e+00> : vector<8x32xf32>
    %62 = tpu.matmul %59, %61, %cst_27 {dimension_numbers = #tpu.dot_dimension_numbers<[1], [0], [0], [1], [0, 0, 1, 1], [], []>} : vector<8x8xbf16>, vector<8x32xbf16>, vector<8x32xf32> -> vector<8x32xf32>
    %63 = arith.addf %11, %62 : vector<8x32xf32>
    %64 = vector.extract_strided_slice %7 {offsets = [0, 8], sizes = [8, 8], strides = [1, 1]} : vector<8x32xf32> to vector<8x8xf32>
    %65 = arith.mulf %64, %64 : vector<8x8xf32>
    %cst_28 = arith.constant dense<0.000000e+00> : vector<8xf32>
    %66 = vector.multi_reduction <add>, %65, %cst_28 [1] : vector<8x8xf32> to vector<8xf32>
    %67 = vector.shape_cast %66 : vector<8xf32> to vector<8x1xf32>
    %cst_29 = arith.constant 9.99999996E-13 : f32
    %68 = vector.broadcast %cst_29 : f32 to vector<8x1xf32>
    %69 = arith.addf %67, %68 : vector<8x1xf32>
    %70 = math.rsqrt %69 : vector<8x1xf32>
    %71 = vector.broadcast %70 : vector<8x1xf32> to vector<8x8xf32>
    %72 = arith.mulf %64, %71 : vector<8x8xf32>
    %cst_30 = arith.constant 1.000000e+01 : f32
    %73 = vector.broadcast %cst_30 : f32 to vector<8x8xf32>
    %74 = arith.mulf %72, %73 : vector<8x8xf32>
    %75 = arith.truncf %74 : vector<8x8xf32> to vector<8x8xbf16>
    %cst_31 = arith.constant 0xFF800000 : f32
    %76 = vector.broadcast %cst_31 : f32 to vector<8x1xf32>
    %cst_32 = arith.constant 0.000000e+00 : f32
    %77 = vector.broadcast %cst_32 : f32 to vector<8x1xf32>
    %cst_33 = arith.constant 0.000000e+00 : f32
    %78 = vector.broadcast %cst_33 : f32 to vector<8x8xf32>
    %c0_i32_34 = arith.constant 0 : i32
    %79 = arith.subi %arg1, %c0_i32_34 : i32
    %80 = arith.addi %c0_i32_34, %79 : i32
    %c1_i32_35 = arith.constant 1 : i32
    %81:3 = scf.for %arg17 = %c0_i32_34 to %80 step %c1_i32_35 iter_args(%arg18 = %76, %arg19 = %77, %arg20 = %78) -> (vector<8x1xf32>, vector<8x1xf32>, vector<8x8xf32>)  : i32 {
      %c1_117 = arith.constant 1 : index
      %267 = arith.index_cast %arg17 : i32 to index
      %c0_118 = arith.constant 0 : index
      %c0_119 = arith.constant 0 : index
      %268 = vector.load %arg15[%c1_117, %267, %c0_118, %c0_119] : memref<4x1x8x8xbf16, #tpu.memory_space<vmem>>, vector<1x1x8x8xbf16>
      %269 = vector.shape_cast %268 : vector<1x1x8x8xbf16> to vector<8x8xbf16>
      %c1_120 = arith.constant 1 : index
      %270 = arith.index_cast %arg17 : i32 to index
      %c0_121 = arith.constant 0 : index
      %c0_122 = arith.constant 0 : index
      %271 = vector.load %arg16[%c1_120, %270, %c0_121, %c0_122] : memref<4x1x8x8xbf16, #tpu.memory_space<vmem>>, vector<1x1x8x8xbf16>
      %272 = vector.shape_cast %271 : vector<1x1x8x8xbf16> to vector<8x8xbf16>
      %cst_123 = arith.constant dense<0.000000e+00> : vector<8x8xf32>
      %273 = tpu.matmul %75, %269, %cst_123 {dimension_numbers = #tpu.dot_dimension_numbers<[1], [1], [0], [0], [0, 0, 1, 0], [], []>} : vector<8x8xbf16>, vector<8x8xbf16>, vector<8x8xf32> -> vector<8x8xf32>
      %cst_124 = arith.constant dense<0xFF800000> : vector<8xf32>
      %274 = vector.multi_reduction <maximumf>, %273, %cst_124 [1] : vector<8x8xf32> to vector<8xf32>
      %275 = vector.shape_cast %274 : vector<8xf32> to vector<8x1xf32>
      %276 = arith.maximumf %arg18, %275 : vector<8x1xf32>
      %277 = arith.subf %arg18, %276 : vector<8x1xf32>
      %278 = math.exp %277 : vector<8x1xf32>
      %279 = vector.broadcast %276 : vector<8x1xf32> to vector<8x8xf32>
      %280 = arith.subf %273, %279 : vector<8x8xf32>
      %281 = math.exp %280 : vector<8x8xf32>
      %282 = arith.mulf %278, %arg19 : vector<8x1xf32>
      %cst_125 = arith.constant dense<0.000000e+00> : vector<8xf32>
      %283 = vector.multi_reduction <add>, %281, %cst_125 [1] : vector<8x8xf32> to vector<8xf32>
      %284 = vector.shape_cast %283 : vector<8xf32> to vector<8x1xf32>
      %285 = arith.addf %282, %284 : vector<8x1xf32>
      %286 = vector.broadcast %278 : vector<8x1xf32> to vector<8x8xf32>
      %287 = arith.mulf %286, %arg20 : vector<8x8xf32>
      %288 = arith.truncf %281 : vector<8x8xf32> to vector<8x8xbf16>
      %cst_126 = arith.constant dense<0.000000e+00> : vector<8x8xf32>
      %289 = tpu.matmul %288, %272, %cst_126 {dimension_numbers = #tpu.dot_dimension_numbers<[1], [0], [0], [1], [0, 0, 1, 1], [], []>} : vector<8x8xbf16>, vector<8x8xbf16>, vector<8x8xf32> -> vector<8x8xf32>
      %290 = arith.addf %287, %289 : vector<8x8xf32>
      scf.yield %276, %285, %290 : vector<8x1xf32>, vector<8x1xf32>, vector<8x8xf32>
    }
    %c1 = arith.constant 1 : index
    %82 = arith.index_cast %arg1 : i32 to index
    %c0_36 = arith.constant 0 : index
    %c0_37 = arith.constant 0 : index
    %83 = vector.load %arg15[%c1, %82, %c0_36, %c0_37] : memref<4x1x8x8xbf16, #tpu.memory_space<vmem>>, vector<1x1x8x8xbf16>
    %84 = vector.shape_cast %83 : vector<1x1x8x8xbf16> to vector<8x8xbf16>
    %c1_38 = arith.constant 1 : index
    %85 = arith.index_cast %arg1 : i32 to index
    %c0_39 = arith.constant 0 : index
    %c0_40 = arith.constant 0 : index
    %86 = vector.load %arg16[%c1_38, %85, %c0_39, %c0_40] : memref<4x1x8x8xbf16, #tpu.memory_space<vmem>>, vector<1x1x8x8xbf16>
    %87 = vector.shape_cast %86 : vector<1x1x8x8xbf16> to vector<8x8xbf16>
    %cst_41 = arith.constant dense<0.000000e+00> : vector<8x8xf32>
    %88 = tpu.matmul %75, %84, %cst_41 {dimension_numbers = #tpu.dot_dimension_numbers<[1], [1], [0], [0], [0, 0, 1, 0], [], []>} : vector<8x8xbf16>, vector<8x8xbf16>, vector<8x8xf32> -> vector<8x8xf32>
    %cst_42 = arith.constant -1.000000e+30 : f32
    %89 = vector.broadcast %cst_42 : f32 to vector<8x8xf32>
    %90 = arith.select %10, %88, %89 : vector<8x8xi1>, vector<8x8xf32>
    %cst_43 = arith.constant dense<0xFF800000> : vector<8xf32>
    %91 = vector.multi_reduction <maximumf>, %90, %cst_43 [1] : vector<8x8xf32> to vector<8xf32>
    %92 = vector.shape_cast %91 : vector<8xf32> to vector<8x1xf32>
    %93 = arith.maximumf %81#0, %92 : vector<8x1xf32>
    %94 = arith.subf %81#0, %93 : vector<8x1xf32>
    %95 = math.exp %94 : vector<8x1xf32>
    %96 = vector.broadcast %93 : vector<8x1xf32> to vector<8x8xf32>
    %97 = arith.subf %90, %96 : vector<8x8xf32>
    %98 = math.exp %97 : vector<8x8xf32>
    %99 = arith.mulf %95, %81#1 : vector<8x1xf32>
    %cst_44 = arith.constant dense<0.000000e+00> : vector<8xf32>
    %100 = vector.multi_reduction <add>, %98, %cst_44 [1] : vector<8x8xf32> to vector<8xf32>
    %101 = vector.shape_cast %100 : vector<8xf32> to vector<8x1xf32>
    %102 = arith.addf %99, %101 : vector<8x1xf32>
    %103 = vector.broadcast %95 : vector<8x1xf32> to vector<8x8xf32>
    %104 = arith.mulf %103, %81#2 : vector<8x8xf32>
    %105 = arith.truncf %98 : vector<8x8xf32> to vector<8x8xbf16>
    %cst_45 = arith.constant dense<0.000000e+00> : vector<8x8xf32>
    %106 = tpu.matmul %105, %87, %cst_45 {dimension_numbers = #tpu.dot_dimension_numbers<[1], [0], [0], [1], [0, 0, 1, 1], [], []>} : vector<8x8xbf16>, vector<8x8xbf16>, vector<8x8xf32> -> vector<8x8xf32>
    %107 = arith.addf %104, %106 : vector<8x8xf32>
    %108 = tpu.reciprocal %102 {approx = true} : vector<8x1xf32> -> vector<8x1xf32>
    %109 = vector.broadcast %108 : vector<8x1xf32> to vector<8x8xf32>
    %110 = arith.mulf %107, %109 : vector<8x8xf32>
    %111 = arith.truncf %110 : vector<8x8xf32> to vector<8x8xbf16>
    %c1_46 = arith.constant 1 : index
    %c0_47 = arith.constant 0 : index
    %c0_48 = arith.constant 0 : index
    %112 = vector.load %arg7[%c1_46, %c0_47, %c0_48] : memref<4x8x32xbf16, #tpu.memory_space<vmem>>, vector<1x8x32xbf16>
    %113 = vector.shape_cast %112 : vector<1x8x32xbf16> to vector<8x32xbf16>
    %cst_49 = arith.constant dense<0.000000e+00> : vector<8x32xf32>
    %114 = tpu.matmul %111, %113, %cst_49 {dimension_numbers = #tpu.dot_dimension_numbers<[1], [0], [0], [1], [0, 0, 1, 1], [], []>} : vector<8x8xbf16>, vector<8x32xbf16>, vector<8x32xf32> -> vector<8x32xf32>
    %115 = arith.addf %63, %114 : vector<8x32xf32>
    %116 = vector.extract_strided_slice %7 {offsets = [0, 16], sizes = [8, 8], strides = [1, 1]} : vector<8x32xf32> to vector<8x8xf32>
    %117 = arith.mulf %116, %116 : vector<8x8xf32>
    %cst_50 = arith.constant dense<0.000000e+00> : vector<8xf32>
    %118 = vector.multi_reduction <add>, %117, %cst_50 [1] : vector<8x8xf32> to vector<8xf32>
    %119 = vector.shape_cast %118 : vector<8xf32> to vector<8x1xf32>
    %cst_51 = arith.constant 9.99999996E-13 : f32
    %120 = vector.broadcast %cst_51 : f32 to vector<8x1xf32>
    %121 = arith.addf %119, %120 : vector<8x1xf32>
    %122 = math.rsqrt %121 : vector<8x1xf32>
    %123 = vector.broadcast %122 : vector<8x1xf32> to vector<8x8xf32>
    %124 = arith.mulf %116, %123 : vector<8x8xf32>
    %cst_52 = arith.constant 1.000000e+01 : f32
    %125 = vector.broadcast %cst_52 : f32 to vector<8x8xf32>
    %126 = arith.mulf %124, %125 : vector<8x8xf32>
    %127 = arith.truncf %126 : vector<8x8xf32> to vector<8x8xbf16>
    %cst_53 = arith.constant 0xFF800000 : f32
    %128 = vector.broadcast %cst_53 : f32 to vector<8x1xf32>
    %cst_54 = arith.constant 0.000000e+00 : f32
    %129 = vector.broadcast %cst_54 : f32 to vector<8x1xf32>
    %cst_55 = arith.constant 0.000000e+00 : f32
    %130 = vector.broadcast %cst_55 : f32 to vector<8x8xf32>
    %c0_i32_56 = arith.constant 0 : i32
    %131 = arith.subi %arg1, %c0_i32_56 : i32
    %132 = arith.addi %c0_i32_56, %131 : i32
    %c1_i32_57 = arith.constant 1 : i32
    %133:3 = scf.for %arg17 = %c0_i32_56 to %132 step %c1_i32_57 iter_args(%arg18 = %128, %arg19 = %129, %arg20 = %130) -> (vector<8x1xf32>, vector<8x1xf32>, vector<8x8xf32>)  : i32 {
      %c2_117 = arith.constant 2 : index
      %267 = arith.index_cast %arg17 : i32 to index
      %c0_118 = arith.constant 0 : index
      %c0_119 = arith.constant 0 : index
      %268 = vector.load %arg15[%c2_117, %267, %c0_118, %c0_119] : memref<4x1x8x8xbf16, #tpu.memory_space<vmem>>, vector<1x1x8x8xbf16>
      %269 = vector.shape_cast %268 : vector<1x1x8x8xbf16> to vector<8x8xbf16>
      %c2_120 = arith.constant 2 : index
      %270 = arith.index_cast %arg17 : i32 to index
      %c0_121 = arith.constant 0 : index
      %c0_122 = arith.constant 0 : index
      %271 = vector.load %arg16[%c2_120, %270, %c0_121, %c0_122] : memref<4x1x8x8xbf16, #tpu.memory_space<vmem>>, vector<1x1x8x8xbf16>
      %272 = vector.shape_cast %271 : vector<1x1x8x8xbf16> to vector<8x8xbf16>
      %cst_123 = arith.constant dense<0.000000e+00> : vector<8x8xf32>
      %273 = tpu.matmul %127, %269, %cst_123 {dimension_numbers = #tpu.dot_dimension_numbers<[1], [1], [0], [0], [0, 0, 1, 0], [], []>} : vector<8x8xbf16>, vector<8x8xbf16>, vector<8x8xf32> -> vector<8x8xf32>
      %cst_124 = arith.constant dense<0xFF800000> : vector<8xf32>
      %274 = vector.multi_reduction <maximumf>, %273, %cst_124 [1] : vector<8x8xf32> to vector<8xf32>
      %275 = vector.shape_cast %274 : vector<8xf32> to vector<8x1xf32>
      %276 = arith.maximumf %arg18, %275 : vector<8x1xf32>
      %277 = arith.subf %arg18, %276 : vector<8x1xf32>
      %278 = math.exp %277 : vector<8x1xf32>
      %279 = vector.broadcast %276 : vector<8x1xf32> to vector<8x8xf32>
      %280 = arith.subf %273, %279 : vector<8x8xf32>
      %281 = math.exp %280 : vector<8x8xf32>
      %282 = arith.mulf %278, %arg19 : vector<8x1xf32>
      %cst_125 = arith.constant dense<0.000000e+00> : vector<8xf32>
      %283 = vector.multi_reduction <add>, %281, %cst_125 [1] : vector<8x8xf32> to vector<8xf32>
      %284 = vector.shape_cast %283 : vector<8xf32> to vector<8x1xf32>
      %285 = arith.addf %282, %284 : vector<8x1xf32>
      %286 = vector.broadcast %278 : vector<8x1xf32> to vector<8x8xf32>
      %287 = arith.mulf %286, %arg20 : vector<8x8xf32>
      %288 = arith.truncf %281 : vector<8x8xf32> to vector<8x8xbf16>
      %cst_126 = arith.constant dense<0.000000e+00> : vector<8x8xf32>
      %289 = tpu.matmul %288, %272, %cst_126 {dimension_numbers = #tpu.dot_dimension_numbers<[1], [0], [0], [1], [0, 0, 1, 1], [], []>} : vector<8x8xbf16>, vector<8x8xbf16>, vector<8x8xf32> -> vector<8x8xf32>
      %290 = arith.addf %287, %289 : vector<8x8xf32>
      scf.yield %276, %285, %290 : vector<8x1xf32>, vector<8x1xf32>, vector<8x8xf32>
    }
    %c2 = arith.constant 2 : index
    %134 = arith.index_cast %arg1 : i32 to index
    %c0_58 = arith.constant 0 : index
    %c0_59 = arith.constant 0 : index
    %135 = vector.load %arg15[%c2, %134, %c0_58, %c0_59] : memref<4x1x8x8xbf16, #tpu.memory_space<vmem>>, vector<1x1x8x8xbf16>
    %136 = vector.shape_cast %135 : vector<1x1x8x8xbf16> to vector<8x8xbf16>
    %c2_60 = arith.constant 2 : index
    %137 = arith.index_cast %arg1 : i32 to index
    %c0_61 = arith.constant 0 : index
    %c0_62 = arith.constant 0 : index
    %138 = vector.load %arg16[%c2_60, %137, %c0_61, %c0_62] : memref<4x1x8x8xbf16, #tpu.memory_space<vmem>>, vector<1x1x8x8xbf16>
    %139 = vector.shape_cast %138 : vector<1x1x8x8xbf16> to vector<8x8xbf16>
    %cst_63 = arith.constant dense<0.000000e+00> : vector<8x8xf32>
    %140 = tpu.matmul %127, %136, %cst_63 {dimension_numbers = #tpu.dot_dimension_numbers<[1], [1], [0], [0], [0, 0, 1, 0], [], []>} : vector<8x8xbf16>, vector<8x8xbf16>, vector<8x8xf32> -> vector<8x8xf32>
    %cst_64 = arith.constant -1.000000e+30 : f32
    %141 = vector.broadcast %cst_64 : f32 to vector<8x8xf32>
    %142 = arith.select %10, %140, %141 : vector<8x8xi1>, vector<8x8xf32>
    %cst_65 = arith.constant dense<0xFF800000> : vector<8xf32>
    %143 = vector.multi_reduction <maximumf>, %142, %cst_65 [1] : vector<8x8xf32> to vector<8xf32>
    %144 = vector.shape_cast %143 : vector<8xf32> to vector<8x1xf32>
    %145 = arith.maximumf %133#0, %144 : vector<8x1xf32>
    %146 = arith.subf %133#0, %145 : vector<8x1xf32>
    %147 = math.exp %146 : vector<8x1xf32>
    %148 = vector.broadcast %145 : vector<8x1xf32> to vector<8x8xf32>
    %149 = arith.subf %142, %148 : vector<8x8xf32>
    %150 = math.exp %149 : vector<8x8xf32>
    %151 = arith.mulf %147, %133#1 : vector<8x1xf32>
    %cst_66 = arith.constant dense<0.000000e+00> : vector<8xf32>
    %152 = vector.multi_reduction <add>, %150, %cst_66 [1] : vector<8x8xf32> to vector<8xf32>
    %153 = vector.shape_cast %152 : vector<8xf32> to vector<8x1xf32>
    %154 = arith.addf %151, %153 : vector<8x1xf32>
    %155 = vector.broadcast %147 : vector<8x1xf32> to vector<8x8xf32>
    %156 = arith.mulf %155, %133#2 : vector<8x8xf32>
    %157 = arith.truncf %150 : vector<8x8xf32> to vector<8x8xbf16>
    %cst_67 = arith.constant dense<0.000000e+00> : vector<8x8xf32>
    %158 = tpu.matmul %157, %139, %cst_67 {dimension_numbers = #tpu.dot_dimension_numbers<[1], [0], [0], [1], [0, 0, 1, 1], [], []>} : vector<8x8xbf16>, vector<8x8xbf16>, vector<8x8xf32> -> vector<8x8xf32>
    %159 = arith.addf %156, %158 : vector<8x8xf32>
    %160 = tpu.reciprocal %154 {approx = true} : vector<8x1xf32> -> vector<8x1xf32>
    %161 = vector.broadcast %160 : vector<8x1xf32> to vector<8x8xf32>
    %162 = arith.mulf %159, %161 : vector<8x8xf32>
    %163 = arith.truncf %162 : vector<8x8xf32> to vector<8x8xbf16>
    %c2_68 = arith.constant 2 : index
    %c0_69 = arith.constant 0 : index
    %c0_70 = arith.constant 0 : index
    %164 = vector.load %arg7[%c2_68, %c0_69, %c0_70] : memref<4x8x32xbf16, #tpu.memory_space<vmem>>, vector<1x8x32xbf16>
    %165 = vector.shape_cast %164 : vector<1x8x32xbf16> to vector<8x32xbf16>
    %cst_71 = arith.constant dense<0.000000e+00> : vector<8x32xf32>
    %166 = tpu.matmul %163, %165, %cst_71 {dimension_numbers = #tpu.dot_dimension_numbers<[1], [0], [0], [1], [0, 0, 1, 1], [], []>} : vector<8x8xbf16>, vector<8x32xbf16>, vector<8x32xf32> -> vector<8x32xf32>
    %167 = arith.addf %115, %166 : vector<8x32xf32>
    %168 = vector.extract_strided_slice %7 {offsets = [0, 24], sizes = [8, 8], strides = [1, 1]} : vector<8x32xf32> to vector<8x8xf32>
    %169 = arith.mulf %168, %168 : vector<8x8xf32>
    %cst_72 = arith.constant dense<0.000000e+00> : vector<8xf32>
    %170 = vector.multi_reduction <add>, %169, %cst_72 [1] : vector<8x8xf32> to vector<8xf32>
    %171 = vector.shape_cast %170 : vector<8xf32> to vector<8x1xf32>
    %cst_73 = arith.constant 9.99999996E-13 : f32
    %172 = vector.broadcast %cst_73 : f32 to vector<8x1xf32>
    %173 = arith.addf %171, %172 : vector<8x1xf32>
    %174 = math.rsqrt %173 : vector<8x1xf32>
    %175 = vector.broadcast %174 : vector<8x1xf32> to vector<8x8xf32>
    %176 = arith.mulf %168, %175 : vector<8x8xf32>
    %cst_74 = arith.constant 1.000000e+01 : f32
    %177 = vector.broadcast %cst_74 : f32 to vector<8x8xf32>
    %178 = arith.mulf %176, %177 : vector<8x8xf32>
    %179 = arith.truncf %178 : vector<8x8xf32> to vector<8x8xbf16>
    %cst_75 = arith.constant 0xFF800000 : f32
    %180 = vector.broadcast %cst_75 : f32 to vector<8x1xf32>
    %cst_76 = arith.constant 0.000000e+00 : f32
    %181 = vector.broadcast %cst_76 : f32 to vector<8x1xf32>
    %cst_77 = arith.constant 0.000000e+00 : f32
    %182 = vector.broadcast %cst_77 : f32 to vector<8x8xf32>
    %c0_i32_78 = arith.constant 0 : i32
    %183 = arith.subi %arg1, %c0_i32_78 : i32
    %184 = arith.addi %c0_i32_78, %183 : i32
    %c1_i32_79 = arith.constant 1 : i32
    %185:3 = scf.for %arg17 = %c0_i32_78 to %184 step %c1_i32_79 iter_args(%arg18 = %180, %arg19 = %181, %arg20 = %182) -> (vector<8x1xf32>, vector<8x1xf32>, vector<8x8xf32>)  : i32 {
      %c3_117 = arith.constant 3 : index
      %267 = arith.index_cast %arg17 : i32 to index
      %c0_118 = arith.constant 0 : index
      %c0_119 = arith.constant 0 : index
      %268 = vector.load %arg15[%c3_117, %267, %c0_118, %c0_119] : memref<4x1x8x8xbf16, #tpu.memory_space<vmem>>, vector<1x1x8x8xbf16>
      %269 = vector.shape_cast %268 : vector<1x1x8x8xbf16> to vector<8x8xbf16>
      %c3_120 = arith.constant 3 : index
      %270 = arith.index_cast %arg17 : i32 to index
      %c0_121 = arith.constant 0 : index
      %c0_122 = arith.constant 0 : index
      %271 = vector.load %arg16[%c3_120, %270, %c0_121, %c0_122] : memref<4x1x8x8xbf16, #tpu.memory_space<vmem>>, vector<1x1x8x8xbf16>
      %272 = vector.shape_cast %271 : vector<1x1x8x8xbf16> to vector<8x8xbf16>
      %cst_123 = arith.constant dense<0.000000e+00> : vector<8x8xf32>
      %273 = tpu.matmul %179, %269, %cst_123 {dimension_numbers = #tpu.dot_dimension_numbers<[1], [1], [0], [0], [0, 0, 1, 0], [], []>} : vector<8x8xbf16>, vector<8x8xbf16>, vector<8x8xf32> -> vector<8x8xf32>
      %cst_124 = arith.constant dense<0xFF800000> : vector<8xf32>
      %274 = vector.multi_reduction <maximumf>, %273, %cst_124 [1] : vector<8x8xf32> to vector<8xf32>
      %275 = vector.shape_cast %274 : vector<8xf32> to vector<8x1xf32>
      %276 = arith.maximumf %arg18, %275 : vector<8x1xf32>
      %277 = arith.subf %arg18, %276 : vector<8x1xf32>
      %278 = math.exp %277 : vector<8x1xf32>
      %279 = vector.broadcast %276 : vector<8x1xf32> to vector<8x8xf32>
      %280 = arith.subf %273, %279 : vector<8x8xf32>
      %281 = math.exp %280 : vector<8x8xf32>
      %282 = arith.mulf %278, %arg19 : vector<8x1xf32>
      %cst_125 = arith.constant dense<0.000000e+00> : vector<8xf32>
      %283 = vector.multi_reduction <add>, %281, %cst_125 [1] : vector<8x8xf32> to vector<8xf32>
      %284 = vector.shape_cast %283 : vector<8xf32> to vector<8x1xf32>
      %285 = arith.addf %282, %284 : vector<8x1xf32>
      %286 = vector.broadcast %278 : vector<8x1xf32> to vector<8x8xf32>
      %287 = arith.mulf %286, %arg20 : vector<8x8xf32>
      %288 = arith.truncf %281 : vector<8x8xf32> to vector<8x8xbf16>
      %cst_126 = arith.constant dense<0.000000e+00> : vector<8x8xf32>
      %289 = tpu.matmul %288, %272, %cst_126 {dimension_numbers = #tpu.dot_dimension_numbers<[1], [0], [0], [1], [0, 0, 1, 1], [], []>} : vector<8x8xbf16>, vector<8x8xbf16>, vector<8x8xf32> -> vector<8x8xf32>
      %290 = arith.addf %287, %289 : vector<8x8xf32>
      scf.yield %276, %285, %290 : vector<8x1xf32>, vector<8x1xf32>, vector<8x8xf32>
    }
    %c3 = arith.constant 3 : index
    %186 = arith.index_cast %arg1 : i32 to index
    %c0_80 = arith.constant 0 : index
    %c0_81 = arith.constant 0 : index
    %187 = vector.load %arg15[%c3, %186, %c0_80, %c0_81] : memref<4x1x8x8xbf16, #tpu.memory_space<vmem>>, vector<1x1x8x8xbf16>
    %188 = vector.shape_cast %187 : vector<1x1x8x8xbf16> to vector<8x8xbf16>
    %c3_82 = arith.constant 3 : index
    %189 = arith.index_cast %arg1 : i32 to index
    %c0_83 = arith.constant 0 : index
    %c0_84 = arith.constant 0 : index
    %190 = vector.load %arg16[%c3_82, %189, %c0_83, %c0_84] : memref<4x1x8x8xbf16, #tpu.memory_space<vmem>>, vector<1x1x8x8xbf16>
    %191 = vector.shape_cast %190 : vector<1x1x8x8xbf16> to vector<8x8xbf16>
    %cst_85 = arith.constant dense<0.000000e+00> : vector<8x8xf32>
    %192 = tpu.matmul %179, %188, %cst_85 {dimension_numbers = #tpu.dot_dimension_numbers<[1], [1], [0], [0], [0, 0, 1, 0], [], []>} : vector<8x8xbf16>, vector<8x8xbf16>, vector<8x8xf32> -> vector<8x8xf32>
    %cst_86 = arith.constant -1.000000e+30 : f32
    %193 = vector.broadcast %cst_86 : f32 to vector<8x8xf32>
    %194 = arith.select %10, %192, %193 : vector<8x8xi1>, vector<8x8xf32>
    %cst_87 = arith.constant dense<0xFF800000> : vector<8xf32>
    %195 = vector.multi_reduction <maximumf>, %194, %cst_87 [1] : vector<8x8xf32> to vector<8xf32>
    %196 = vector.shape_cast %195 : vector<8xf32> to vector<8x1xf32>
    %197 = arith.maximumf %185#0, %196 : vector<8x1xf32>
    %198 = arith.subf %185#0, %197 : vector<8x1xf32>
    %199 = math.exp %198 : vector<8x1xf32>
    %200 = vector.broadcast %197 : vector<8x1xf32> to vector<8x8xf32>
    %201 = arith.subf %194, %200 : vector<8x8xf32>
    %202 = math.exp %201 : vector<8x8xf32>
    %203 = arith.mulf %199, %185#1 : vector<8x1xf32>
    %cst_88 = arith.constant dense<0.000000e+00> : vector<8xf32>
    %204 = vector.multi_reduction <add>, %202, %cst_88 [1] : vector<8x8xf32> to vector<8xf32>
    %205 = vector.shape_cast %204 : vector<8xf32> to vector<8x1xf32>
    %206 = arith.addf %203, %205 : vector<8x1xf32>
    %207 = vector.broadcast %199 : vector<8x1xf32> to vector<8x8xf32>
    %208 = arith.mulf %207, %185#2 : vector<8x8xf32>
    %209 = arith.truncf %202 : vector<8x8xf32> to vector<8x8xbf16>
    %cst_89 = arith.constant dense<0.000000e+00> : vector<8x8xf32>
    %210 = tpu.matmul %209, %191, %cst_89 {dimension_numbers = #tpu.dot_dimension_numbers<[1], [0], [0], [1], [0, 0, 1, 1], [], []>} : vector<8x8xbf16>, vector<8x8xbf16>, vector<8x8xf32> -> vector<8x8xf32>
    %211 = arith.addf %208, %210 : vector<8x8xf32>
    %212 = tpu.reciprocal %206 {approx = true} : vector<8x1xf32> -> vector<8x1xf32>
    %213 = vector.broadcast %212 : vector<8x1xf32> to vector<8x8xf32>
    %214 = arith.mulf %211, %213 : vector<8x8xf32>
    %215 = arith.truncf %214 : vector<8x8xf32> to vector<8x8xbf16>
    %c3_90 = arith.constant 3 : index
    %c0_91 = arith.constant 0 : index
    %c0_92 = arith.constant 0 : index
    %216 = vector.load %arg7[%c3_90, %c0_91, %c0_92] : memref<4x8x32xbf16, #tpu.memory_space<vmem>>, vector<1x8x32xbf16>
    %217 = vector.shape_cast %216 : vector<1x8x32xbf16> to vector<8x32xbf16>
    %cst_93 = arith.constant dense<0.000000e+00> : vector<8x32xf32>
    %218 = tpu.matmul %215, %217, %cst_93 {dimension_numbers = #tpu.dot_dimension_numbers<[1], [0], [0], [1], [0, 0, 1, 1], [], []>} : vector<8x8xbf16>, vector<8x32xbf16>, vector<8x32xf32> -> vector<8x32xf32>
    %219 = arith.addf %167, %218 : vector<8x32xf32>
    %220 = arith.addf %219, %4 : vector<8x32xf32>
    %221 = arith.truncf %220 : vector<8x32xf32> to vector<8x32xbf16>
    %c0_94 = arith.constant 0 : index
    %c0_95 = arith.constant 0 : index
    %222 = vector.load %arg8[%c0_94, %c0_95] : memref<32x128xbf16, #tpu.memory_space<vmem>>, vector<32x128xbf16>
    %cst_96 = arith.constant dense<0.000000e+00> : vector<8x128xf32>
    %223 = tpu.matmul %221, %222, %cst_96 {dimension_numbers = #tpu.dot_dimension_numbers<[1], [0], [0], [1], [0, 0, 1, 1], [], []>} : vector<8x32xbf16>, vector<32x128xbf16>, vector<8x128xf32> -> vector<8x128xf32>
    %c0_97 = arith.constant 0 : index
    %c0_98 = arith.constant 0 : index
    %224 = vector.load %arg9[%c0_97, %c0_98] : memref<1x128xf32, #tpu.memory_space<vmem>>, vector<1x128xf32>
    %225 = vector.broadcast %224 : vector<1x128xf32> to vector<8x128xf32>
    %226 = arith.addf %223, %225 : vector<8x128xf32>
    %227 = arith.negf %226 : vector<8x128xf32>
    %228 = math.exp %227 : vector<8x128xf32>
    %cst_99 = arith.constant 1.000000e+00 : f32
    %229 = vector.broadcast %cst_99 : f32 to vector<8x128xf32>
    %230 = arith.addf %229, %228 : vector<8x128xf32>
    %231 = arith.divf %229, %230 : vector<8x128xf32>
    %232 = arith.mulf %226, %231 : vector<8x128xf32>
    %cst_100 = arith.constant dense<0.000000e+00> : vector<8xf32>
    %233 = vector.multi_reduction <add>, %232, %cst_100 [1] : vector<8x128xf32> to vector<8xf32>
    %234 = vector.shape_cast %233 : vector<8xf32> to vector<8x1xf32>
    %cst_101 = arith.constant 1.280000e+02 : f32
    %235 = vector.broadcast %cst_101 : f32 to vector<8x1xf32>
    %236 = arith.divf %234, %235 : vector<8x1xf32>
    %237 = vector.broadcast %236 : vector<8x1xf32> to vector<8x128xf32>
    %238 = arith.subf %232, %237 : vector<8x128xf32>
    %239 = arith.mulf %238, %238 : vector<8x128xf32>
    %cst_102 = arith.constant dense<0.000000e+00> : vector<8xf32>
    %240 = vector.multi_reduction <add>, %239, %cst_102 [1] : vector<8x128xf32> to vector<8xf32>
    %241 = vector.shape_cast %240 : vector<8xf32> to vector<8x1xf32>
    %cst_103 = arith.constant 1.280000e+02 : f32
    %242 = vector.broadcast %cst_103 : f32 to vector<8x1xf32>
    %243 = arith.divf %241, %242 : vector<8x1xf32>
    %244 = vector.broadcast %236 : vector<8x1xf32> to vector<8x128xf32>
    %245 = arith.subf %232, %244 : vector<8x128xf32>
    %cst_104 = arith.constant 9.99999974E-6 : f32
    %246 = vector.broadcast %cst_104 : f32 to vector<8x1xf32>
    %247 = arith.addf %243, %246 : vector<8x1xf32>
    %248 = math.rsqrt %247 : vector<8x1xf32>
    %249 = vector.broadcast %248 : vector<8x1xf32> to vector<8x128xf32>
    %250 = arith.mulf %245, %249 : vector<8x128xf32>
    %c0_105 = arith.constant 0 : index
    %c0_106 = arith.constant 0 : index
    %251 = vector.load %arg10[%c0_105, %c0_106] : memref<1x128xf32, #tpu.memory_space<vmem>>, vector<1x128xf32>
    %252 = vector.broadcast %251 : vector<1x128xf32> to vector<8x128xf32>
    %253 = arith.mulf %250, %252 : vector<8x128xf32>
    %c0_107 = arith.constant 0 : index
    %c0_108 = arith.constant 0 : index
    %254 = vector.load %arg11[%c0_107, %c0_108] : memref<1x128xf32, #tpu.memory_space<vmem>>, vector<1x128xf32>
    %255 = vector.broadcast %254 : vector<1x128xf32> to vector<8x128xf32>
    %256 = arith.addf %253, %255 : vector<8x128xf32>
    %257 = arith.truncf %256 : vector<8x128xf32> to vector<8x128xbf16>
    %c0_109 = arith.constant 0 : index
    %c0_110 = arith.constant 0 : index
    %258 = vector.load %arg12[%c0_109, %c0_110] : memref<128x32xbf16, #tpu.memory_space<vmem>>, vector<128x32xbf16>
    %cst_111 = arith.constant dense<0.000000e+00> : vector<8x32xf32>
    %259 = tpu.matmul %257, %258, %cst_111 {dimension_numbers = #tpu.dot_dimension_numbers<[1], [0], [0], [1], [0, 0, 1, 1], [], []>} : vector<8x128xbf16>, vector<128x32xbf16>, vector<8x32xf32> -> vector<8x32xf32>
    %c0_112 = arith.constant 0 : index
    %c0_113 = arith.constant 0 : index
    %260 = vector.load %arg13[%c0_112, %c0_113] : memref<1x32xf32, #tpu.memory_space<vmem>>, vector<1x32xf32>
    %261 = vector.broadcast %260 : vector<1x32xf32> to vector<8x32xf32>
    %262 = arith.addf %259, %261 : vector<8x32xf32>
    %263 = arith.addf %220, %262 : vector<8x32xf32>
    %c0_114 = arith.constant 0 : index
    %c0_115 = arith.constant 0 : index
    %c0_116 = arith.constant 0 : index
    %264 = vector.load %arg14[%c0_114, %c0_115, %c0_116] : memref<1x8x32xf32, #tpu.memory_space<vmem>>, vector<1x8x32xf32>
    %265 = vector.shape_cast %264 : vector<1x8x32xf32> to vector<8x32xf32>
    %266 = vector.shape_cast %263 : vector<8x32xf32> to vector<1x8x32xf32>
    tpu.vector_store %arg14[%c0_114, %c0_115, %c0_116], %266 {strides = array<i32>} : memref<1x8x32xf32, #tpu.memory_space<vmem>>, vector<1x8x32xf32>,
    return
  }
  func.func @transform_0(%arg0: i32, %arg1: i32) -> (i32, i32, i32) {
    %c0_i32 = arith.constant 0 : i32
    %c0_i32_0 = arith.constant 0 : i32
    return %arg0, %arg1, %c0_i32 : i32, i32, i32
  }
  func.func @transform_1(%arg0: i32, %arg1: i32) -> (i32, i32, i32) {
    %c0_i32 = arith.constant 0 : i32
    %c0_i32_0 = arith.constant 0 : i32
    %c0_i32_1 = arith.constant 0 : i32
    return %arg0, %c0_i32, %c0_i32_0 : i32, i32, i32
  }
  func.func @transform_2(%arg0: i32, %arg1: i32) -> (i32, i32) {
    %c0_i32 = arith.constant 0 : i32
    %c0_i32_0 = arith.constant 0 : i32
    %c0_i32_1 = arith.constant 0 : i32
    return %c0_i32, %c0_i32_0 : i32, i32
  }
  func.func @transform_3(%arg0: i32, %arg1: i32) -> (i32, i32) {
    %c0_i32 = arith.constant 0 : i32
    %c0_i32_0 = arith.constant 0 : i32
    %c0_i32_1 = arith.constant 0 : i32
    return %c0_i32, %c0_i32_0 : i32, i32
  }
  func.func @transform_4(%arg0: i32, %arg1: i32) -> (i32, i32) {
    %c0_i32 = arith.constant 0 : i32
    %c0_i32_0 = arith.constant 0 : i32
    %c0_i32_1 = arith.constant 0 : i32
    return %c0_i32, %c0_i32_0 : i32, i32
  }
  func.func @transform_5(%arg0: i32, %arg1: i32) -> (i32, i32, i32) {
    %c0_i32 = arith.constant 0 : i32
    %c0_i32_0 = arith.constant 0 : i32
    %c0_i32_1 = arith.constant 0 : i32
    %c0_i32_2 = arith.constant 0 : i32
    return %c0_i32, %c0_i32_0, %c0_i32_1 : i32, i32, i32
  }
  func.func @transform_6(%arg0: i32, %arg1: i32) -> (i32, i32) {
    %c0_i32 = arith.constant 0 : i32
    %c0_i32_0 = arith.constant 0 : i32
    %c0_i32_1 = arith.constant 0 : i32
    return %c0_i32, %c0_i32_0 : i32, i32
  }
  func.func @transform_7(%arg0: i32, %arg1: i32) -> (i32, i32) {
    %c0_i32 = arith.constant 0 : i32
    %c0_i32_0 = arith.constant 0 : i32
    %c0_i32_1 = arith.constant 0 : i32
    return %c0_i32, %c0_i32_0 : i32, i32
  }
  func.func @transform_8(%arg0: i32, %arg1: i32) -> (i32, i32) {
    %c0_i32 = arith.constant 0 : i32
    %c0_i32_0 = arith.constant 0 : i32
    %c0_i32_1 = arith.constant 0 : i32
    return %c0_i32, %c0_i32_0 : i32, i32
  }
  func.func @transform_9(%arg0: i32, %arg1: i32) -> (i32, i32) {
    %c0_i32 = arith.constant 0 : i32
    %c0_i32_0 = arith.constant 0 : i32
    %c0_i32_1 = arith.constant 0 : i32
    return %c0_i32, %c0_i32_0 : i32, i32
  }
  func.func @transform_10(%arg0: i32, %arg1: i32) -> (i32, i32) {
    %c0_i32 = arith.constant 0 : i32
    %c0_i32_0 = arith.constant 0 : i32
    %c0_i32_1 = arith.constant 0 : i32
    return %c0_i32, %c0_i32_0 : i32, i32
  }
  func.func @transform_11(%arg0: i32, %arg1: i32) -> (i32, i32) {
    %c0_i32 = arith.constant 0 : i32
    %c0_i32_0 = arith.constant 0 : i32
    %c0_i32_1 = arith.constant 0 : i32
    return %c0_i32, %c0_i32_0 : i32, i32
  }
  func.func @transform_12(%arg0: i32, %arg1: i32) -> (i32, i32, i32) {
    %c0_i32 = arith.constant 0 : i32
    %c0_i32_0 = arith.constant 0 : i32
    return %arg0, %arg1, %c0_i32 : i32, i32, i32
  }
}

</mosaic_0001>

<llo_original>
// kernel: decoder_llm_forward.2
$region0: #{decoder_llm_forward.2}
  #allocation0 [shape = 'u32[]', space=smem, size = 0x4, offset = 0x4, fixed_abs, tag = 'smem constant byte address 0x4 - core index']
  #allocation1 [shape = 'u32[72,128]{1,0:T(1,128)}', space=vmem, size = 0x9000, scoped, tag = 'internal scratch']
  #allocation2 [shape = 'bf16[4,1,8,8]{3,2,1,0:T(8,128)(2,1)}', space=vmem, size = 0x2000, scoped, tag = 'scratch operand']
  #allocation3 [shape = 'bf16[4,1,8,8]{3,2,1,0:T(8,128)(2,1)}', space=vmem, size = 0x2000, scoped, tag = 'scratch operand']
  %s0 = inlined_call_operand.vmem [shape: f32[2,8,32], index: 0, kind: input, shape index: {}, may-alias: {0,1}]
  %s1 = inlined_call_operand.vmem [shape: f32[2,8,32], index: 1, kind: input, shape index: {}, may-alias: {0,1}]
  %s2 = inlined_call_operand.vmem [shape: bf16[32,32], index: 2, kind: input, shape index: {}]
  %s3 = inlined_call_operand.vmem [shape: bf16[32,32], index: 3, kind: input, shape index: {}]
  %s4 = inlined_call_operand.vmem [shape: bf16[32,32], index: 4, kind: input, shape index: {}]
  %s5 = inlined_call_operand.vmem [shape: bf16[4,8,32], index: 5, kind: input, shape index: {}]
  %s6 = inlined_call_operand.vmem [shape: bf16[32,128], index: 6, kind: input, shape index: {}]
  %s7 = inlined_call_operand.vmem [shape: f32[1,128], index: 7, kind: input, shape index: {}]
  %s8 = inlined_call_operand.vmem [shape: f32[1,128], index: 8, kind: input, shape index: {}]
  %s9 = inlined_call_operand.vmem [shape: f32[1,128], index: 9, kind: input, shape index: {}]
  %s10 = inlined_call_operand.vmem [shape: bf16[128,32], index: 10, kind: input, shape index: {}]
  %s11 = inlined_call_operand.vmem [shape: f32[1,32], index: 11, kind: input, shape index: {}]
  %s12 = inlined_call_operand.vmem [shape: f32[2,8,32], index: 12, kind: output, shape index: {}]
  %s13 = sld [smem:[#allocation0]]
  $region113: #{decoder_llm_forward.2} parent=0
    _
  %s15 = ssub.s32 1, %s13
  %s16 = scalar_select 0, %s15, %s13
  loop: start=0, step=1, limit=4
  $region2: #{decoder_llm_forward.2} parent=0 // loop_pre_header
    _
  $region3: #{decoder_llm_forward.2} parent=0 // loop_header
    %s18 = sphi 0, %s22
    %p19 = scmp.ge.s32.totalorder %s18, 4
    %s25 = sphi 0, %s37
    %s26 = sphi 0, %s33
    %s27 = sphi 0, %s25
    %s28 = sphi 0, %s26
    %s29 = sphi 0, %s27
    %s30 = sphi 0, %s28
    %s42 = sphi 0, %s44
    %s45 = sphi 0, %s42
    %s46 = sphi 0, %s45
    %s62 = sphi 0, %s46
    %s68 = sphi 0, %s70
    %s71 = sphi 0, %s68
    %s72 = sphi 0, %s71
    %s88 = sphi 0, %s72
    %s92 = sphi 0, %s92
    %s94 = sphi 0, %s92
    %s95 = sphi 0, %s94
    %s109 = sphi 0, %s95
    %s113 = sphi 0, %s113
    %s115 = sphi 0, %s113
    %s116 = sphi 0, %s115
    %s130 = sphi 0, %s116
    %s134 = sphi 0, %s134
    %s136 = sphi 0, %s134
    %s137 = sphi 0, %s136
    %s151 = sphi 0, %s137
    %s155 = sphi 0, %s155
    %s157 = sphi 0, %s155
    %s158 = sphi 0, %s157
    %s172 = sphi 0, %s158
    %s176 = sphi 0, %s176
    %s178 = sphi 0, %s176
    %s179 = sphi 0, %s178
    %s193 = sphi 0, %s179
    %s197 = sphi 0, %s197
    %s199 = sphi 0, %s197
    %s200 = sphi 0, %s199
    %s214 = sphi 0, %s200
    %s218 = sphi 0, %s218
    %s220 = sphi 0, %s218
    %s221 = sphi 0, %s220
    %s235 = sphi 0, %s221
    %s239 = sphi 0, %s239
    %s241 = sphi 0, %s239
    %s242 = sphi 0, %s241
    %s256 = sphi 0, %s242
    %s260 = sphi 0, %s260
    %s262 = sphi 0, %s260
    %s263 = sphi 0, %s262
    %s277 = sphi 0, %s263
    %s281 = sphi 0, %s281
    %s283 = sphi 0, %s281
    %s284 = sphi 0, %s283
    %s298 = sphi 0, %s284
    %s306 = sphi 0, %s308
    %s309 = sphi 0, %s306
    %s310 = sphi 0, %s309
    %s326 = sphi 0, %s310
  $region4: #{decoder_llm_forward.2} parent=0 // loop_header_branch
    %21 = sbr.rel (%p19) target = $region8
  $region5: #{decoder_llm_forward.2} parent=0 // loop_body
    %s23 = ssub.s32 %s18, 1
    %s24 = ssub.s32 %s18, 2
    %s31 = sadd.s32 1, %s26
    %p32 = scmp.ge.s32.totalorder %s31, 1
    %s33 = scalar_select %p32, 0, %s31
    %s34 = sadd.s32 1, %s25
    %s35 = scalar_select %p32, %s34, %s25
    %p36 = scmp.ge.s32.totalorder %s35, 2
    %s37 = scalar_select %p36, 0, %s35
    %s38 = ssub.s32 %s25, %s37
    %s39 = ssub.s32 %s26, %s33
    %s40 = sor.u32 %s38, %s39
    %p41 = scmp.eq.s32.totalorder %s40, 0
    %s43 = sadd.s32 %s42, 1
    %s44 = scalar_select %p41, %s42, %s43
    %p47 = pneg %p41
    %p48 = scmp.eq.s32.totalorder %s18, 1
    %p49 = por %p47, %p48
    %p50 = scmp.ne.s32.totalorder %s42, %s45
    %p51 = scmp.eq.s32.totalorder %s18, 0
    %p52 = por %p50, %p51
    %p53 = scmp.ne.s32.totalorder %s42, %s45
    %p54 = scmp.eq.s32.totalorder %s23, 1
    %p55 = por %p53, %p54
    %p56 = scmp.ne.s32.totalorder %s45, %s46
    %p57 = scmp.eq.s32.totalorder %s23, 0
    %p58 = por %p56, %p57
    %p59 = scmp.ne.s32.totalorder %s45, %s46
    %p60 = scmp.eq.s32.totalorder %s24, 1
    %p61 = por %p59, %p60
    %p63 = scmp.ne.s32.totalorder %s46, %s62
    %p64 = scmp.eq.s32.totalorder %s24, 0
    %p65 = por %p63, %p64
    %s66 = ssub.s32 %s25, %s37
    %p67 = scmp.eq.s32.totalorder %s66, 0
    %s69 = sadd.s32 %s68, 1
    %s70 = scalar_select %p67, %s68, %s69
    %p73 = pneg %p67
    %p74 = scmp.eq.s32.totalorder %s18, 1
    %p75 = por %p73, %p74
    %p76 = scmp.ne.s32.totalorder %s68, %s71
    %p77 = scmp.eq.s32.totalorder %s18, 0
    %p78 = por %p76, %p77
    %p79 = scmp.ne.s32.totalorder %s68, %s71
    %p80 = scmp.eq.s32.totalorder %s23, 1
    %p81 = por %p79, %p80
    %p82 = scmp.ne.s32.totalorder %s71, %s72
    %p83 = scmp.eq.s32.totalorder %s23, 0
    %p84 = por %p82, %p83
    %p85 = scmp.ne.s32.totalorder %s71, %s72
    %p86 = scmp.eq.s32.totalorder %s24, 1
    %p87 = por %p85, %p86
    %p89 = scmp.ne.s32.totalorder %s72, %s88
    %p90 = scmp.eq.s32.totalorder %s24, 0
    %p91 = por %p89, %p90
    %s93 = sadd.s32 %s92, 1
    %p96 = scmp.eq.s32.totalorder %s18, 1
    %p97 = scmp.ne.s32.totalorder %s92, %s94
    %p98 = scmp.eq.s32.totalorder %s18, 0
    %p99 = por %p97, %p98
    %p100 = scmp.ne.s32.totalorder %s92, %s94
    %p101 = scmp.eq.s32.totalorder %s23, 1
    %p102 = por %p100, %p101
    %p103 = scmp.ne.s32.totalorder %s94, %s95
    %p104 = scmp.eq.s32.totalorder %s23, 0
    %p105 = por %p103, %p104
    %p106 = scmp.ne.s32.totalorder %s94, %s95
    %p107 = scmp.eq.s32.totalorder %s24, 1
    %p108 = por %p106, %p107
    %p110 = scmp.ne.s32.totalorder %s95, %s109
    %p111 = scmp.eq.s32.totalorder %s24, 0
    %p112 = por %p110, %p111
    %s114 = sadd.s32 %s113, 1
    %p117 = scmp.eq.s32.totalorder %s18, 1
    %p118 = scmp.ne.s32.totalorder %s113, %s115
    %p119 = scmp.eq.s32.totalorder %s18, 0
    %p120 = por %p118, %p119
    %p121 = scmp.ne.s32.totalorder %s113, %s115
    %p122 = scmp.eq.s32.totalorder %s23, 1
    %p123 = por %p121, %p122
    %p124 = scmp.ne.s32.totalorder %s115, %s116
    %p125 = scmp.eq.s32.totalorder %s23, 0
    %p126 = por %p124, %p125
    %p127 = scmp.ne.s32.totalorder %s115, %s116
    %p128 = scmp.eq.s32.totalorder %s24, 1
    %p129 = por %p127, %p128
    %p131 = scmp.ne.s32.totalorder %s116, %s130
    %p132 = scmp.eq.s32.totalorder %s24, 0
    %p133 = por %p131, %p132
    %s135 = sadd.s32 %s134, 1
    %p138 = scmp.eq.s32.totalorder %s18, 1
    %p139 = scmp.ne.s32.totalorder %s134, %s136
    %p140 = scmp.eq.s32.totalorder %s18, 0
    %p141 = por %p139, %p140
    %p142 = scmp.ne.s32.totalorder %s134, %s136
    %p143 = scmp.eq.s32.totalorder %s23, 1
    %p144 = por %p142, %p143
    %p145 = scmp.ne.s32.totalorder %s136, %s137
    %p146 = scmp.eq.s32.totalorder %s23, 0
    %p147 = por %p145, %p146
    %p148 = scmp.ne.s32.totalorder %s136, %s137
    %p149 = scmp.eq.s32.totalorder %s24, 1
    %p150 = por %p148, %p149
    %p152 = scmp.ne.s32.totalorder %s137, %s151
    %p153 = scmp.eq.s32.totalorder %s24, 0
    %p154 = por %p152, %p153
    %s156 = sadd.s32 %s155, 1
    %p159 = scmp.eq.s32.totalorder %s18, 1
    %p160 = scmp.ne.s32.totalorder %s155, %s157
    %p161 = scmp.eq.s32.totalorder %s18, 0
    %p162 = por %p160, %p161
    %p163 = scmp.ne.s32.totalorder %s155, %s157
    %p164 = scmp.eq.s32.totalorder %s23, 1
    %p165 = por %p163, %p164
    %p166 = scmp.ne.s32.totalorder %s157, %s158
    %p167 = scmp.eq.s32.totalorder %s23, 0
    %p168 = por %p166, %p167
    %p169 = scmp.ne.s32.totalorder %s157, %s158
    %p170 = scmp.eq.s32.totalorder %s24, 1
    %p171 = por %p169, %p170
    %p173 = scmp.ne.s32.totalorder %s158, %s172
    %p174 = scmp.eq.s32.totalorder %s24, 0
    %p175 = por %p173, %p174
    %s177 = sadd.s32 %s176, 1
    %p180 = scmp.eq.s32.totalorder %s18, 1
    %p181 = scmp.ne.s32.totalorder %s176, %s178
    %p182 = scmp.eq.s32.totalorder %s18, 0
    %p183 = por %p181, %p182
    %p184 = scmp.ne.s32.totalorder %s176, %s178
    %p185 = scmp.eq.s32.totalorder %s23, 1
    %p186 = por %p184, %p185
    %p187 = scmp.ne.s32.totalorder %s178, %s179
    %p188 = scmp.eq.s32.totalorder %s23, 0
    %p189 = por %p187, %p188
    %p190 = scmp.ne.s32.totalorder %s178, %s179
    %p191 = scmp.eq.s32.totalorder %s24, 1
    %p192 = por %p190, %p191
    %p194 = scmp.ne.s32.totalorder %s179, %s193
    %p195 = scmp.eq.s32.totalorder %s24, 0
    %p196 = por %p194, %p195
    %s198 = sadd.s32 %s197, 1
    %p201 = scmp.eq.s32.totalorder %s18, 1
    %p202 = scmp.ne.s32.totalorder %s197, %s199
    %p203 = scmp.eq.s32.totalorder %s18, 0
    %p204 = por %p202, %p203
    %p205 = scmp.ne.s32.totalorder %s197, %s199
    %p206 = scmp.eq.s32.totalorder %s23, 1
    %p207 = por %p205, %p206
    %p208 = scmp.ne.s32.totalorder %s199, %s200
    %p209 = scmp.eq.s32.totalorder %s23, 0
    %p210 = por %p208, %p209
    %p211 = scmp.ne.s32.totalorder %s199, %s200
    %p212 = scmp.eq.s32.totalorder %s24, 1
    %p213 = por %p211, %p212
    %p215 = scmp.ne.s32.totalorder %s200, %s214
    %p216 = scmp.eq.s32.totalorder %s24, 0
    %p217 = por %p215, %p216
    %s219 = sadd.s32 %s218, 1
    %p222 = scmp.eq.s32.totalorder %s18, 1
    %p223 = scmp.ne.s32.totalorder %s218, %s220
    %p224 = scmp.eq.s32.totalorder %s18, 0
    %p225 = por %p223, %p224
    %p226 = scmp.ne.s32.totalorder %s218, %s220
    %p227 = scmp.eq.s32.totalorder %s23, 1
    %p228 = por %p226, %p227
    %p229 = scmp.ne.s32.totalorder %s220, %s221
    %p230 = scmp.eq.s32.totalorder %s23, 0
    %p231 = por %p229, %p230
    %p232 = scmp.ne.s32.totalorder %s220, %s221
    %p233 = scmp.eq.s32.totalorder %s24, 1
    %p234 = por %p232, %p233
    %p236 = scmp.ne.s32.totalorder %s221, %s235
    %p237 = scmp.eq.s32.totalorder %s24, 0
    %p238 = por %p236, %p237
    %s240 = sadd.s32 %s239, 1
    %p243 = scmp.eq.s32.totalorder %s18, 1
    %p244 = scmp.ne.s32.totalorder %s239, %s241
    %p245 = scmp.eq.s32.totalorder %s18, 0
    %p246 = por %p244, %p245
    %p247 = scmp.ne.s32.totalorder %s239, %s241
    %p248 = scmp.eq.s32.totalorder %s23, 1
    %p249 = por %p247, %p248
    %p250 = scmp.ne.s32.totalorder %s241, %s242
    %p251 = scmp.eq.s32.totalorder %s23, 0
    %p252 = por %p250, %p251
    %p253 = scmp.ne.s32.totalorder %s241, %s242
    %p254 = scmp.eq.s32.totalorder %s24, 1
    %p255 = por %p253, %p254
    %p257 = scmp.ne.s32.totalorder %s242, %s256
    %p258 = scmp.eq.s32.totalorder %s24, 0
    %p259 = por %p257, %p258
    %s261 = sadd.s32 %s260, 1
    %p264 = scmp.eq.s32.totalorder %s18, 1
    %p265 = scmp.ne.s32.totalorder %s260, %s262
    %p266 = scmp.eq.s32.totalorder %s18, 0
    %p267 = por %p265, %p266
    %p268 = scmp.ne.s32.totalorder %s260, %s262
    %p269 = scmp.eq.s32.totalorder %s23, 1
    %p270 = por %p268, %p269
    %p271 = scmp.ne.s32.totalorder %s262, %s263
    %p272 = scmp.eq.s32.totalorder %s23, 0
    %p273 = por %p271, %p272
    %p274 = scmp.ne.s32.totalorder %s262, %s263
    %p275 = scmp.eq.s32.totalorder %s24, 1
    %p276 = por %p274, %p275
    %p278 = scmp.ne.s32.totalorder %s263, %s277
    %p279 = scmp.eq.s32.totalorder %s24, 0
    %p280 = por %p278, %p279
    %s282 = sadd.s32 %s281, 1
    %p285 = scmp.eq.s32.totalorder %s18, 1
    %p286 = scmp.ne.s32.totalorder %s281, %s283
    %p287 = scmp.eq.s32.totalorder %s18, 0
    %p288 = por %p286, %p287
    %p289 = scmp.ne.s32.totalorder %s281, %s283
    %p290 = scmp.eq.s32.totalorder %s23, 1
    %p291 = por %p289, %p290
    %p292 = scmp.ne.s32.totalorder %s283, %s284
    %p293 = scmp.eq.s32.totalorder %s23, 0
    %p294 = por %p292, %p293
    %p295 = scmp.ne.s32.totalorder %s283, %s284
    %p296 = scmp.eq.s32.totalorder %s24, 1
    %p297 = por %p295, %p296
    %p299 = scmp.ne.s32.totalorder %s284, %s298
    %p300 = scmp.eq.s32.totalorder %s24, 0
    %p301 = por %p299, %p300
    %s302 = ssub.s32 %s25, %s37
    %s303 = ssub.s32 %s26, %s33
    %s304 = sor.u32 %s302, %s303
    %p305 = scmp.eq.s32.totalorder %s304, 0
    %s307 = sadd.s32 %s306, 1
    %s308 = scalar_select %p305, %s306, %s307
    %p311 = pneg %p305
    %p312 = scmp.eq.s32.totalorder %s18, 1
    %p313 = por %p311, %p312
    %p314 = scmp.ne.s32.totalorder %s306, %s309
    %p315 = scmp.eq.s32.totalorder %s18, 0
    %p316 = por %p314, %p315
    %p317 = scmp.ne.s32.totalorder %s306, %s309
    %p318 = scmp.eq.s32.totalorder %s23, 1
    %p319 = por %p317, %p318
    %p320 = scmp.ne.s32.totalorder %s309, %s310
    %p321 = scmp.eq.s32.totalorder %s23, 0
    %p322 = por %p320, %p321
    %p323 = scmp.ne.s32.totalorder %s309, %s310
    %p324 = scmp.eq.s32.totalorder %s24, 1
    %p325 = por %p323, %p324
    %p327 = scmp.ne.s32.totalorder %s310, %s326
    %p328 = scmp.eq.s32.totalorder %s24, 0
    %p329 = por %p327, %p328
    %p330 = scmp.le.s32.totalorder 1, %s18
    %p331 = scmp.lt.s32.totalorder %s18, 3
    %p332 = pnand %p330, %p331
    %p333 = pneg %p332
    // Predicated region
    $region9: #{decoder_llm_forward.2} parent=5 // pred_check
      _
    $region10: #{decoder_llm_forward.2} parent=5 // pred_check_branch
      %335 = sbr.rel (%p332) target = $region12
    $region11: #{decoder_llm_forward.2} parent=5 // pred_region
      %s336 = ssub.s32 %s18, 1
      // Predicated region
      $region13: #{decoder_llm_forward.2} parent=11 // pred_check
        %p337 = pneg %p105
      $region14: #{decoder_llm_forward.2} parent=11 // pred_check_branch
        %339 = sbr.rel (%p337) target = $region16
      $region15: #{decoder_llm_forward.2} parent=11 // pred_region
        _
      $region16: #{decoder_llm_forward.2} parent=11 // pred_fallthru
        _
      // Predicated region
      $region17: #{decoder_llm_forward.2} parent=11 // pred_check
        %p340 = pneg %p126
      $region18: #{decoder_llm_forward.2} parent=11 // pred_check_branch
        %342 = sbr.rel (%p340) target = $region20
      $region19: #{decoder_llm_forward.2} parent=11 // pred_region
        _
      $region20: #{decoder_llm_forward.2} parent=11 // pred_fallthru
        _
      // Predicated region
      $region21: #{decoder_llm_forward.2} parent=11 // pred_check
        %p343 = pneg %p147
      $region22: #{decoder_llm_forward.2} parent=11 // pred_check_branch
        %345 = sbr.rel (%p343) target = $region24
      $region23: #{decoder_llm_forward.2} parent=11 // pred_region
        _
      $region24: #{decoder_llm_forward.2} parent=11 // pred_fallthru
        _
      // Predicated region
      $region25: #{decoder_llm_forward.2} parent=11 // pred_check
        %p346 = pneg %p168
      $region26: #{decoder_llm_forward.2} parent=11 // pred_check_branch
        %348 = sbr.rel (%p346) target = $region28
      $region27: #{decoder_llm_forward.2} parent=11 // pred_region
        _
      $region28: #{decoder_llm_forward.2} parent=11 // pred_fallthru
        _
      // Predicated region
      $region29: #{decoder_llm_forward.2} parent=11 // pred_check
        %p349 = pneg %p189
      $region30: #{decoder_llm_forward.2} parent=11 // pred_check_branch
        %351 = sbr.rel (%p349) target = $region32
      $region31: #{decoder_llm_forward.2} parent=11 // pred_region
        _
      $region32: #{decoder_llm_forward.2} parent=11 // pred_fallthru
        _
      // Predicated region
      $region33: #{decoder_llm_forward.2} parent=11 // pred_check
        %p352 = pneg %p210
      $region34: #{decoder_llm_forward.2} parent=11 // pred_check_branch
        %354 = sbr.rel (%p352) target = $region36
      $region35: #{decoder_llm_forward.2} parent=11 // pred_region
        _
      $region36: #{decoder_llm_forward.2} parent=11 // pred_fallthru
        _
      // Predicated region
      $region37: #{decoder_llm_forward.2} parent=11 // pred_check
        %p355 = pneg %p231
      $region38: #{decoder_llm_forward.2} parent=11 // pred_check_branch
        %357 = sbr.rel (%p355) target = $region40
      $region39: #{decoder_llm_forward.2} parent=11 // pred_region
        _
      $region40: #{decoder_llm_forward.2} parent=11 // pred_fallthru
        _
      // Predicated region
      $region41: #{decoder_llm_forward.2} parent=11 // pred_check
        %p358 = pneg %p252
      $region42: #{decoder_llm_forward.2} parent=11 // pred_check_branch
        %360 = sbr.rel (%p358) target = $region44
      $region43: #{decoder_llm_forward.2} parent=11 // pred_region
        _
      $region44: #{decoder_llm_forward.2} parent=11 // pred_fallthru
        _
      // Predicated region
      $region45: #{decoder_llm_forward.2} parent=11 // pred_check
        %p361 = pneg %p273
      $region46: #{decoder_llm_forward.2} parent=11 // pred_check_branch
        %363 = sbr.rel (%p361) target = $region48
      $region47: #{decoder_llm_forward.2} parent=11 // pred_region
        _
      $region48: #{decoder_llm_forward.2} parent=11 // pred_fallthru
        _
      // Predicated region
      $region49: #{decoder_llm_forward.2} parent=11 // pred_check
        %p364 = pneg %p294
      $region50: #{decoder_llm_forward.2} parent=11 // pred_check_branch
        %366 = sbr.rel (%p364) target = $region52
      $region51: #{decoder_llm_forward.2} parent=11 // pred_region
        _
      $region52: #{decoder_llm_forward.2} parent=11 // pred_fallthru
        _
    $region12: #{decoder_llm_forward.2} parent=5 // pred_fallthru
      _
    %p367 = scmp.lt.s32.totalorder %s18, 2
    // Predicated region
    $region53: #{decoder_llm_forward.2} parent=5 // pred_check
      %p368 = pneg %p367
    $region54: #{decoder_llm_forward.2} parent=5 // pred_check_branch
      %370 = sbr.rel (%p368) target = $region56
    $region55: #{decoder_llm_forward.2} parent=5 // pred_region
      // Predicated region
      $region57: #{decoder_llm_forward.2} parent=55 // pred_check
        %p371 = pneg %p52
      $region58: #{decoder_llm_forward.2} parent=55 // pred_check_branch
        %373 = sbr.rel (%p371) target = $region60
      $region59: #{decoder_llm_forward.2} parent=55 // pred_region
        %p374 = scmp.lt.s32.totalorder %s25, 1
        %s375 = scalar_select %p374, %s25, 1
        %p376 = scmp.lt.s32.totalorder %s26, 0
        %s377 = scalar_select %p376, %s26, 0
        %s378 = sadd.s32 %s377, %s375
        %s379 = smul.addr %s378, 8
        %s380 = scalar_lea.vmem %s0, %s379
      $region60: #{decoder_llm_forward.2} parent=55 // pred_fallthru
        _
      // Predicated region
      $region61: #{decoder_llm_forward.2} parent=55 // pred_check
        %p381 = pneg %p78
      $region62: #{decoder_llm_forward.2} parent=55 // pred_check_branch
        %383 = sbr.rel (%p381) target = $region64
      $region63: #{decoder_llm_forward.2} parent=55 // pred_region
        %p384 = scmp.lt.s32.totalorder %s25, 1
        %s385 = scalar_select %p384, %s25, 1
        %s386 = smul.addr %s385, 8
        %s387 = scalar_lea.vmem %s1, %s386
      $region64: #{decoder_llm_forward.2} parent=55 // pred_fallthru
        _
    $region56: #{decoder_llm_forward.2} parent=5 // pred_fallthru
      _
    %p388 = scmp.le.s32.totalorder 1, %s18
    %p389 = scmp.lt.s32.totalorder %s18, 3
    %p390 = pnand %p388, %p389
    %p391 = pneg %p390
    // Predicated region
    $region65: #{decoder_llm_forward.2} parent=5 // pred_check
      _
    $region66: #{decoder_llm_forward.2} parent=5 // pred_check_branch
      %393 = sbr.rel (%p390) target = $region68
    $region67: #{decoder_llm_forward.2} parent=5 // pred_region
      %s394 = ssub.s32 %s18, 1
      %p395 = scmp.lt.s32.totalorder %s27, 1
      %s396 = scalar_select %p395, %s27, 1
      %p397 = scmp.lt.s32.totalorder %s28, 0
      %s398 = scalar_select %p397, %s28, 0
      %s399 = sadd.s32 %s398, %s396
      %s400 = smul.addr %s399, 8
      %s401 = scalar_lea.vmem %s0, %s400
      %p402 = pneg %p58
      %p403 = pneg %p55
      %p404 = scmp.lt.s32.totalorder %s27, 1
      %s405 = scalar_select %p404, %s27, 1
      %s406 = smul.addr %s405, 8
      %s407 = scalar_lea.vmem %s1, %s406
      %p408 = pneg %p84
      %p409 = pneg %p81
      %p410 = pneg %p105
      %p411 = pneg %p102
      %p412 = pneg %p126
      %p413 = pneg %p123
      %p414 = pneg %p147
      %p415 = pneg %p144
      %p416 = pneg %p168
      %p417 = pneg %p165
      %p418 = pneg %p189
      %p419 = pneg %p186
      %p420 = pneg %p210
      %p421 = pneg %p207
      %p422 = pneg %p231
      %p423 = pneg %p228
      %p424 = pneg %p252
      %p425 = pneg %p249
      %p426 = pneg %p273
      %p427 = pneg %p270
      %p428 = pneg %p294
      %p429 = pneg %p291
      %p430 = pneg %p322
      %p431 = pneg %p319
      %p432 = scmp.lt.s32.totalorder %s27, 1
      %s433 = scalar_select %p432, %s27, 1
      %p434 = scmp.lt.s32.totalorder %s28, 0
      %s435 = scalar_select %p434, %s28, 0
      %s436 = sadd.s32 %s435, %s433
      %s437 = smul.addr %s436, 8
      %s438 = scalar_lea.vmem %s12, %s437
      %p439 = scmp.lt.s32.totalorder %s27, 1
      %s440 = scalar_select %p439, %s27, 1
      %p441 = scmp.lt.s32.totalorder %s28, 0
      %s442 = scalar_select %p441, %s28, 0
      %s443 = sadd.s32 %s442, %s440
      %s444 = smul.addr %s443, 8
      %s445 = scalar_lea.vmem %s0, %s444
      %p446 = scmp.lt.s32.totalorder %s27, 1
      %s447 = scalar_select %p446, %s27, 1
      %s448 = smul.addr %s447, 8
      %s449 = scalar_lea.vmem %s1, %s448
      %p450 = scmp.lt.s32.totalorder %s27, 1
      %s451 = scalar_select %p450, %s27, 1
      %p452 = scmp.lt.s32.totalorder %s28, 0
      %s453 = scalar_select %p452, %s28, 0
      %s454 = sadd.s32 %s453, %s451
      %s455 = smul.addr %s454, 8
      %s456 = scalar_lea.vmem %s12, %s455
      %p458 = scmp.eq.s32.totalorder %s28, 0
      // Predicated region
      $region69: #{decoder_llm_forward.2} parent=67 // pred_check
        %p459 = pneg %p458
      $region70: #{decoder_llm_forward.2} parent=67 // pred_check_branch
        %461 = sbr.rel (%p459) target = $region72
      $region71: #{decoder_llm_forward.2} parent=67 // pred_region
        %v462 = vld [vmem:[%s449] sm:$0xff]
        %v463 = vpack.c.bf16 %v462, %v462
        %v464 = vld [vmem:[%s3] sm:$0xf]
        %v465 = vld [vmem:[%s3 + $0x4] sm:$0xf]
        %v466 = vld [vmem:[%s3 + $0x8] sm:$0xf]
        %v467 = vld [vmem:[%s3 + $0xc] sm:$0xf]
        %v472 = vunpack.c.l.b16 %v464
        %v473 = vunpack.c.l.b16 %v465
        %v474 = vunpack.c.l.b16 %v466
        %v475 = vunpack.c.l.b16 %v467
        %v476 = vpack.c.b16 %v473, %v472
        %v477 = vpack.c.b16 %v475, %v474
        %vm480 = vcmask 261120
        %v482 = vsel %vm480, %v463, 0
        %484 = vmatpush.bf16.msra.mxu0 0
        %485 = vmatpush.bf16.msra.mxu0 0
        %486 = vmatpush.bf16.msra.mxu0 0
        %487 = vmatpush.bf16.msra.mxu0 0
        %488 = vmatpush.bf16.msra.mxu0 0
        %489 = vmatpush.bf16.msra.mxu0 0
        %490 = vmatpush.bf16.msra.mxu0 %v477
        %491 = vmatpush.bf16.msra.mxu0 %v476
        %492 = vmatmul.bf16.gmra.mxu0 %v482
        %v493 = vpop.f32.mrf.mxu0
        %v494 = vadd.f32 0.0, %v493
        %v495 = vpop.f32.mrf.mxu0
        %496 = vdwg.mxu0
        %v497 = vld [vmem:[%s4] sm:$0xf]
        %v498 = vld [vmem:[%s4 + $0x4] sm:$0xf]
        %v499 = vld [vmem:[%s4 + $0x8] sm:$0xf]
        %v500 = vld [vmem:[%s4 + $0xc] sm:$0xf]
        %v505 = vunpack.c.l.b16 %v497
        %v506 = vunpack.c.l.b16 %v498
        %v507 = vunpack.c.l.b16 %v499
        %v508 = vunpack.c.l.b16 %v500
        %v509 = vpack.c.b16 %v506, %v505
        %v510 = vpack.c.b16 %v508, %v507
        %513 = vmatpush.bf16.msra.mxu0 0
        %514 = vmatpush.bf16.msra.mxu0 0
        %515 = vmatpush.bf16.msra.mxu0 0
        %516 = vmatpush.bf16.msra.mxu0 0
        %517 = vmatpush.bf16.msra.mxu0 0
        %518 = vmatpush.bf16.msra.mxu0 0
        %519 = vmatpush.bf16.msra.mxu0 %v510
        %520 = vmatpush.bf16.msra.mxu0 %v509
        %521 = vmatmul.bf16.gmra.mxu0 %v482
        %v522 = vpop.f32.mrf.mxu0
        %v523 = vadd.f32 0.0, %v522
        %v524 = vpop.f32.mrf.mxu0
        %525 = vdwg.mxu0
        %v526 = vmul.f32 %v494, %v494
        %vm527 = vcmask 64512
        %v528 = vsel %vm527, %v526, 0.0
        %529 = vadd.xlane.f32.xlu0 %v528
        %v530 = vpop.xlane.xlu0 %529
        %v531 = vadd.f32 %v530, 1e-12
        %v532 = vrsqrt.pop %v531
        %v533 = vmul.f32 %v532, %v531
        %v534 = vmul.f32 %v533, %v532
        %v535 = vmul.f32 0.5, %v534
        %v536 = vsub.f32 1.5, %v535
        %v537 = vmul.f32 %v532, %v536
        %vm538 = vweird.f32 %v531
        %vm539 = vweird.f32 %v532
        %vm540 = vmor %vm538, %vm539
        %v541 = vsel %vm540, %v532, %v537
        %v542 = vmul.f32 %v494, %v541
        %v543 = vpack.c.bf16 %v542, %v542
        %v544 = vpack.c.bf16 %v523, %v523
        %vm545 = vcmask 60416
        %546 = vst.msk [vmem:[#allocation2] sm:$0xf] %vm545, %v543
        %547 = vst.msk [vmem:[#allocation3] sm:$0xf] %vm545, %v544
        %549 = vrot.lane.b32.xlu0 %v526, 120
        %v550 = vpop.permute.xlu0 %549
        %v552 = vsel %vm527, %v550, 0.0
        %553 = vadd.xlane.f32.xlu0 %v552
        %v554 = vpop.xlane.xlu0 %553
        %v555 = vadd.f32 %v554, 1e-12
        %v556 = vrsqrt.pop %v555
        %v557 = vmul.f32 %v556, %v555
        %v558 = vmul.f32 %v557, %v556
        %v559 = vmul.f32 0.5, %v558
        %v560 = vsub.f32 1.5, %v559
        %v561 = vmul.f32 %v556, %v560
        %vm562 = vweird.f32 %v555
        %vm563 = vweird.f32 %v556
        %vm564 = vmor %vm562, %vm563
        %v565 = vsel %vm564, %v556, %v561
        %v566 = vmul.f32 %v494, %v565
        %v567 = vpack.c.bf16 %v566, %v566
        %569 = vrot.lane.b32.xlu0 %v567, 120
        %v570 = vpop.permute.xlu0 %569
        %s572 = scalar_lea.vmem [#allocation2], 4
        %573 = vst.msk [vmem:[%s572] sm:$0xf] %vm545, %v570
        %575 = vrot.lane.b32.xlu0 %v544, 120
        %v576 = vpop.permute.xlu0 %575
        %s578 = scalar_lea.vmem [#allocation3], 4
        %579 = vst.msk [vmem:[%s578] sm:$0xf] %vm545, %v576
        %580 = vrot.lane.b32.xlu0 %v526, 112
        %v581 = vpop.permute.xlu0 %580
        %v583 = vsel %vm527, %v581, 0.0
        %584 = vadd.xlane.f32.xlu0 %v583
        %v585 = vpop.xlane.xlu0 %584
        %v586 = vadd.f32 %v585, 1e-12
        %v587 = vrsqrt.pop %v586
        %v588 = vmul.f32 %v587, %v586
        %v589 = vmul.f32 %v588, %v587
        %v590 = vmul.f32 0.5, %v589
        %v591 = vsub.f32 1.5, %v590
        %v592 = vmul.f32 %v587, %v591
        %vm593 = vweird.f32 %v586
        %vm594 = vweird.f32 %v587
        %vm595 = vmor %vm593, %vm594
        %v596 = vsel %vm595, %v587, %v592
        %v597 = vmul.f32 %v494, %v596
        %v598 = vpack.c.bf16 %v597, %v597
        %600 = vrot.lane.b32.xlu0 %v598, 112
        %v601 = vpop.permute.xlu0 %600
        %s603 = scalar_lea.vmem [#allocation2], 8
        %604 = vst.msk [vmem:[%s603] sm:$0xf] %vm545, %v601
        %605 = vrot.lane.b32.xlu0 %v544, 112
        %v606 = vpop.permute.xlu0 %605
        %s608 = scalar_lea.vmem [#allocation3], 8
        %609 = vst.msk [vmem:[%s608] sm:$0xf] %vm545, %v606
        %610 = vrot.lane.b32.xlu0 %v526, 104
        %v611 = vpop.permute.xlu0 %610
        %v613 = vsel %vm527, %v611, 0.0
        %614 = vadd.xlane.f32.xlu0 %v613
        %v615 = vpop.xlane.xlu0 %614
        %v616 = vadd.f32 %v615, 1e-12
        %v617 = vrsqrt.pop %v616
        %v618 = vmul.f32 %v617, %v616
        %v619 = vmul.f32 %v618, %v617
        %v620 = vmul.f32 0.5, %v619
        %v621 = vsub.f32 1.5, %v620
        %v622 = vmul.f32 %v617, %v621
        %vm623 = vweird.f32 %v616
        %vm624 = vweird.f32 %v617
        %vm625 = vmor %vm623, %vm624
        %v626 = vsel %vm625, %v617, %v622
        %v627 = vmul.f32 %v494, %v626
        %v628 = vpack.c.bf16 %v627, %v627
        %630 = vrot.lane.b32.xlu0 %v628, 104
        %v631 = vpop.permute.xlu0 %630
        %s633 = scalar_lea.vmem [#allocation2], 12
        %634 = vst.msk [vmem:[%s633] sm:$0xf] %vm545, %v631
        %635 = vrot.lane.b32.xlu0 %v544, 104
        %v636 = vpop.permute.xlu0 %635
        %s638 = scalar_lea.vmem [#allocation3], 12
        %639 = vst.msk [vmem:[%s638] sm:$0xf] %vm545, %v636
      $region72: #{decoder_llm_forward.2} parent=67 // pred_fallthru
        _
      %v640 = vld [vmem:[%s445] sm:$0xff]
      %v641 = vpack.c.bf16 %v640, %v640
      %v642 = vld [vmem:[%s2] sm:$0xf]
      %v643 = vld [vmem:[%s2 + $0x4] sm:$0xf]
      %v644 = vld [vmem:[%s2 + $0x8] sm:$0xf]
      %v645 = vld [vmem:[%s2 + $0xc] sm:$0xf]
      %v650 = vunpack.c.l.b16 %v642
      %v651 = vunpack.c.l.b16 %v643
      %v652 = vunpack.c.l.b16 %v644
      %v653 = vunpack.c.l.b16 %v645
      %v654 = vpack.c.b16 %v651, %v650
      %v655 = vpack.c.b16 %v653, %v652
      %vm658 = vcmask 261120
      %v660 = vsel %vm658, %v641, 0
      %662 = vmatpush.bf16.msra.mxu0 0
      %663 = vmatpush.bf16.msra.mxu0 0
      %664 = vmatpush.bf16.msra.mxu0 0
      %665 = vmatpush.bf16.msra.mxu0 0
      %666 = vmatpush.bf16.msra.mxu0 0
      %667 = vmatpush.bf16.msra.mxu0 0
      %668 = vmatpush.bf16.msra.mxu0 %v655
      %669 = vmatpush.bf16.msra.mxu0 %v654
      %670 = vmatmul.bf16.gmra.mxu0 %v660
      %v671 = vpop.f32.mrf.mxu0
      %v672 = vadd.f32 0.0, %v671
      %v673 = vpop.f32.mrf.mxu0
      %674 = vdwg.mxu0
      %v675 = vlaneseq
      %v676 = vshrl.u32 %v675, 7
      %v677 = vlaneseq
      %v678 = vand.u32 %v677, 127
      %vm679 = vcmp.le.s32.totalorder %v678, %v676
      %v680 = vmul.f32 %v672, %v672
      %vm681 = vcmask 64512
      %v682 = vsel %vm681, %v680, 0.0
      %683 = vadd.xlane.f32.xlu0 %v682
      %v684 = vpop.xlane.xlu0 %683
      %v685 = vadd.f32 %v684, 1e-12
      %v686 = vrsqrt.pop %v685
      %v687 = vmul.f32 %v686, %v685
      %v688 = vmul.f32 %v687, %v686
      %v689 = vmul.f32 0.5, %v688
      %v690 = vsub.f32 1.5, %v689
      %v691 = vmul.f32 %v686, %v690
      %vm692 = vweird.f32 %v685
      %vm693 = vweird.f32 %v686
      %vm694 = vmor %vm692, %vm693
      %v695 = vsel %vm694, %v686, %v691
      %v696 = vmul.f32 %v672, %v695
      %v697 = vmul.f32 %v696, 10.0
      %v698 = vpack.c.bf16 %v697, %v697
      // While loop
      $region73: #{decoder_llm_forward.2} parent=67 // loop_pre_header
        _
      $region74: #{decoder_llm_forward.2} parent=67 // loop_header
        %s700 = sphi 0, %s702
        %p701 = scmp.ge.s32.totalorder %s700, %s28
        %v705 = vphi -inf, %v736
        %v706 = vphi 0.0, %v747
        %v707 = vphi 0.0, %v770
      $region75: #{decoder_llm_forward.2} parent=67 // loop_header_branch
        %704 = sbr.rel (%p701) target = $region79
      $region76: #{decoder_llm_forward.2} parent=67 // loop_body
        %s708 = smul.addr %s700, 4
        %s709 = scalar_lea.vmem [#allocation2], %s708
        %v710 = vld [vmem:[%s709] sm:$0xf]
        %s711 = smul.addr %s700, 4
        %s712 = scalar_lea.vmem [#allocation3], %s711
        %v713 = vld [vmem:[%s712] sm:$0xf]
        %v715 = vsel %vm681, %v698, 0
        %v718 = vsel %vm681, %v710, 0
        %720 = vmatpush.bf16.xpose.msra.mxu0 0
        %721 = vmatpush.bf16.xpose.msra.mxu0 0
        %722 = vmatpush.bf16.xpose.msra.mxu0 0
        %723 = vmatpush.bf16.xpose.msra.mxu0 0
        %724 = vmatpush.bf16.xpose.msra.mxu0 0
        %725 = vmatpush.bf16.xpose.msra.mxu0 0
        %726 = vmatpush.bf16.xpose.msra.mxu0 0
        %727 = vmatpush.bf16.xpose.msra.mxu0 %v718
        %728 = vmatmul.bf16.gmra.mxu0 %v715
        %v729 = vpop.f32.mrf.mxu0
        %v730 = vadd.f32 0.0, %v729
        %v731 = vpop.f32.mrf.mxu0
        %732 = vdwg.mxu0
        %v733 = vsel %vm681, %v730, -inf
        %734 = vmax.xlane.f32.xlu0 %v733
        %v735 = vpop.xlane.xlu0 %734
        %v736 = vmax.f32 %v705, %v735
        %v737 = vsub.f32 %v705, %v736
        %v738 = vmul.f32 %v737, 1.442695
        %v739 = vpow.pop %v738
        %v740 = vsub.f32 %v730, %v736
        %v741 = vmul.f32 %v740, 1.442695
        %v742 = vpow.pop %v741
        %v743 = vmul.f32 %v739, %v706
        %v744 = vsel %vm681, %v742, 0.0
        %745 = vadd.xlane.f32.xlu0 %v744
        %v746 = vpop.xlane.xlu0 %745
        %v747 = vadd.f32 %v743, %v746
        %v748 = vmul.f32 %v739, %v707
        %v749 = vpack.c.bf16 %v742, %v742
        %v751 = vsel %vm681, %v749, 0
        %vm753 = vcmask 1043456
        %v755 = vsel %vm753, %v713, 0
        %757 = vmatpush.bf16.msra.mxu0 0
        %758 = vmatpush.bf16.msra.mxu0 0
        %759 = vmatpush.bf16.msra.mxu0 0
        %760 = vmatpush.bf16.msra.mxu0 0
        %761 = vmatpush.bf16.msra.mxu0 0
        %762 = vmatpush.bf16.msra.mxu0 0
        %763 = vmatpush.bf16.msra.mxu0 0
        %764 = vmatpush.bf16.msra.mxu0 %v755
        %765 = vmatmul.bf16.gmra.mxu0 %v751
        %v766 = vpop.f32.mrf.mxu0
        %v767 = vadd.f32 0.0, %v766
        %v768 = vpop.f32.mrf.mxu0
        %769 = vdwg.mxu0
        %v770 = vadd.f32 %v748, %v767
      $region77: #{decoder_llm_forward.2} parent=67 // loop_footer
        %s702 = sadd.s32 %s700, 1
      $region78: #{decoder_llm_forward.2} parent=67 // loop_footer_branch
        %699 = sbr.rel target = $region74
      $region79: #{decoder_llm_forward.2} parent=67 // loop_exit
        _
      %s771 = smul.addr %s28, 4
      %s772 = scalar_lea.vmem [#allocation2], %s771
      %v773 = vld [vmem:[%s772] sm:$0xf]
      %s774 = smul.addr %s28, 4
      %s775 = scalar_lea.vmem [#allocation3], %s774
      %v776 = vld [vmem:[%s775] sm:$0xf]
      %v778 = vsel %vm681, %v698, 0
      %v781 = vsel %vm681, %v773, 0
      %783 = vmatpush.bf16.xpose.msra.mxu0 0
      %784 = vmatpush.bf16.xpose.msra.mxu0 0
      %785 = vmatpush.bf16.xpose.msra.mxu0 0
      %786 = vmatpush.bf16.xpose.msra.mxu0 0
      %787 = vmatpush.bf16.xpose.msra.mxu0 0
      %788 = vmatpush.bf16.xpose.msra.mxu0 0
      %789 = vmatpush.bf16.xpose.msra.mxu0 0
      %790 = vmatpush.bf16.xpose.msra.mxu0 %v781
      %791 = vmatmul.bf16.gmra.mxu0 %v778
      %v792 = vpop.f32.mrf.mxu0
      %v793 = vadd.f32 0.0, %v792
      %v794 = vpop.f32.mrf.mxu0
      %795 = vdwg.mxu0
      %v796 = vsel %vm679, %v793, -1e+30
      %v797 = vsel %vm681, %v796, -inf
      %798 = vmax.xlane.f32.xlu0 %v797
      %v799 = vpop.xlane.xlu0 %798
      %v800 = vmax.f32 %v705, %v799
      %v801 = vsub.f32 %v705, %v800
      %v802 = vmul.f32 %v801, 1.442695
      %v803 = vpow.pop %v802
      %v804 = vsub.f32 %v796, %v800
      %v805 = vmul.f32 %v804, 1.442695
      %v806 = vpow.pop %v805
      %v807 = vmul.f32 %v803, %v706
      %v808 = vsel %vm681, %v806, 0.0
      %809 = vadd.xlane.f32.xlu0 %v808
      %v810 = vpop.xlane.xlu0 %809
      %v811 = vadd.f32 %v807, %v810
      %v812 = vmul.f32 %v803, %v707
      %v813 = vpack.c.bf16 %v806, %v806
      %v815 = vsel %vm681, %v813, 0
      %vm817 = vcmask 1043456
      %v819 = vsel %vm817, %v776, 0
      %821 = vmatpush.bf16.msra.mxu0 0
      %822 = vmatpush.bf16.msra.mxu0 0
      %823 = vmatpush.bf16.msra.mxu0 0
      %824 = vmatpush.bf16.msra.mxu0 0
      %825 = vmatpush.bf16.msra.mxu0 0
      %826 = vmatpush.bf16.msra.mxu0 0
      %827 = vmatpush.bf16.msra.mxu0 0
      %828 = vmatpush.bf16.msra.mxu0 %v819
      %829 = vmatmul.bf16.gmra.mxu0 %v815
      %v830 = vpop.f32.mrf.mxu0
      %v831 = vadd.f32 0.0, %v830
      %v832 = vpop.f32.mrf.mxu0
      %833 = vdwg.mxu0
      %v834 = vadd.f32 %v812, %v831
      %v835 = vrcp.pop %v811
      %v836 = vmul.f32 %v834, %v835
      %v837 = vpack.c.bf16 %v836, %v836
      %v838 = vld [vmem:[%s5] sm:$0xf]
      %840 = vrot.lane.b32.xlu0 %v680, 120
      %v841 = vpop.permute.xlu0 %840
      %v843 = vsel %vm681, %v841, 0.0
      %844 = vadd.xlane.f32.xlu0 %v843
      %v845 = vpop.xlane.xlu0 %844
      %v846 = vadd.f32 %v845, 1e-12
      %v847 = vrsqrt.pop %v846
      %v848 = vmul.f32 %v847, %v846
      %v849 = vmul.f32 %v848, %v847
      %v850 = vmul.f32 0.5, %v849
      %v851 = vsub.f32 1.5, %v850
      %v852 = vmul.f32 %v847, %v851
      %vm853 = vweird.f32 %v846
      %vm854 = vweird.f32 %v847
      %vm855 = vmor %vm853, %vm854
      %v856 = vsel %vm855, %v847, %v852
      %v857 = vmul.f32 %v672, %v856
      %v858 = vmul.f32 %v857, 10.0
      %v859 = vpack.c.bf16 %v858, %v858
      // While loop
      $region80: #{decoder_llm_forward.2} parent=67 // loop_pre_header
        _
      $region81: #{decoder_llm_forward.2} parent=67 // loop_header
        %s861 = sphi 0, %s863
        %p862 = scmp.ge.s32.totalorder %s861, %s28
        %v866 = vphi -inf, %v901
        %v867 = vphi 0.0, %v912
        %v868 = vphi 0.0, %v934
      $region82: #{decoder_llm_forward.2} parent=67 // loop_header_branch
        %865 = sbr.rel (%p862) target = $region86
      $region83: #{decoder_llm_forward.2} parent=67 // loop_body
        %s869 = sadd.s32 %s861, 1
        %s870 = smul.addr %s869, 4
        %s871 = scalar_lea.vmem [#allocation2], %s870
        %v872 = vld [vmem:[%s871] sm:$0xf]
        %s873 = smul.addr %s869, 4
        %s874 = scalar_lea.vmem [#allocation3], %s873
        %v875 = vld [vmem:[%s874] sm:$0xf]
        %877 = vrot.lane.b32.xlu0 %v859, 120
        %v878 = vpop.permute.xlu0 %877
        %v880 = vsel %vm681, %v878, 0
        %v883 = vsel %vm681, %v872, 0
        %885 = vmatpush.bf16.xpose.msra.mxu0 0
        %886 = vmatpush.bf16.xpose.msra.mxu0 0
        %887 = vmatpush.bf16.xpose.msra.mxu0 0
        %888 = vmatpush.bf16.xpose.msra.mxu0 0
        %889 = vmatpush.bf16.xpose.msra.mxu0 0
        %890 = vmatpush.bf16.xpose.msra.mxu0 0
        %891 = vmatpush.bf16.xpose.msra.mxu0 0
        %892 = vmatpush.bf16.xpose.msra.mxu0 %v883
        %893 = vmatmul.bf16.gmra.mxu0 %v880
        %v894 = vpop.f32.mrf.mxu0
        %v895 = vadd.f32 0.0, %v894
        %v896 = vpop.f32.mrf.mxu0
        %897 = vdwg.mxu0
        %v898 = vsel %vm681, %v895, -inf
        %899 = vmax.xlane.f32.xlu0 %v898
        %v900 = vpop.xlane.xlu0 %899
        %v901 = vmax.f32 %v866, %v900
        %v902 = vsub.f32 %v866, %v901
        %v903 = vmul.f32 %v902, 1.442695
        %v904 = vpow.pop %v903
        %v905 = vsub.f32 %v895, %v901
        %v906 = vmul.f32 %v905, 1.442695
        %v907 = vpow.pop %v906
        %v908 = vmul.f32 %v904, %v867
        %v909 = vsel %vm681, %v907, 0.0
        %910 = vadd.xlane.f32.xlu0 %v909
        %v911 = vpop.xlane.xlu0 %910
        %v912 = vadd.f32 %v908, %v911
        %v913 = vmul.f32 %v904, %v868
        %v914 = vpack.c.bf16 %v907, %v907
        %v916 = vsel %vm681, %v914, 0
        %v919 = vsel %vm817, %v875, 0
        %921 = vmatpush.bf16.msra.mxu0 0
        %922 = vmatpush.bf16.msra.mxu0 0
        %923 = vmatpush.bf16.msra.mxu0 0
        %924 = vmatpush.bf16.msra.mxu0 0
        %925 = vmatpush.bf16.msra.mxu0 0
        %926 = vmatpush.bf16.msra.mxu0 0
        %927 = vmatpush.bf16.msra.mxu0 0
        %928 = vmatpush.bf16.msra.mxu0 %v919
        %929 = vmatmul.bf16.gmra.mxu0 %v916
        %v930 = vpop.f32.mrf.mxu0
        %v931 = vadd.f32 0.0, %v930
        %v932 = vpop.f32.mrf.mxu0
        %933 = vdwg.mxu0
        %v934 = vadd.f32 %v913, %v931
      $region84: #{decoder_llm_forward.2} parent=67 // loop_footer
        %s863 = sadd.s32 %s861, 1
      $region85: #{decoder_llm_forward.2} parent=67 // loop_footer_branch
        %860 = sbr.rel target = $region81
      $region86: #{decoder_llm_forward.2} parent=67 // loop_exit
        _
      %s935 = sadd.s32 %s28, 1
      %s936 = smul.addr %s935, 4
      %s937 = scalar_lea.vmem [#allocation2], %s936
      %v938 = vld [vmem:[%s937] sm:$0xf]
      %s939 = smul.addr %s935, 4
      %s940 = scalar_lea.vmem [#allocation3], %s939
      %v941 = vld [vmem:[%s940] sm:$0xf]
      %943 = vrot.lane.b32.xlu0 %v859, 120
      %v944 = vpop.permute.xlu0 %943
      %v946 = vsel %vm681, %v944, 0
      %v949 = vsel %vm681, %v938, 0
      %951 = vmatpush.bf16.xpose.msra.mxu0 0
      %952 = vmatpush.bf16.xpose.msra.mxu0 0
      %953 = vmatpush.bf16.xpose.msra.mxu0 0
      %954 = vmatpush.bf16.xpose.msra.mxu0 0
      %955 = vmatpush.bf16.xpose.msra.mxu0 0
      %956 = vmatpush.bf16.xpose.msra.mxu0 0
      %957 = vmatpush.bf16.xpose.msra.mxu0 0
      %958 = vmatpush.bf16.xpose.msra.mxu0 %v949
      %959 = vmatmul.bf16.gmra.mxu0 %v946
      %v960 = vpop.f32.mrf.mxu0
      %v961 = vadd.f32 0.0, %v960
      %v962 = vpop.f32.mrf.mxu0
      %963 = vdwg.mxu0
      %v964 = vsel %vm679, %v961, -1e+30
      %v965 = vsel %vm681, %v964, -inf
      %966 = vmax.xlane.f32.xlu0 %v965
      %v967 = vpop.xlane.xlu0 %966
      %v968 = vmax.f32 %v866, %v967
      %v969 = vsub.f32 %v866, %v968
      %v970 = vmul.f32 %v969, 1.442695
      %v971 = vpow.pop %v970
      %v972 = vsub.f32 %v964, %v968
      %v973 = vmul.f32 %v972, 1.442695
      %v974 = vpow.pop %v973
      %v975 = vmul.f32 %v971, %v867
      %v976 = vsel %vm681, %v974, 0.0
      %977 = vadd.xlane.f32.xlu0 %v976
      %v978 = vpop.xlane.xlu0 %977
      %v979 = vadd.f32 %v975, %v978
      %v980 = vmul.f32 %v971, %v868
      %v981 = vpack.c.bf16 %v974, %v974
      %v983 = vsel %vm681, %v981, 0
      %v986 = vsel %vm817, %v941, 0
      %988 = vmatpush.bf16.msra.mxu0 0
      %989 = vmatpush.bf16.msra.mxu0 0
      %990 = vmatpush.bf16.msra.mxu0 0
      %991 = vmatpush.bf16.msra.mxu0 0
      %992 = vmatpush.bf16.msra.mxu0 0
      %993 = vmatpush.bf16.msra.mxu0 0
      %994 = vmatpush.bf16.msra.mxu0 0
      %995 = vmatpush.bf16.msra.mxu0 %v986
      %996 = vmatmul.bf16.gmra.mxu0 %v983
      %v997 = vpop.f32.mrf.mxu0
      %v998 = vadd.f32 0.0, %v997
      %v999 = vpop.f32.mrf.mxu0
      %1000 = vdwg.mxu0
      %v1001 = vadd.f32 %v980, %v998
      %v1002 = vrcp.pop %v979
      %v1003 = vmul.f32 %v1001, %v1002
      %v1004 = vpack.c.bf16 %v1003, %v1003
      %s1005 = scalar_lea.vmem %s5, 4
      %v1006 = vld [vmem:[%s1005] sm:$0xf]
      %v1008 = vsel %vm681, %v1004, 0
      %v1011 = vsel %vm817, %v1006, 0
      %1013 = vmatpush.bf16.msra.mxu0 0
      %1014 = vmatpush.bf16.msra.mxu0 0
      %1015 = vmatpush.bf16.msra.mxu0 0
      %1016 = vmatpush.bf16.msra.mxu0 0
      %1017 = vmatpush.bf16.msra.mxu0 0
      %1018 = vmatpush.bf16.msra.mxu0 0
      %1019 = vmatpush.bf16.msra.mxu0 0
      %1020 = vmatpush.bf16.msra.mxu0 %v1011
      %1021 = vmatmul.bf16.gmra.mxu0 %v1008
      %v1022 = vpop.f32.mrf.mxu0
      %v1023 = vadd.f32 0.0, %v1022
      %v1024 = vpop.f32.mrf.mxu0
      %1025 = vdwg.mxu0
      %v1027 = vsel %vm681, %v837, 0
      %v1030 = vsel %vm817, %v838, 0
      %1032 = vmatpush.bf16.msra.mxu0 0
      %1033 = vmatpush.bf16.msra.mxu0 0
      %1034 = vmatpush.bf16.msra.mxu0 0
      %1035 = vmatpush.bf16.msra.mxu0 0
      %1036 = vmatpush.bf16.msra.mxu0 0
      %1037 = vmatpush.bf16.msra.mxu0 0
      %1038 = vmatpush.bf16.msra.mxu0 0
      %1039 = vmatpush.bf16.msra.mxu0 %v1030
      %1040 = vmatmul.bf16.gmra.mxu0 %v1027
      %v1041 = vpop.f32.mrf.mxu0
      %v1042 = vadd.f32 %v1023, %v1041
      %v1043 = vpop.f32.mrf.mxu0
      %1044 = vdwg.mxu0
      %1045 = vrot.lane.b32.xlu0 %v680, 112
      %v1046 = vpop.permute.xlu0 %1045
      %v1048 = vsel %vm681, %v1046, 0.0
      %1049 = vadd.xlane.f32.xlu0 %v1048
      %v1050 = vpop.xlane.xlu0 %1049
      %v1051 = vadd.f32 %v1050, 1e-12
      %v1052 = vrsqrt.pop %v1051
      %v1053 = vmul.f32 %v1052, %v1051
      %v1054 = vmul.f32 %v1053, %v1052
      %v1055 = vmul.f32 0.5, %v1054
      %v1056 = vsub.f32 1.5, %v1055
      %v1057 = vmul.f32 %v1052, %v1056
      %vm1058 = vweird.f32 %v1051
      %vm1059 = vweird.f32 %v1052
      %vm1060 = vmor %vm1058, %vm1059
      %v1061 = vsel %vm1060, %v1052, %v1057
      %v1062 = vmul.f32 %v672, %v1061
      %v1063 = vmul.f32 %v1062, 10.0
      %v1064 = vpack.c.bf16 %v1063, %v1063
      // While loop
      $region87: #{decoder_llm_forward.2} parent=67 // loop_pre_header
        _
      $region88: #{decoder_llm_forward.2} parent=67 // loop_header
        %s1066 = sphi 0, %s1068
        %p1067 = scmp.ge.s32.totalorder %s1066, %s28
        %v1071 = vphi -inf, %v1106
        %v1072 = vphi 0.0, %v1117
        %v1073 = vphi 0.0, %v1139
      $region89: #{decoder_llm_forward.2} parent=67 // loop_header_branch
        %1070 = sbr.rel (%p1067) target = $region93
      $region90: #{decoder_llm_forward.2} parent=67 // loop_body
        %s1074 = sadd.s32 %s1066, 2
        %s1075 = smul.addr %s1074, 4
        %s1076 = scalar_lea.vmem [#allocation2], %s1075
        %v1077 = vld [vmem:[%s1076] sm:$0xf]
        %s1078 = smul.addr %s1074, 4
        %s1079 = scalar_lea.vmem [#allocation3], %s1078
        %v1080 = vld [vmem:[%s1079] sm:$0xf]
        %1082 = vrot.lane.b32.xlu0 %v1064, 112
        %v1083 = vpop.permute.xlu0 %1082
        %v1085 = vsel %vm681, %v1083, 0
        %v1088 = vsel %vm681, %v1077, 0
        %1090 = vmatpush.bf16.xpose.msra.mxu0 0
        %1091 = vmatpush.bf16.xpose.msra.mxu0 0
        %1092 = vmatpush.bf16.xpose.msra.mxu0 0
        %1093 = vmatpush.bf16.xpose.msra.mxu0 0
        %1094 = vmatpush.bf16.xpose.msra.mxu0 0
        %1095 = vmatpush.bf16.xpose.msra.mxu0 0
        %1096 = vmatpush.bf16.xpose.msra.mxu0 0
        %1097 = vmatpush.bf16.xpose.msra.mxu0 %v1088
        %1098 = vmatmul.bf16.gmra.mxu0 %v1085
        %v1099 = vpop.f32.mrf.mxu0
        %v1100 = vadd.f32 0.0, %v1099
        %v1101 = vpop.f32.mrf.mxu0
        %1102 = vdwg.mxu0
        %v1103 = vsel %vm681, %v1100, -inf
        %1104 = vmax.xlane.f32.xlu0 %v1103
        %v1105 = vpop.xlane.xlu0 %1104
        %v1106 = vmax.f32 %v1071, %v1105
        %v1107 = vsub.f32 %v1071, %v1106
        %v1108 = vmul.f32 %v1107, 1.442695
        %v1109 = vpow.pop %v1108
        %v1110 = vsub.f32 %v1100, %v1106
        %v1111 = vmul.f32 %v1110, 1.442695
        %v1112 = vpow.pop %v1111
        %v1113 = vmul.f32 %v1109, %v1072
        %v1114 = vsel %vm681, %v1112, 0.0
        %1115 = vadd.xlane.f32.xlu0 %v1114
        %v1116 = vpop.xlane.xlu0 %1115
        %v1117 = vadd.f32 %v1113, %v1116
        %v1118 = vmul.f32 %v1109, %v1073
        %v1119 = vpack.c.bf16 %v1112, %v1112
        %v1121 = vsel %vm681, %v1119, 0
        %v1124 = vsel %vm817, %v1080, 0
        %1126 = vmatpush.bf16.msra.mxu0 0
        %1127 = vmatpush.bf16.msra.mxu0 0
        %1128 = vmatpush.bf16.msra.mxu0 0
        %1129 = vmatpush.bf16.msra.mxu0 0
        %1130 = vmatpush.bf16.msra.mxu0 0
        %1131 = vmatpush.bf16.msra.mxu0 0
        %1132 = vmatpush.bf16.msra.mxu0 0
        %1133 = vmatpush.bf16.msra.mxu0 %v1124
        %1134 = vmatmul.bf16.gmra.mxu0 %v1121
        %v1135 = vpop.f32.mrf.mxu0
        %v1136 = vadd.f32 0.0, %v1135
        %v1137 = vpop.f32.mrf.mxu0
        %1138 = vdwg.mxu0
        %v1139 = vadd.f32 %v1118, %v1136
      $region91: #{decoder_llm_forward.2} parent=67 // loop_footer
        %s1068 = sadd.s32 %s1066, 1
      $region92: #{decoder_llm_forward.2} parent=67 // loop_footer_branch
        %1065 = sbr.rel target = $region88
      $region93: #{decoder_llm_forward.2} parent=67 // loop_exit
        _
      %s1140 = sadd.s32 %s28, 2
      %s1141 = smul.addr %s1140, 4
      %s1142 = scalar_lea.vmem [#allocation2], %s1141
      %v1143 = vld [vmem:[%s1142] sm:$0xf]
      %s1144 = smul.addr %s1140, 4
      %s1145 = scalar_lea.vmem [#allocation3], %s1144
      %v1146 = vld [vmem:[%s1145] sm:$0xf]
      %1148 = vrot.lane.b32.xlu0 %v1064, 112
      %v1149 = vpop.permute.xlu0 %1148
      %v1151 = vsel %vm681, %v1149, 0
      %v1154 = vsel %vm681, %v1143, 0
      %1156 = vmatpush.bf16.xpose.msra.mxu0 0
      %1157 = vmatpush.bf16.xpose.msra.mxu0 0
      %1158 = vmatpush.bf16.xpose.msra.mxu0 0
      %1159 = vmatpush.bf16.xpose.msra.mxu0 0
      %1160 = vmatpush.bf16.xpose.msra.mxu0 0
      %1161 = vmatpush.bf16.xpose.msra.mxu0 0
      %1162 = vmatpush.bf16.xpose.msra.mxu0 0
      %1163 = vmatpush.bf16.xpose.msra.mxu0 %v1154
      %1164 = vmatmul.bf16.gmra.mxu0 %v1151
      %v1165 = vpop.f32.mrf.mxu0
      %v1166 = vadd.f32 0.0, %v1165
      %v1167 = vpop.f32.mrf.mxu0
      %1168 = vdwg.mxu0
      %v1169 = vsel %vm679, %v1166, -1e+30
      %v1170 = vsel %vm681, %v1169, -inf
      %1171 = vmax.xlane.f32.xlu0 %v1170
      %v1172 = vpop.xlane.xlu0 %1171
      %v1173 = vmax.f32 %v1071, %v1172
      %v1174 = vsub.f32 %v1071, %v1173
      %v1175 = vmul.f32 %v1174, 1.442695
      %v1176 = vpow.pop %v1175
      %v1177 = vsub.f32 %v1169, %v1173
      %v1178 = vmul.f32 %v1177, 1.442695
      %v1179 = vpow.pop %v1178
      %v1180 = vmul.f32 %v1176, %v1072
      %v1181 = vsel %vm681, %v1179, 0.0
      %1182 = vadd.xlane.f32.xlu0 %v1181
      %v1183 = vpop.xlane.xlu0 %1182
      %v1184 = vadd.f32 %v1180, %v1183
      %v1185 = vmul.f32 %v1176, %v1073
      %v1186 = vpack.c.bf16 %v1179, %v1179
      %v1188 = vsel %vm681, %v1186, 0
      %v1191 = vsel %vm817, %v1146, 0
      %1193 = vmatpush.bf16.msra.mxu0 0
      %1194 = vmatpush.bf16.msra.mxu0 0
      %1195 = vmatpush.bf16.msra.mxu0 0
      %1196 = vmatpush.bf16.msra.mxu0 0
      %1197 = vmatpush.bf16.msra.mxu0 0
      %1198 = vmatpush.bf16.msra.mxu0 0
      %1199 = vmatpush.bf16.msra.mxu0 0
      %1200 = vmatpush.bf16.msra.mxu0 %v1191
      %1201 = vmatmul.bf16.gmra.mxu0 %v1188
      %v1202 = vpop.f32.mrf.mxu0
      %v1203 = vadd.f32 0.0, %v1202
      %v1204 = vpop.f32.mrf.mxu0
      %1205 = vdwg.mxu0
      %v1206 = vadd.f32 %v1185, %v1203
      %v1207 = vrcp.pop %v1184
      %v1208 = vmul.f32 %v1206, %v1207
      %v1209 = vpack.c.bf16 %v1208, %v1208
      %s1210 = scalar_lea.vmem %s5, 8
      %v1211 = vld [vmem:[%s1210] sm:$0xf]
      %v1213 = vsel %vm681, %v1209, 0
      %v1216 = vsel %vm817, %v1211, 0
      %1218 = vmatpush.bf16.msra.mxu0 0
      %1219 = vmatpush.bf16.msra.mxu0 0
      %1220 = vmatpush.bf16.msra.mxu0 0
      %1221 = vmatpush.bf16.msra.mxu0 0
      %1222 = vmatpush.bf16.msra.mxu0 0
      %1223 = vmatpush.bf16.msra.mxu0 0
      %1224 = vmatpush.bf16.msra.mxu0 0
      %1225 = vmatpush.bf16.msra.mxu0 %v1216
      %1226 = vmatmul.bf16.gmra.mxu0 %v1213
      %v1227 = vpop.f32.mrf.mxu0
      %v1228 = vadd.f32 0.0, %v1227
      %v1229 = vpop.f32.mrf.mxu0
      %1230 = vdwg.mxu0
      %v1231 = vadd.f32 %v1042, %v1228
      %1232 = vrot.lane.b32.xlu0 %v680, 104
      %v1233 = vpop.permute.xlu0 %1232
      %v1235 = vsel %vm681, %v1233, 0.0
      %1236 = vadd.xlane.f32.xlu0 %v1235
      %v1237 = vpop.xlane.xlu0 %1236
      %v1238 = vadd.f32 %v1237, 1e-12
      %v1239 = vrsqrt.pop %v1238
      %v1240 = vmul.f32 %v1239, %v1238
      %v1241 = vmul.f32 %v1240, %v1239
      %v1242 = vmul.f32 0.5, %v1241
      %v1243 = vsub.f32 1.5, %v1242
      %v1244 = vmul.f32 %v1239, %v1243
      %vm1245 = vweird.f32 %v1238
      %vm1246 = vweird.f32 %v1239
      %vm1247 = vmor %vm1245, %vm1246
      %v1248 = vsel %vm1247, %v1239, %v1244
      %v1249 = vmul.f32 %v672, %v1248
      %v1250 = vmul.f32 %v1249, 10.0
      %v1251 = vpack.c.bf16 %v1250, %v1250
      // While loop
      $region94: #{decoder_llm_forward.2} parent=67 // loop_pre_header
        _
      $region95: #{decoder_llm_forward.2} parent=67 // loop_header
        %s1253 = sphi 0, %s1255
        %p1254 = scmp.ge.s32.totalorder %s1253, %s28
        %v1258 = vphi -inf, %v1293
        %v1259 = vphi 0.0, %v1304
        %v1260 = vphi 0.0, %v1326
      $region96: #{decoder_llm_forward.2} parent=67 // loop_header_branch
        %1257 = sbr.rel (%p1254) target = $region100
      $region97: #{decoder_llm_forward.2} parent=67 // loop_body
        %s1261 = sadd.s32 %s1253, 3
        %s1262 = smul.addr %s1261, 4
        %s1263 = scalar_lea.vmem [#allocation2], %s1262
        %v1264 = vld [vmem:[%s1263] sm:$0xf]
        %s1265 = smul.addr %s1261, 4
        %s1266 = scalar_lea.vmem [#allocation3], %s1265
        %v1267 = vld [vmem:[%s1266] sm:$0xf]
        %1269 = vrot.lane.b32.xlu0 %v1251, 104
        %v1270 = vpop.permute.xlu0 %1269
        %v1272 = vsel %vm681, %v1270, 0
        %v1275 = vsel %vm681, %v1264, 0
        %1277 = vmatpush.bf16.xpose.msra.mxu0 0
        %1278 = vmatpush.bf16.xpose.msra.mxu0 0
        %1279 = vmatpush.bf16.xpose.msra.mxu0 0
        %1280 = vmatpush.bf16.xpose.msra.mxu0 0
        %1281 = vmatpush.bf16.xpose.msra.mxu0 0
        %1282 = vmatpush.bf16.xpose.msra.mxu0 0
        %1283 = vmatpush.bf16.xpose.msra.mxu0 0
        %1284 = vmatpush.bf16.xpose.msra.mxu0 %v1275
        %1285 = vmatmul.bf16.gmra.mxu0 %v1272
        %v1286 = vpop.f32.mrf.mxu0
        %v1287 = vadd.f32 0.0, %v1286
        %v1288 = vpop.f32.mrf.mxu0
        %1289 = vdwg.mxu0
        %v1290 = vsel %vm681, %v1287, -inf
        %1291 = vmax.xlane.f32.xlu0 %v1290
        %v1292 = vpop.xlane.xlu0 %1291
        %v1293 = vmax.f32 %v1258, %v1292
        %v1294 = vsub.f32 %v1258, %v1293
        %v1295 = vmul.f32 %v1294, 1.442695
        %v1296 = vpow.pop %v1295
        %v1297 = vsub.f32 %v1287, %v1293
        %v1298 = vmul.f32 %v1297, 1.442695
        %v1299 = vpow.pop %v1298
        %v1300 = vmul.f32 %v1296, %v1259
        %v1301 = vsel %vm681, %v1299, 0.0
        %1302 = vadd.xlane.f32.xlu0 %v1301
        %v1303 = vpop.xlane.xlu0 %1302
        %v1304 = vadd.f32 %v1300, %v1303
        %v1305 = vmul.f32 %v1296, %v1260
        %v1306 = vpack.c.bf16 %v1299, %v1299
        %v1308 = vsel %vm681, %v1306, 0
        %v1311 = vsel %vm817, %v1267, 0
        %1313 = vmatpush.bf16.msra.mxu0 0
        %1314 = vmatpush.bf16.msra.mxu0 0
        %1315 = vmatpush.bf16.msra.mxu0 0
        %1316 = vmatpush.bf16.msra.mxu0 0
        %1317 = vmatpush.bf16.msra.mxu0 0
        %1318 = vmatpush.bf16.msra.mxu0 0
        %1319 = vmatpush.bf16.msra.mxu0 0
        %1320 = vmatpush.bf16.msra.mxu0 %v1311
        %1321 = vmatmul.bf16.gmra.mxu0 %v1308
        %v1322 = vpop.f32.mrf.mxu0
        %v1323 = vadd.f32 0.0, %v1322
        %v1324 = vpop.f32.mrf.mxu0
        %1325 = vdwg.mxu0
        %v1326 = vadd.f32 %v1305, %v1323
      $region98: #{decoder_llm_forward.2} parent=67 // loop_footer
        %s1255 = sadd.s32 %s1253, 1
      $region99: #{decoder_llm_forward.2} parent=67 // loop_footer_branch
        %1252 = sbr.rel target = $region95
      $region100: #{decoder_llm_forward.2} parent=67 // loop_exit
        _
      %s1327 = sadd.s32 %s28, 3
      %s1328 = smul.addr %s1327, 4
      %s1329 = scalar_lea.vmem [#allocation2], %s1328
      %v1330 = vld [vmem:[%s1329] sm:$0xf]
      %s1331 = smul.addr %s1327, 4
      %s1332 = scalar_lea.vmem [#allocation3], %s1331
      %v1333 = vld [vmem:[%s1332] sm:$0xf]
      %1335 = vrot.lane.b32.xlu0 %v1251, 104
      %v1336 = vpop.permute.xlu0 %1335
      %v1338 = vsel %vm681, %v1336, 0
      %v1341 = vsel %vm681, %v1330, 0
      %1343 = vmatpush.bf16.xpose.msra.mxu0 0
      %1344 = vmatpush.bf16.xpose.msra.mxu0 0
      %1345 = vmatpush.bf16.xpose.msra.mxu0 0
      %1346 = vmatpush.bf16.xpose.msra.mxu0 0
      %1347 = vmatpush.bf16.xpose.msra.mxu0 0
      %1348 = vmatpush.bf16.xpose.msra.mxu0 0
      %1349 = vmatpush.bf16.xpose.msra.mxu0 0
      %1350 = vmatpush.bf16.xpose.msra.mxu0 %v1341
      %1351 = vmatmul.bf16.gmra.mxu0 %v1338
      %v1352 = vpop.f32.mrf.mxu0
      %v1353 = vadd.f32 0.0, %v1352
      %v1354 = vpop.f32.mrf.mxu0
      %1355 = vdwg.mxu0
      %v1356 = vsel %vm679, %v1353, -1e+30
      %v1357 = vsel %vm681, %v1356, -inf
      %1358 = vmax.xlane.f32.xlu0 %v1357
      %v1359 = vpop.xlane.xlu0 %1358
      %v1360 = vmax.f32 %v1258, %v1359
      %v1361 = vsub.f32 %v1258, %v1360
      %v1362 = vmul.f32 %v1361, 1.442695
      %v1363 = vpow.pop %v1362
      %v1364 = vsub.f32 %v1356, %v1360
      %v1365 = vmul.f32 %v1364, 1.442695
      %v1366 = vpow.pop %v1365
      %v1367 = vmul.f32 %v1363, %v1259
      %v1368 = vsel %vm681, %v1366, 0.0
      %1369 = vadd.xlane.f32.xlu0 %v1368
      %v1370 = vpop.xlane.xlu0 %1369
      %v1371 = vadd.f32 %v1367, %v1370
      %v1372 = vmul.f32 %v1363, %v1260
      %v1373 = vpack.c.bf16 %v1366, %v1366
      %v1375 = vsel %vm681, %v1373, 0
      %v1378 = vsel %vm817, %v1333, 0
      %1380 = vmatpush.bf16.msra.mxu0 0
      %1381 = vmatpush.bf16.msra.mxu0 0
      %1382 = vmatpush.bf16.msra.mxu0 0
      %1383 = vmatpush.bf16.msra.mxu0 0
      %1384 = vmatpush.bf16.msra.mxu0 0
      %1385 = vmatpush.bf16.msra.mxu0 0
      %1386 = vmatpush.bf16.msra.mxu0 0
      %1387 = vmatpush.bf16.msra.mxu0 %v1378
      %1388 = vmatmul.bf16.gmra.mxu0 %v1375
      %v1389 = vpop.f32.mrf.mxu0
      %v1390 = vadd.f32 0.0, %v1389
      %v1391 = vpop.f32.mrf.mxu0
      %1392 = vdwg.mxu0
      %v1393 = vadd.f32 %v1372, %v1390
      %v1394 = vrcp.pop %v1371
      %v1395 = vmul.f32 %v1393, %v1394
      %v1396 = vpack.c.bf16 %v1395, %v1395
      %s1397 = scalar_lea.vmem %s5, 12
      %v1398 = vld [vmem:[%s1397] sm:$0xf]
      %v1400 = vsel %vm681, %v1396, 0
      %v1403 = vsel %vm817, %v1398, 0
      %1405 = vmatpush.bf16.msra.mxu0 0
      %1406 = vmatpush.bf16.msra.mxu0 0
      %1407 = vmatpush.bf16.msra.mxu0 0
      %1408 = vmatpush.bf16.msra.mxu0 0
      %1409 = vmatpush.bf16.msra.mxu0 0
      %1410 = vmatpush.bf16.msra.mxu0 0
      %1411 = vmatpush.bf16.msra.mxu0 0
      %1412 = vmatpush.bf16.msra.mxu0 %v1403
      %1413 = vmatmul.bf16.gmra.mxu0 %v1400
      %v1414 = vpop.f32.mrf.mxu0
      %v1415 = vadd.f32 0.0, %v1414
      %v1416 = vpop.f32.mrf.mxu0
      %1417 = vdwg.mxu0
      %v1418 = vadd.f32 %v1231, %v1415
      %v1419 = vadd.f32 %v1418, %v640
      %v1420 = vpack.c.bf16 %v1419, %v1419
      %v1421 = vld [vmem:[%s6] sm:$0xf]
      %v1422 = vld [vmem:[%s6 + $0x4] sm:$0xf]
      %v1423 = vld [vmem:[%s6 + $0x8] sm:$0xf]
      %v1424 = vld [vmem:[%s6 + $0xc] sm:$0xf]
      %v1425 = vld [vmem:[%s7] sm:$0x1]
      %v1427 = vperm.slane %v1425, 0
      %v1433 = vunpack.c.l.b16 %v1421
      %v1434 = vunpack.c.l.b16 %v1422
      %v1435 = vunpack.c.l.b16 %v1423
      %v1436 = vunpack.c.l.b16 %v1424
      %v1437 = vpack.c.b16 %v1434, %v1433
      %v1438 = vpack.c.b16 %v1436, %v1435
      %v1442 = vsel %vm658, %v1420, 0
      %1444 = vmatpush.bf16.msra.mxu0 0
      %1445 = vmatpush.bf16.msra.mxu0 0
      %1446 = vmatpush.bf16.msra.mxu0 0
      %1447 = vmatpush.bf16.msra.mxu0 0
      %1448 = vmatpush.bf16.msra.mxu0 0
      %1449 = vmatpush.bf16.msra.mxu0 0
      %1450 = vmatpush.bf16.msra.mxu0 %v1438
      %1451 = vmatpush.bf16.msra.mxu0 %v1437
      %1452 = vmatmul.bf16.gmra.mxu0 %v1442
      %v1453 = vpop.f32.mrf.mxu0
      %v1454 = vadd.f32 %v1427, %v1453
      %v1455 = vpop.f32.mrf.mxu0
      %1456 = vdwg.mxu0
      %v1457 = vxor.u32 %v1454, 2147483648
      %v1458 = vmul.f32 %v1457, 1.442695
      %v1459 = vpow.pop %v1458
      %v1460 = vadd.f32 %v1459, 1.0
      %v1461 = vrcp.pop %v1460
      %v1462 = vmul.f32 %v1460, %v1461
      %v1463 = vsub.f32 1.0, %v1462
      %v1464 = vmul.f32 %v1461, %v1463
      %v1465 = vadd.f32 %v1461, %v1464
      %vm1466 = vweird.f32 %v1460
      %vm1467 = vweird.f32 %v1461
      %vm1468 = vmor %vm1466, %vm1467
      %v1469 = vsel %vm1468, %v1461, %v1465
      %v1470 = vand.u32 2147483647, %v1460
      %vm1471 = vcmp.eq.f32.partialorder %v1470, 8.507059e+37
      %v1472 = vand.u32 %v1460, 2147483648
      %v1473 = vor.u32 1.1754944e-38, %v1472
      %v1474 = vsel %vm1471, %v1473, %v1469
      %v1475 = vmul.f32 1.0, %v1474
      %v1476 = vmul.f32 %v1454, %v1475
      %1477 = vadd.xlane.f32.xlu0 %v1476
      %v1478 = vpop.xlane.xlu0 %1477
      %v1479 = vrcp.pop 128.0
      %v1480 = vmul.f32 128.0, %v1479
      %v1481 = vsub.f32 1.0, %v1480
      %v1482 = vmul.f32 %v1479, %v1481
      %v1483 = vadd.f32 %v1479, %v1482
      %vm1484 = vweird.f32 %v1479
      %v1485 = vsel %vm1484, %v1479, %v1483
      %v1486 = vmul.f32 %v1478, %v1485
      %v1487 = vsub.f32 %v1476, %v1486
      %v1488 = vmul.f32 %v1487, %v1487
      %1489 = vadd.xlane.f32.xlu0 %v1488
      %v1490 = vpop.xlane.xlu0 %1489
      %v1491 = vmul.f32 %v1490, %v1485
      %v1492 = vadd.f32 %v1491, 1e-05
      %v1493 = vrsqrt.pop %v1492
      %v1494 = vmul.f32 %v1493, %v1492
      %v1495 = vmul.f32 %v1494, %v1493
      %v1496 = vmul.f32 0.5, %v1495
      %v1497 = vsub.f32 1.5, %v1496
      %v1498 = vmul.f32 %v1493, %v1497
      %vm1499 = vweird.f32 %v1492
      %vm1500 = vweird.f32 %v1493
      %vm1501 = vmor %vm1499, %vm1500
      %v1502 = vsel %vm1501, %v1493, %v1498
      %v1503 = vmul.f32 %v1487, %v1502
      %v1504 = vld [vmem:[%s8] sm:$0x1]
      %v1506 = vperm.slane %v1504, 0
      %v1508 = vmul.f32 %v1503, %v1506
      %v1509 = vld [vmem:[%s9] sm:$0x1]
      %v1511 = vperm.slane %v1509, 0
      %v1513 = vadd.f32 %v1508, %v1511
      %v1514 = vpack.c.bf16 %v1513, %v1513
      %v1515 = vld [vmem:[%s10] sm:$0xf]
      %v1516 = vld [vmem:[%s10 + $0x4] sm:$0xf]
      %v1517 = vld [vmem:[%s10 + $0x8] sm:$0xf]
      %v1518 = vld [vmem:[%s10 + $0xc] sm:$0xf]
      %v1519 = vld [vmem:[%s10 + $0x10] sm:$0xf]
      %v1520 = vld [vmem:[%s10 + $0x14] sm:$0xf]
      %v1521 = vld [vmem:[%s10 + $0x18] sm:$0xf]
      %v1522 = vld [vmem:[%s10 + $0x1c] sm:$0xf]
      %v1523 = vld [vmem:[%s10 + $0x20] sm:$0xf]
      %v1524 = vld [vmem:[%s10 + $0x24] sm:$0xf]
      %v1525 = vld [vmem:[%s10 + $0x28] sm:$0xf]
      %v1526 = vld [vmem:[%s10 + $0x2c] sm:$0xf]
      %v1527 = vld [vmem:[%s10 + $0x30] sm:$0xf]
      %v1528 = vld [vmem:[%s10 + $0x34] sm:$0xf]
      %v1529 = vld [vmem:[%s10 + $0x38] sm:$0xf]
      %v1530 = vld [vmem:[%s10 + $0x3c] sm:$0xf]
      %v1531 = vld [vmem:[%s11] sm:$0x1]
      %v1533 = vperm.slane %v1531, 0
      %v1551 = vunpack.c.l.b16 %v1515
      %v1552 = vunpack.c.l.b16 %v1516
      %v1553 = vunpack.c.l.b16 %v1517
      %v1554 = vunpack.c.l.b16 %v1518
      %v1555 = vunpack.c.l.b16 %v1519
      %v1556 = vunpack.c.l.b16 %v1520
      %v1557 = vunpack.c.l.b16 %v1521
      %v1558 = vunpack.c.l.b16 %v1522
      %v1559 = vunpack.c.l.b16 %v1523
      %v1560 = vunpack.c.l.b16 %v1524
      %v1561 = vunpack.c.l.b16 %v1525
      %v1562 = vunpack.c.l.b16 %v1526
      %v1563 = vunpack.c.l.b16 %v1527
      %v1564 = vunpack.c.l.b16 %v1528
      %v1565 = vunpack.c.l.b16 %v1529
      %v1566 = vunpack.c.l.b16 %v1530
      %v1567 = vpack.c.b16 %v1552, %v1551
      %v1568 = vpack.c.b16 %v1554, %v1553
      %v1569 = vpack.c.b16 %v1556, %v1555
      %v1570 = vpack.c.b16 %v1558, %v1557
      %v1571 = vpack.c.b16 %v1560, %v1559
      %v1572 = vpack.c.b16 %v1562, %v1561
      %v1573 = vpack.c.b16 %v1564, %v1563
      %v1574 = vpack.c.b16 %v1566, %v1565
      %1583 = vmatpush.bf16.msra.mxu0 %v1574
      %1584 = vmatpush.bf16.msra.mxu0 %v1573
      %1585 = vmatpush.bf16.msra.mxu0 %v1572
      %1586 = vmatpush.bf16.msra.mxu0 %v1571
      %1587 = vmatpush.bf16.msra.mxu0 %v1570
      %1588 = vmatpush.bf16.msra.mxu0 %v1569
      %1589 = vmatpush.bf16.msra.mxu0 %v1568
      %1590 = vmatpush.bf16.msra.mxu0 %v1567
      %1591 = vmatmul.bf16.gmra.mxu0 %v1514
      %v1592 = vpop.f32.mrf.mxu0
      %v1593 = vadd.f32 %v1533, %v1592
      %v1594 = vpop.f32.mrf.mxu0
      %1595 = vdwg.mxu0
      %v1596 = vadd.f32 %v1419, %v1593
      %1597 = vst.msk [vmem:[%s456] sm:$0xff] %vm658, %v1596
      %p1598 = scmp.lt.s32.totalorder %s27, 1
      %s1599 = scalar_select %p1598, %s27, 1
      %p1600 = scmp.lt.s32.totalorder %s28, 0
      %s1601 = scalar_select %p1600, %s28, 0
      %s1602 = sadd.s32 %s1601, %s1599
      %s1603 = smul.addr %s1602, 8
      %s1604 = scalar_lea.vmem %s12, %s1603
      // Predicated region
      $region101: #{decoder_llm_forward.2} parent=67 // pred_check
        %p1605 = pneg %p319
      $region102: #{decoder_llm_forward.2} parent=67 // pred_check_branch
        %1607 = sbr.rel (%p1605) target = $region104
      $region103: #{decoder_llm_forward.2} parent=67 // pred_region
        _
      $region104: #{decoder_llm_forward.2} parent=67 // pred_fallthru
        _
    $region68: #{decoder_llm_forward.2} parent=5 // pred_fallthru
      _
    %p1608 = scmp.le.s32.totalorder 2, %s18
    // Predicated region
    $region105: #{decoder_llm_forward.2} parent=5 // pred_check
      %p1609 = pneg %p1608
    $region106: #{decoder_llm_forward.2} parent=5 // pred_check_branch
      %1611 = sbr.rel (%p1609) target = $region108
    $region107: #{decoder_llm_forward.2} parent=5 // pred_region
      %s1612 = ssub.s32 %s18, 2
      // Predicated region
      $region109: #{decoder_llm_forward.2} parent=107 // pred_check
        %p1613 = pneg %p325
      $region110: #{decoder_llm_forward.2} parent=107 // pred_check_branch
        %1615 = sbr.rel (%p1613) target = $region112
      $region111: #{decoder_llm_forward.2} parent=107 // pred_region
        %p1616 = scmp.lt.s32.totalorder %s29, 1
        %s1617 = scalar_select %p1616, %s29, 1
        %p1618 = scmp.lt.s32.totalorder %s30, 0
        %s1619 = scalar_select %p1618, %s30, 0
        %s1620 = sadd.s32 %s1619, %s1617
        %s1621 = smul.addr %s1620, 8
        %s1622 = scalar_lea.vmem %s12, %s1621
      $region112: #{decoder_llm_forward.2} parent=107 // pred_fallthru
        _
    $region108: #{decoder_llm_forward.2} parent=5 // pred_fallthru
      _
  $region6: #{decoder_llm_forward.2} parent=0 // loop_footer
    %s22 = sadd.s32 1, %s18
  $region7: #{decoder_llm_forward.2} parent=0 // loop_footer_branch
    %17 = sbr.rel target = $region3
  $region8: #{decoder_llm_forward.2} parent=0 // loop_exit
    _

// kernel: decoder_llm_forward.3
$region0: #{decoder_llm_forward.3}
  #allocation0 [shape = 'u32[]', space=smem, size = 0x4, offset = 0x4, fixed_abs, tag = 'smem constant byte address 0x4 - core index']
  #allocation1 [shape = 'u32[72,128]{1,0:T(1,128)}', space=vmem, size = 0x9000, scoped, tag = 'internal scratch']
  #allocation2 [shape = 'bf16[4,1,8,8]{3,2,1,0:T(8,128)(2,1)}', space=vmem, size = 0x2000, scoped, tag = 'scratch operand']
  #allocation3 [shape = 'bf16[4,1,8,8]{3,2,1,0:T(8,128)(2,1)}', space=vmem, size = 0x2000, scoped, tag = 'scratch operand']
  %s0 = inlined_call_operand.vmem [shape: f32[2,8,32], index: 0, kind: input, shape index: {}, may-alias: {0,1}]
  %s1 = inlined_call_operand.vmem [shape: f32[2,8,32], index: 1, kind: input, shape index: {}, may-alias: {0,1}]
  %s2 = inlined_call_operand.vmem [shape: bf16[32,32], index: 2, kind: input, shape index: {}]
  %s3 = inlined_call_operand.vmem [shape: bf16[32,32], index: 3, kind: input, shape index: {}]
  %s4 = inlined_call_operand.vmem [shape: bf16[32,32], index: 4, kind: input, shape index: {}]
  %s5 = inlined_call_operand.vmem [shape: bf16[4,8,32], index: 5, kind: input, shape index: {}]
  %s6 = inlined_call_operand.vmem [shape: bf16[32,128], index: 6, kind: input, shape index: {}]
  %s7 = inlined_call_operand.vmem [shape: f32[1,128], index: 7, kind: input, shape index: {}]
  %s8 = inlined_call_operand.vmem [shape: f32[1,128], index: 8, kind: input, shape index: {}]
  %s9 = inlined_call_operand.vmem [shape: f32[1,128], index: 9, kind: input, shape index: {}]
  %s10 = inlined_call_operand.vmem [shape: bf16[128,32], index: 10, kind: input, shape index: {}]
  %s11 = inlined_call_operand.vmem [shape: f32[1,32], index: 11, kind: input, shape index: {}]
  %s12 = inlined_call_operand.hbm [shape: f32[2,8,32], index: 12, kind: output, shape index: {}]
  %s13 = sld [smem:[#allocation0]]
  $region113: #{decoder_llm_forward.3} parent=0
    _
  %s15 = ssub.s32 1, %s13
  %s16 = scalar_select 0, %s15, %s13
  $region1: #{decoder_llm_forward.3} parent=0
    #allocation4 [shape = 'u8[8192]{0}', space=vmem, size = 0x2000, scoped, tag = 'output window, operand 0']
    #allocation5 [shape = 's32[2]{0}', space=sflag, size = 0x8, scoped, tag = 'scoped memory for decoder_llm_forward.3']
    %17 = vsyncpa [#allocation5], 0
    %s18 = scalar_lea.sflag [#allocation5], 1
    %19 = vsyncpa %s18, 0
    loop: start=0, step=1, limit=4
    $region2: #{decoder_llm_forward.3} parent=1 // loop_pre_header
      _
    $region3: #{decoder_llm_forward.3} parent=1 // loop_header
      %s21 = sphi 0, %s25
      %p22 = scmp.ge.s32.totalorder %s21, 4
      %s28 = sphi 0, %s40
      %s29 = sphi 0, %s36
      %s30 = sphi 0, %s28
      %s31 = sphi 0, %s29
      %s32 = sphi 0, %s30
      %s33 = sphi 0, %s31
      %s45 = sphi 0, %s47
      %s48 = sphi 0, %s45
      %s49 = sphi 0, %s48
      %s65 = sphi 0, %s49
      %s71 = sphi 0, %s73
      %s74 = sphi 0, %s71
      %s75 = sphi 0, %s74
      %s91 = sphi 0, %s75
      %s95 = sphi 0, %s95
      %s97 = sphi 0, %s95
      %s98 = sphi 0, %s97
      %s112 = sphi 0, %s98
      %s116 = sphi 0, %s116
      %s118 = sphi 0, %s116
      %s119 = sphi 0, %s118
      %s133 = sphi 0, %s119
      %s137 = sphi 0, %s137
      %s139 = sphi 0, %s137
      %s140 = sphi 0, %s139
      %s154 = sphi 0, %s140
      %s158 = sphi 0, %s158
      %s160 = sphi 0, %s158
      %s161 = sphi 0, %s160
      %s175 = sphi 0, %s161
      %s179 = sphi 0, %s179
      %s181 = sphi 0, %s179
      %s182 = sphi 0, %s181
      %s196 = sphi 0, %s182
      %s200 = sphi 0, %s200
      %s202 = sphi 0, %s200
      %s203 = sphi 0, %s202
      %s217 = sphi 0, %s203
      %s221 = sphi 0, %s221
      %s223 = sphi 0, %s221
      %s224 = sphi 0, %s223
      %s238 = sphi 0, %s224
      %s242 = sphi 0, %s242
      %s244 = sphi 0, %s242
      %s245 = sphi 0, %s244
      %s259 = sphi 0, %s245
      %s263 = sphi 0, %s263
      %s265 = sphi 0, %s263
      %s266 = sphi 0, %s265
      %s280 = sphi 0, %s266
      %s284 = sphi 0, %s284
      %s286 = sphi 0, %s284
      %s287 = sphi 0, %s286
      %s301 = sphi 0, %s287
      %s309 = sphi 0, %s311
      %s312 = sphi 0, %s309
      %s313 = sphi 0, %s312
      %s329 = sphi 0, %s313
    $region4: #{decoder_llm_forward.3} parent=1 // loop_header_branch
      %24 = sbr.rel (%p22) target = $region8
    $region5: #{decoder_llm_forward.3} parent=1 // loop_body
      %s26 = ssub.s32 %s21, 1
      %s27 = ssub.s32 %s21, 2
      %s34 = sadd.s32 1, %s29
      %p35 = scmp.ge.s32.totalorder %s34, 1
      %s36 = scalar_select %p35, 0, %s34
      %s37 = sadd.s32 1, %s28
      %s38 = scalar_select %p35, %s37, %s28
      %p39 = scmp.ge.s32.totalorder %s38, 2
      %s40 = scalar_select %p39, 0, %s38
      %s41 = ssub.s32 %s28, %s40
      %s42 = ssub.s32 %s29, %s36
      %s43 = sor.u32 %s41, %s42
      %p44 = scmp.eq.s32.totalorder %s43, 0
      %s46 = sadd.s32 %s45, 1
      %s47 = scalar_select %p44, %s45, %s46
      %p50 = pneg %p44
      %p51 = scmp.eq.s32.totalorder %s21, 1
      %p52 = por %p50, %p51
      %p53 = scmp.ne.s32.totalorder %s45, %s48
      %p54 = scmp.eq.s32.totalorder %s21, 0
      %p55 = por %p53, %p54
      %p56 = scmp.ne.s32.totalorder %s45, %s48
      %p57 = scmp.eq.s32.totalorder %s26, 1
      %p58 = por %p56, %p57
      %p59 = scmp.ne.s32.totalorder %s48, %s49
      %p60 = scmp.eq.s32.totalorder %s26, 0
      %p61 = por %p59, %p60
      %p62 = scmp.ne.s32.totalorder %s48, %s49
      %p63 = scmp.eq.s32.totalorder %s27, 1
      %p64 = por %p62, %p63
      %p66 = scmp.ne.s32.totalorder %s49, %s65
      %p67 = scmp.eq.s32.totalorder %s27, 0
      %p68 = por %p66, %p67
      %s69 = ssub.s32 %s28, %s40
      %p70 = scmp.eq.s32.totalorder %s69, 0
      %s72 = sadd.s32 %s71, 1
      %s73 = scalar_select %p70, %s71, %s72
      %p76 = pneg %p70
      %p77 = scmp.eq.s32.totalorder %s21, 1
      %p78 = por %p76, %p77
      %p79 = scmp.ne.s32.totalorder %s71, %s74
      %p80 = scmp.eq.s32.totalorder %s21, 0
      %p81 = por %p79, %p80
      %p82 = scmp.ne.s32.totalorder %s71, %s74
      %p83 = scmp.eq.s32.totalorder %s26, 1
      %p84 = por %p82, %p83
      %p85 = scmp.ne.s32.totalorder %s74, %s75
      %p86 = scmp.eq.s32.totalorder %s26, 0
      %p87 = por %p85, %p86
      %p88 = scmp.ne.s32.totalorder %s74, %s75
      %p89 = scmp.eq.s32.totalorder %s27, 1
      %p90 = por %p88, %p89
      %p92 = scmp.ne.s32.totalorder %s75, %s91
      %p93 = scmp.eq.s32.totalorder %s27, 0
      %p94 = por %p92, %p93
      %s96 = sadd.s32 %s95, 1
      %p99 = scmp.eq.s32.totalorder %s21, 1
      %p100 = scmp.ne.s32.totalorder %s95, %s97
      %p101 = scmp.eq.s32.totalorder %s21, 0
      %p102 = por %p100, %p101
      %p103 = scmp.ne.s32.totalorder %s95, %s97
      %p104 = scmp.eq.s32.totalorder %s26, 1
      %p105 = por %p103, %p104
      %p106 = scmp.ne.s32.totalorder %s97, %s98
      %p107 = scmp.eq.s32.totalorder %s26, 0
      %p108 = por %p106, %p107
      %p109 = scmp.ne.s32.totalorder %s97, %s98
      %p110 = scmp.eq.s32.totalorder %s27, 1
      %p111 = por %p109, %p110
      %p113 = scmp.ne.s32.totalorder %s98, %s112
      %p114 = scmp.eq.s32.totalorder %s27, 0
      %p115 = por %p113, %p114
      %s117 = sadd.s32 %s116, 1
      %p120 = scmp.eq.s32.totalorder %s21, 1
      %p121 = scmp.ne.s32.totalorder %s116, %s118
      %p122 = scmp.eq.s32.totalorder %s21, 0
      %p123 = por %p121, %p122
      %p124 = scmp.ne.s32.totalorder %s116, %s118
      %p125 = scmp.eq.s32.totalorder %s26, 1
      %p126 = por %p124, %p125
      %p127 = scmp.ne.s32.totalorder %s118, %s119
      %p128 = scmp.eq.s32.totalorder %s26, 0
      %p129 = por %p127, %p128
      %p130 = scmp.ne.s32.totalorder %s118, %s119
      %p131 = scmp.eq.s32.totalorder %s27, 1
      %p132 = por %p130, %p131
      %p134 = scmp.ne.s32.totalorder %s119, %s133
      %p135 = scmp.eq.s32.totalorder %s27, 0
      %p136 = por %p134, %p135
      %s138 = sadd.s32 %s137, 1
      %p141 = scmp.eq.s32.totalorder %s21, 1
      %p142 = scmp.ne.s32.totalorder %s137, %s139
      %p143 = scmp.eq.s32.totalorder %s21, 0
      %p144 = por %p142, %p143
      %p145 = scmp.ne.s32.totalorder %s137, %s139
      %p146 = scmp.eq.s32.totalorder %s26, 1
      %p147 = por %p145, %p146
      %p148 = scmp.ne.s32.totalorder %s139, %s140
      %p149 = scmp.eq.s32.totalorder %s26, 0
      %p150 = por %p148, %p149
      %p151 = scmp.ne.s32.totalorder %s139, %s140
      %p152 = scmp.eq.s32.totalorder %s27, 1
      %p153 = por %p151, %p152
      %p155 = scmp.ne.s32.totalorder %s140, %s154
      %p156 = scmp.eq.s32.totalorder %s27, 0
      %p157 = por %p155, %p156
      %s159 = sadd.s32 %s158, 1
      %p162 = scmp.eq.s32.totalorder %s21, 1
      %p163 = scmp.ne.s32.totalorder %s158, %s160
      %p164 = scmp.eq.s32.totalorder %s21, 0
      %p165 = por %p163, %p164
      %p166 = scmp.ne.s32.totalorder %s158, %s160
      %p167 = scmp.eq.s32.totalorder %s26, 1
      %p168 = por %p166, %p167
      %p169 = scmp.ne.s32.totalorder %s160, %s161
      %p170 = scmp.eq.s32.totalorder %s26, 0
      %p171 = por %p169, %p170
      %p172 = scmp.ne.s32.totalorder %s160, %s161
      %p173 = scmp.eq.s32.totalorder %s27, 1
      %p174 = por %p172, %p173
      %p176 = scmp.ne.s32.totalorder %s161, %s175
      %p177 = scmp.eq.s32.totalorder %s27, 0
      %p178 = por %p176, %p177
      %s180 = sadd.s32 %s179, 1
      %p183 = scmp.eq.s32.totalorder %s21, 1
      %p184 = scmp.ne.s32.totalorder %s179, %s181
      %p185 = scmp.eq.s32.totalorder %s21, 0
      %p186 = por %p184, %p185
      %p187 = scmp.ne.s32.totalorder %s179, %s181
      %p188 = scmp.eq.s32.totalorder %s26, 1
      %p189 = por %p187, %p188
      %p190 = scmp.ne.s32.totalorder %s181, %s182
      %p191 = scmp.eq.s32.totalorder %s26, 0
      %p192 = por %p190, %p191
      %p193 = scmp.ne.s32.totalorder %s181, %s182
      %p194 = scmp.eq.s32.totalorder %s27, 1
      %p195 = por %p193, %p194
      %p197 = scmp.ne.s32.totalorder %s182, %s196
      %p198 = scmp.eq.s32.totalorder %s27, 0
      %p199 = por %p197, %p198
      %s201 = sadd.s32 %s200, 1
      %p204 = scmp.eq.s32.totalorder %s21, 1
      %p205 = scmp.ne.s32.totalorder %s200, %s202
      %p206 = scmp.eq.s32.totalorder %s21, 0
      %p207 = por %p205, %p206
      %p208 = scmp.ne.s32.totalorder %s200, %s202
      %p209 = scmp.eq.s32.totalorder %s26, 1
      %p210 = por %p208, %p209
      %p211 = scmp.ne.s32.totalorder %s202, %s203
      %p212 = scmp.eq.s32.totalorder %s26, 0
      %p213 = por %p211, %p212
      %p214 = scmp.ne.s32.totalorder %s202, %s203
      %p215 = scmp.eq.s32.totalorder %s27, 1
      %p216 = por %p214, %p215
      %p218 = scmp.ne.s32.totalorder %s203, %s217
      %p219 = scmp.eq.s32.totalorder %s27, 0
      %p220 = por %p218, %p219
      %s222 = sadd.s32 %s221, 1
      %p225 = scmp.eq.s32.totalorder %s21, 1
      %p226 = scmp.ne.s32.totalorder %s221, %s223
      %p227 = scmp.eq.s32.totalorder %s21, 0
      %p228 = por %p226, %p227
      %p229 = scmp.ne.s32.totalorder %s221, %s223
      %p230 = scmp.eq.s32.totalorder %s26, 1
      %p231 = por %p229, %p230
      %p232 = scmp.ne.s32.totalorder %s223, %s224
      %p233 = scmp.eq.s32.totalorder %s26, 0
      %p234 = por %p232, %p233
      %p235 = scmp.ne.s32.totalorder %s223, %s224
      %p236 = scmp.eq.s32.totalorder %s27, 1
      %p237 = por %p235, %p236
      %p239 = scmp.ne.s32.totalorder %s224, %s238
      %p240 = scmp.eq.s32.totalorder %s27, 0
      %p241 = por %p239, %p240
      %s243 = sadd.s32 %s242, 1
      %p246 = scmp.eq.s32.totalorder %s21, 1
      %p247 = scmp.ne.s32.totalorder %s242, %s244
      %p248 = scmp.eq.s32.totalorder %s21, 0
      %p249 = por %p247, %p248
      %p250 = scmp.ne.s32.totalorder %s242, %s244
      %p251 = scmp.eq.s32.totalorder %s26, 1
      %p252 = por %p250, %p251
      %p253 = scmp.ne.s32.totalorder %s244, %s245
      %p254 = scmp.eq.s32.totalorder %s26, 0
      %p255 = por %p253, %p254
      %p256 = scmp.ne.s32.totalorder %s244, %s245
      %p257 = scmp.eq.s32.totalorder %s27, 1
      %p258 = por %p256, %p257
      %p260 = scmp.ne.s32.totalorder %s245, %s259
      %p261 = scmp.eq.s32.totalorder %s27, 0
      %p262 = por %p260, %p261
      %s264 = sadd.s32 %s263, 1
      %p267 = scmp.eq.s32.totalorder %s21, 1
      %p268 = scmp.ne.s32.totalorder %s263, %s265
      %p269 = scmp.eq.s32.totalorder %s21, 0
      %p270 = por %p268, %p269
      %p271 = scmp.ne.s32.totalorder %s263, %s265
      %p272 = scmp.eq.s32.totalorder %s26, 1
      %p273 = por %p271, %p272
      %p274 = scmp.ne.s32.totalorder %s265, %s266
      %p275 = scmp.eq.s32.totalorder %s26, 0
      %p276 = por %p274, %p275
      %p277 = scmp.ne.s32.totalorder %s265, %s266
      %p278 = scmp.eq.s32.totalorder %s27, 1
      %p279 = por %p277, %p278
      %p281 = scmp.ne.s32.totalorder %s266, %s280
      %p282 = scmp.eq.s32.totalorder %s27, 0
      %p283 = por %p281, %p282
      %s285 = sadd.s32 %s284, 1
      %p288 = scmp.eq.s32.totalorder %s21, 1
      %p289 = scmp.ne.s32.totalorder %s284, %s286
      %p290 = scmp.eq.s32.totalorder %s21, 0
      %p291 = por %p289, %p290
      %p292 = scmp.ne.s32.totalorder %s284, %s286
      %p293 = scmp.eq.s32.totalorder %s26, 1
      %p294 = por %p292, %p293
      %p295 = scmp.ne.s32.totalorder %s286, %s287
      %p296 = scmp.eq.s32.totalorder %s26, 0
      %p297 = por %p295, %p296
      %p298 = scmp.ne.s32.totalorder %s286, %s287
      %p299 = scmp.eq.s32.totalorder %s27, 1
      %p300 = por %p298, %p299
      %p302 = scmp.ne.s32.totalorder %s287, %s301
      %p303 = scmp.eq.s32.totalorder %s27, 0
      %p304 = por %p302, %p303
      %s305 = ssub.s32 %s28, %s40
      %s306 = ssub.s32 %s29, %s36
      %s307 = sor.u32 %s305, %s306
      %p308 = scmp.eq.s32.totalorder %s307, 0
      %s310 = sadd.s32 %s309, 1
      %s311 = scalar_select %p308, %s309, %s310
      %p314 = pneg %p308
      %p315 = scmp.eq.s32.totalorder %s21, 1
      %p316 = por %p314, %p315
      %p317 = scmp.ne.s32.totalorder %s309, %s312
      %p318 = scmp.eq.s32.totalorder %s21, 0
      %p319 = por %p317, %p318
      %p320 = scmp.ne.s32.totalorder %s309, %s312
      %p321 = scmp.eq.s32.totalorder %s26, 1
      %p322 = por %p320, %p321
      %p323 = scmp.ne.s32.totalorder %s312, %s313
      %p324 = scmp.eq.s32.totalorder %s26, 0
      %p325 = por %p323, %p324
      %p326 = scmp.ne.s32.totalorder %s312, %s313
      %p327 = scmp.eq.s32.totalorder %s27, 1
      %p328 = por %p326, %p327
      %p330 = scmp.ne.s32.totalorder %s313, %s329
      %p331 = scmp.eq.s32.totalorder %s27, 0
      %p332 = por %p330, %p331
      %p333 = scmp.le.s32.totalorder 1, %s21
      %p334 = scmp.lt.s32.totalorder %s21, 3
      %p335 = pnand %p333, %p334
      %p336 = pneg %p335
      // Predicated region
      $region9: #{decoder_llm_forward.3} parent=5 // pred_check
        _
      $region10: #{decoder_llm_forward.3} parent=5 // pred_check_branch
        %338 = sbr.rel (%p335) target = $region12
      $region11: #{decoder_llm_forward.3} parent=5 // pred_region
        %s339 = ssub.s32 %s21, 1
        // Predicated region
        $region13: #{decoder_llm_forward.3} parent=11 // pred_check
          %p340 = pneg %p108
        $region14: #{decoder_llm_forward.3} parent=11 // pred_check_branch
          %342 = sbr.rel (%p340) target = $region16
        $region15: #{decoder_llm_forward.3} parent=11 // pred_region
          _
        $region16: #{decoder_llm_forward.3} parent=11 // pred_fallthru
          _
        // Predicated region
        $region17: #{decoder_llm_forward.3} parent=11 // pred_check
          %p343 = pneg %p129
        $region18: #{decoder_llm_forward.3} parent=11 // pred_check_branch
          %345 = sbr.rel (%p343) target = $region20
        $region19: #{decoder_llm_forward.3} parent=11 // pred_region
          _
        $region20: #{decoder_llm_forward.3} parent=11 // pred_fallthru
          _
        // Predicated region
        $region21: #{decoder_llm_forward.3} parent=11 // pred_check
          %p346 = pneg %p150
        $region22: #{decoder_llm_forward.3} parent=11 // pred_check_branch
          %348 = sbr.rel (%p346) target = $region24
        $region23: #{decoder_llm_forward.3} parent=11 // pred_region
          _
        $region24: #{decoder_llm_forward.3} parent=11 // pred_fallthru
          _
        // Predicated region
        $region25: #{decoder_llm_forward.3} parent=11 // pred_check
          %p349 = pneg %p171
        $region26: #{decoder_llm_forward.3} parent=11 // pred_check_branch
          %351 = sbr.rel (%p349) target = $region28
        $region27: #{decoder_llm_forward.3} parent=11 // pred_region
          _
        $region28: #{decoder_llm_forward.3} parent=11 // pred_fallthru
          _
        // Predicated region
        $region29: #{decoder_llm_forward.3} parent=11 // pred_check
          %p352 = pneg %p192
        $region30: #{decoder_llm_forward.3} parent=11 // pred_check_branch
          %354 = sbr.rel (%p352) target = $region32
        $region31: #{decoder_llm_forward.3} parent=11 // pred_region
          _
        $region32: #{decoder_llm_forward.3} parent=11 // pred_fallthru
          _
        // Predicated region
        $region33: #{decoder_llm_forward.3} parent=11 // pred_check
          %p355 = pneg %p213
        $region34: #{decoder_llm_forward.3} parent=11 // pred_check_branch
          %357 = sbr.rel (%p355) target = $region36
        $region35: #{decoder_llm_forward.3} parent=11 // pred_region
          _
        $region36: #{decoder_llm_forward.3} parent=11 // pred_fallthru
          _
        // Predicated region
        $region37: #{decoder_llm_forward.3} parent=11 // pred_check
          %p358 = pneg %p234
        $region38: #{decoder_llm_forward.3} parent=11 // pred_check_branch
          %360 = sbr.rel (%p358) target = $region40
        $region39: #{decoder_llm_forward.3} parent=11 // pred_region
          _
        $region40: #{decoder_llm_forward.3} parent=11 // pred_fallthru
          _
        // Predicated region
        $region41: #{decoder_llm_forward.3} parent=11 // pred_check
          %p361 = pneg %p255
        $region42: #{decoder_llm_forward.3} parent=11 // pred_check_branch
          %363 = sbr.rel (%p361) target = $region44
        $region43: #{decoder_llm_forward.3} parent=11 // pred_region
          _
        $region44: #{decoder_llm_forward.3} parent=11 // pred_fallthru
          _
        // Predicated region
        $region45: #{decoder_llm_forward.3} parent=11 // pred_check
          %p364 = pneg %p276
        $region46: #{decoder_llm_forward.3} parent=11 // pred_check_branch
          %366 = sbr.rel (%p364) target = $region48
        $region47: #{decoder_llm_forward.3} parent=11 // pred_region
          _
        $region48: #{decoder_llm_forward.3} parent=11 // pred_fallthru
          _
        // Predicated region
        $region49: #{decoder_llm_forward.3} parent=11 // pred_check
          %p367 = pneg %p297
        $region50: #{decoder_llm_forward.3} parent=11 // pred_check_branch
          %369 = sbr.rel (%p367) target = $region52
        $region51: #{decoder_llm_forward.3} parent=11 // pred_region
          _
        $region52: #{decoder_llm_forward.3} parent=11 // pred_fallthru
          _
      $region12: #{decoder_llm_forward.3} parent=5 // pred_fallthru
        _
      %p370 = scmp.lt.s32.totalorder %s21, 2
      // Predicated region
      $region53: #{decoder_llm_forward.3} parent=5 // pred_check
        %p371 = pneg %p370
      $region54: #{decoder_llm_forward.3} parent=5 // pred_check_branch
        %373 = sbr.rel (%p371) target = $region56
      $region55: #{decoder_llm_forward.3} parent=5 // pred_region
        // Predicated region
        $region57: #{decoder_llm_forward.3} parent=55 // pred_check
          %p374 = pneg %p55
        $region58: #{decoder_llm_forward.3} parent=55 // pred_check_branch
          %376 = sbr.rel (%p374) target = $region60
        $region59: #{decoder_llm_forward.3} parent=55 // pred_region
          %p377 = scmp.lt.s32.totalorder %s28, 1
          %s378 = scalar_select %p377, %s28, 1
          %p379 = scmp.lt.s32.totalorder %s29, 0
          %s380 = scalar_select %p379, %s29, 0
          %s381 = sadd.s32 %s380, %s378
          %s382 = smul.addr %s381, 8
          %s383 = scalar_lea.vmem %s0, %s382
        $region60: #{decoder_llm_forward.3} parent=55 // pred_fallthru
          _
        // Predicated region
        $region61: #{decoder_llm_forward.3} parent=55 // pred_check
          %p384 = pneg %p81
        $region62: #{decoder_llm_forward.3} parent=55 // pred_check_branch
          %386 = sbr.rel (%p384) target = $region64
        $region63: #{decoder_llm_forward.3} parent=55 // pred_region
          %p387 = scmp.lt.s32.totalorder %s28, 1
          %s388 = scalar_select %p387, %s28, 1
          %s389 = smul.addr %s388, 8
          %s390 = scalar_lea.vmem %s1, %s389
        $region64: #{decoder_llm_forward.3} parent=55 // pred_fallthru
          _
      $region56: #{decoder_llm_forward.3} parent=5 // pred_fallthru
        _
      %p391 = scmp.le.s32.totalorder 1, %s21
      %p392 = scmp.lt.s32.totalorder %s21, 3
      %p393 = pnand %p391, %p392
      %p394 = pneg %p393
      // Predicated region
      $region65: #{decoder_llm_forward.3} parent=5 // pred_check
        _
      $region66: #{decoder_llm_forward.3} parent=5 // pred_check_branch
        %396 = sbr.rel (%p393) target = $region68
      $region67: #{decoder_llm_forward.3} parent=5 // pred_region
        %s397 = ssub.s32 %s21, 1
        %p398 = scmp.lt.s32.totalorder %s30, 1
        %s399 = scalar_select %p398, %s30, 1
        %p400 = scmp.lt.s32.totalorder %s31, 0
        %s401 = scalar_select %p400, %s31, 0
        %s402 = sadd.s32 %s401, %s399
        %s403 = smul.addr %s402, 8
        %s404 = scalar_lea.vmem %s0, %s403
        %p405 = pneg %p61
        %p406 = pneg %p58
        %p407 = scmp.lt.s32.totalorder %s30, 1
        %s408 = scalar_select %p407, %s30, 1
        %s409 = smul.addr %s408, 8
        %s410 = scalar_lea.vmem %s1, %s409
        %p411 = pneg %p87
        %p412 = pneg %p84
        %p413 = pneg %p108
        %p414 = pneg %p105
        %p415 = pneg %p129
        %p416 = pneg %p126
        %p417 = pneg %p150
        %p418 = pneg %p147
        %p419 = pneg %p171
        %p420 = pneg %p168
        %p421 = pneg %p192
        %p422 = pneg %p189
        %p423 = pneg %p213
        %p424 = pneg %p210
        %p425 = pneg %p234
        %p426 = pneg %p231
        %p427 = pneg %p255
        %p428 = pneg %p252
        %p429 = pneg %p276
        %p430 = pneg %p273
        %p431 = pneg %p297
        %p432 = pneg %p294
        %p433 = pneg %p325
        %p434 = pneg %p322
        %s435 = sand.u32 %s312, 1
        %s436 = scalar_lea.sflag [#allocation5], %s435
        %s437 = sand.u32 %s312, 1
        %s438 = smul.addr %s437, 8
        %s439 = scalar_lea.vmem [#allocation4], %s438
        %p440 = scmp.lt.s32.totalorder %s30, 1
        %s441 = scalar_select %p440, %s30, 1
        %p442 = scmp.lt.s32.totalorder %s31, 0
        %s443 = scalar_select %p442, %s31, 0
        %s444 = sadd.s32 %s443, %s441
        %s445 = smul.addr %s444, 8
        %s446 = scalar_lea.vmem %s0, %s445
        %p447 = scmp.lt.s32.totalorder %s30, 1
        %s448 = scalar_select %p447, %s30, 1
        %s449 = smul.addr %s448, 8
        %s450 = scalar_lea.vmem %s1, %s449
        %p452 = scmp.eq.s32.totalorder %s31, 0
        // Predicated region
        $region69: #{decoder_llm_forward.3} parent=67 // pred_check
          %p453 = pneg %p452
        $region70: #{decoder_llm_forward.3} parent=67 // pred_check_branch
          %455 = sbr.rel (%p453) target = $region72
        $region71: #{decoder_llm_forward.3} parent=67 // pred_region
          %v456 = vld [vmem:[%s450] sm:$0xff]
          %v457 = vpack.c.bf16 %v456, %v456
          %v458 = vld [vmem:[%s3] sm:$0xf]
          %v459 = vld [vmem:[%s3 + $0x4] sm:$0xf]
          %v460 = vld [vmem:[%s3 + $0x8] sm:$0xf]
          %v461 = vld [vmem:[%s3 + $0xc] sm:$0xf]
          %v466 = vunpack.c.l.b16 %v458
          %v467 = vunpack.c.l.b16 %v459
          %v468 = vunpack.c.l.b16 %v460
          %v469 = vunpack.c.l.b16 %v461
          %v470 = vpack.c.b16 %v467, %v466
          %v471 = vpack.c.b16 %v469, %v468
          %vm474 = vcmask 261120
          %v476 = vsel %vm474, %v457, 0
          %478 = vmatpush.bf16.msra.mxu0 0
          %479 = vmatpush.bf16.msra.mxu0 0
          %480 = vmatpush.bf16.msra.mxu0 0
          %481 = vmatpush.bf16.msra.mxu0 0
          %482 = vmatpush.bf16.msra.mxu0 0
          %483 = vmatpush.bf16.msra.mxu0 0
          %484 = vmatpush.bf16.msra.mxu0 %v471
          %485 = vmatpush.bf16.msra.mxu0 %v470
          %486 = vmatmul.bf16.gmra.mxu0 %v476
          %v487 = vpop.f32.mrf.mxu0
          %v488 = vadd.f32 0.0, %v487
          %v489 = vpop.f32.mrf.mxu0
          %490 = vdwg.mxu0
          %v491 = vld [vmem:[%s4] sm:$0xf]
          %v492 = vld [vmem:[%s4 + $0x4] sm:$0xf]
          %v493 = vld [vmem:[%s4 + $0x8] sm:$0xf]
          %v494 = vld [vmem:[%s4 + $0xc] sm:$0xf]
          %v499 = vunpack.c.l.b16 %v491
          %v500 = vunpack.c.l.b16 %v492
          %v501 = vunpack.c.l.b16 %v493
          %v502 = vunpack.c.l.b16 %v494
          %v503 = vpack.c.b16 %v500, %v499
          %v504 = vpack.c.b16 %v502, %v501
          %507 = vmatpush.bf16.msra.mxu0 0
          %508 = vmatpush.bf16.msra.mxu0 0
          %509 = vmatpush.bf16.msra.mxu0 0
          %510 = vmatpush.bf16.msra.mxu0 0
          %511 = vmatpush.bf16.msra.mxu0 0
          %512 = vmatpush.bf16.msra.mxu0 0
          %513 = vmatpush.bf16.msra.mxu0 %v504
          %514 = vmatpush.bf16.msra.mxu0 %v503
          %515 = vmatmul.bf16.gmra.mxu0 %v476
          %v516 = vpop.f32.mrf.mxu0
          %v517 = vadd.f32 0.0, %v516
          %v518 = vpop.f32.mrf.mxu0
          %519 = vdwg.mxu0
          %v520 = vmul.f32 %v488, %v488
          %vm521 = vcmask 64512
          %v522 = vsel %vm521, %v520, 0.0
          %523 = vadd.xlane.f32.xlu0 %v522
          %v524 = vpop.xlane.xlu0 %523
          %v525 = vadd.f32 %v524, 1e-12
          %v526 = vrsqrt.pop %v525
          %v527 = vmul.f32 %v526, %v525
          %v528 = vmul.f32 %v527, %v526
          %v529 = vmul.f32 0.5, %v528
          %v530 = vsub.f32 1.5, %v529
          %v531 = vmul.f32 %v526, %v530
          %vm532 = vweird.f32 %v525
          %vm533 = vweird.f32 %v526
          %vm534 = vmor %vm532, %vm533
          %v535 = vsel %vm534, %v526, %v531
          %v536 = vmul.f32 %v488, %v535
          %v537 = vpack.c.bf16 %v536, %v536
          %v538 = vpack.c.bf16 %v517, %v517
          %vm539 = vcmask 60416
          %540 = vst.msk [vmem:[#allocation2] sm:$0xf] %vm539, %v537
          %541 = vst.msk [vmem:[#allocation3] sm:$0xf] %vm539, %v538
          %543 = vrot.lane.b32.xlu0 %v520, 120
          %v544 = vpop.permute.xlu0 %543
          %v546 = vsel %vm521, %v544, 0.0
          %547 = vadd.xlane.f32.xlu0 %v546
          %v548 = vpop.xlane.xlu0 %547
          %v549 = vadd.f32 %v548, 1e-12
          %v550 = vrsqrt.pop %v549
          %v551 = vmul.f32 %v550, %v549
          %v552 = vmul.f32 %v551, %v550
          %v553 = vmul.f32 0.5, %v552
          %v554 = vsub.f32 1.5, %v553
          %v555 = vmul.f32 %v550, %v554
          %vm556 = vweird.f32 %v549
          %vm557 = vweird.f32 %v550
          %vm558 = vmor %vm556, %vm557
          %v559 = vsel %vm558, %v550, %v555
          %v560 = vmul.f32 %v488, %v559
          %v561 = vpack.c.bf16 %v560, %v560
          %563 = vrot.lane.b32.xlu0 %v561, 120
          %v564 = vpop.permute.xlu0 %563
          %s566 = scalar_lea.vmem [#allocation2], 4
          %567 = vst.msk [vmem:[%s566] sm:$0xf] %vm539, %v564
          %569 = vrot.lane.b32.xlu0 %v538, 120
          %v570 = vpop.permute.xlu0 %569
          %s572 = scalar_lea.vmem [#allocation3], 4
          %573 = vst.msk [vmem:[%s572] sm:$0xf] %vm539, %v570
          %574 = vrot.lane.b32.xlu0 %v520, 112
          %v575 = vpop.permute.xlu0 %574
          %v577 = vsel %vm521, %v575, 0.0
          %578 = vadd.xlane.f32.xlu0 %v577
          %v579 = vpop.xlane.xlu0 %578
          %v580 = vadd.f32 %v579, 1e-12
          %v581 = vrsqrt.pop %v580
          %v582 = vmul.f32 %v581, %v580
          %v583 = vmul.f32 %v582, %v581
          %v584 = vmul.f32 0.5, %v583
          %v585 = vsub.f32 1.5, %v584
          %v586 = vmul.f32 %v581, %v585
          %vm587 = vweird.f32 %v580
          %vm588 = vweird.f32 %v581
          %vm589 = vmor %vm587, %vm588
          %v590 = vsel %vm589, %v581, %v586
          %v591 = vmul.f32 %v488, %v590
          %v592 = vpack.c.bf16 %v591, %v591
          %594 = vrot.lane.b32.xlu0 %v592, 112
          %v595 = vpop.permute.xlu0 %594
          %s597 = scalar_lea.vmem [#allocation2], 8
          %598 = vst.msk [vmem:[%s597] sm:$0xf] %vm539, %v595
          %599 = vrot.lane.b32.xlu0 %v538, 112
          %v600 = vpop.permute.xlu0 %599
          %s602 = scalar_lea.vmem [#allocation3], 8
          %603 = vst.msk [vmem:[%s602] sm:$0xf] %vm539, %v600
          %604 = vrot.lane.b32.xlu0 %v520, 104
          %v605 = vpop.permute.xlu0 %604
          %v607 = vsel %vm521, %v605, 0.0
          %608 = vadd.xlane.f32.xlu0 %v607
          %v609 = vpop.xlane.xlu0 %608
          %v610 = vadd.f32 %v609, 1e-12
          %v611 = vrsqrt.pop %v610
          %v612 = vmul.f32 %v611, %v610
          %v613 = vmul.f32 %v612, %v611
          %v614 = vmul.f32 0.5, %v613
          %v615 = vsub.f32 1.5, %v614
          %v616 = vmul.f32 %v611, %v615
          %vm617 = vweird.f32 %v610
          %vm618 = vweird.f32 %v611
          %vm619 = vmor %vm617, %vm618
          %v620 = vsel %vm619, %v611, %v616
          %v621 = vmul.f32 %v488, %v620
          %v622 = vpack.c.bf16 %v621, %v621
          %624 = vrot.lane.b32.xlu0 %v622, 104
          %v625 = vpop.permute.xlu0 %624
          %s627 = scalar_lea.vmem [#allocation2], 12
          %628 = vst.msk [vmem:[%s627] sm:$0xf] %vm539, %v625
          %629 = vrot.lane.b32.xlu0 %v538, 104
          %v630 = vpop.permute.xlu0 %629
          %s632 = scalar_lea.vmem [#allocation3], 12
          %633 = vst.msk [vmem:[%s632] sm:$0xf] %vm539, %v630
        $region72: #{decoder_llm_forward.3} parent=67 // pred_fallthru
          _
        %v634 = vld [vmem:[%s446] sm:$0xff]
        %v635 = vpack.c.bf16 %v634, %v634
        %v636 = vld [vmem:[%s2] sm:$0xf]
        %v637 = vld [vmem:[%s2 + $0x4] sm:$0xf]
        %v638 = vld [vmem:[%s2 + $0x8] sm:$0xf]
        %v639 = vld [vmem:[%s2 + $0xc] sm:$0xf]
        %v644 = vunpack.c.l.b16 %v636
        %v645 = vunpack.c.l.b16 %v637
        %v646 = vunpack.c.l.b16 %v638
        %v647 = vunpack.c.l.b16 %v639
        %v648 = vpack.c.b16 %v645, %v644
        %v649 = vpack.c.b16 %v647, %v646
        %vm652 = vcmask 261120
        %v654 = vsel %vm652, %v635, 0
        %656 = vmatpush.bf16.msra.mxu0 0
        %657 = vmatpush.bf16.msra.mxu0 0
        %658 = vmatpush.bf16.msra.mxu0 0
        %659 = vmatpush.bf16.msra.mxu0 0
        %660 = vmatpush.bf16.msra.mxu0 0
        %661 = vmatpush.bf16.msra.mxu0 0
        %662 = vmatpush.bf16.msra.mxu0 %v649
        %663 = vmatpush.bf16.msra.mxu0 %v648
        %664 = vmatmul.bf16.gmra.mxu0 %v654
        %v665 = vpop.f32.mrf.mxu0
        %v666 = vadd.f32 0.0, %v665
        %v667 = vpop.f32.mrf.mxu0
        %668 = vdwg.mxu0
        %v669 = vlaneseq
        %v670 = vshrl.u32 %v669, 7
        %v671 = vlaneseq
        %v672 = vand.u32 %v671, 127
        %vm673 = vcmp.le.s32.totalorder %v672, %v670
        %v674 = vmul.f32 %v666, %v666
        %vm675 = vcmask 64512
        %v676 = vsel %vm675, %v674, 0.0
        %677 = vadd.xlane.f32.xlu0 %v676
        %v678 = vpop.xlane.xlu0 %677
        %v679 = vadd.f32 %v678, 1e-12
        %v680 = vrsqrt.pop %v679
        %v681 = vmul.f32 %v680, %v679
        %v682 = vmul.f32 %v681, %v680
        %v683 = vmul.f32 0.5, %v682
        %v684 = vsub.f32 1.5, %v683
        %v685 = vmul.f32 %v680, %v684
        %vm686 = vweird.f32 %v679
        %vm687 = vweird.f32 %v680
        %vm688 = vmor %vm686, %vm687
        %v689 = vsel %vm688, %v680, %v685
        %v690 = vmul.f32 %v666, %v689
        %v691 = vmul.f32 %v690, 10.0
        %v692 = vpack.c.bf16 %v691, %v691
        // While loop
        $region73: #{decoder_llm_forward.3} parent=67 // loop_pre_header
          _
        $region74: #{decoder_llm_forward.3} parent=67 // loop_header
          %s694 = sphi 0, %s696
          %p695 = scmp.ge.s32.totalorder %s694, %s31
          %v699 = vphi -inf, %v730
          %v700 = vphi 0.0, %v741
          %v701 = vphi 0.0, %v764
        $region75: #{decoder_llm_forward.3} parent=67 // loop_header_branch
          %698 = sbr.rel (%p695) target = $region79
        $region76: #{decoder_llm_forward.3} parent=67 // loop_body
          %s702 = smul.addr %s694, 4
          %s703 = scalar_lea.vmem [#allocation2], %s702
          %v704 = vld [vmem:[%s703] sm:$0xf]
          %s705 = smul.addr %s694, 4
          %s706 = scalar_lea.vmem [#allocation3], %s705
          %v707 = vld [vmem:[%s706] sm:$0xf]
          %v709 = vsel %vm675, %v692, 0
          %v712 = vsel %vm675, %v704, 0
          %714 = vmatpush.bf16.xpose.msra.mxu0 0
          %715 = vmatpush.bf16.xpose.msra.mxu0 0
          %716 = vmatpush.bf16.xpose.msra.mxu0 0
          %717 = vmatpush.bf16.xpose.msra.mxu0 0
          %718 = vmatpush.bf16.xpose.msra.mxu0 0
          %719 = vmatpush.bf16.xpose.msra.mxu0 0
          %720 = vmatpush.bf16.xpose.msra.mxu0 0
          %721 = vmatpush.bf16.xpose.msra.mxu0 %v712
          %722 = vmatmul.bf16.gmra.mxu0 %v709
          %v723 = vpop.f32.mrf.mxu0
          %v724 = vadd.f32 0.0, %v723
          %v725 = vpop.f32.mrf.mxu0
          %726 = vdwg.mxu0
          %v727 = vsel %vm675, %v724, -inf
          %728 = vmax.xlane.f32.xlu0 %v727
          %v729 = vpop.xlane.xlu0 %728
          %v730 = vmax.f32 %v699, %v729
          %v731 = vsub.f32 %v699, %v730
          %v732 = vmul.f32 %v731, 1.442695
          %v733 = vpow.pop %v732
          %v734 = vsub.f32 %v724, %v730
          %v735 = vmul.f32 %v734, 1.442695
          %v736 = vpow.pop %v735
          %v737 = vmul.f32 %v733, %v700
          %v738 = vsel %vm675, %v736, 0.0
          %739 = vadd.xlane.f32.xlu0 %v738
          %v740 = vpop.xlane.xlu0 %739
          %v741 = vadd.f32 %v737, %v740
          %v742 = vmul.f32 %v733, %v701
          %v743 = vpack.c.bf16 %v736, %v736
          %v745 = vsel %vm675, %v743, 0
          %vm747 = vcmask 1043456
          %v749 = vsel %vm747, %v707, 0
          %751 = vmatpush.bf16.msra.mxu0 0
          %752 = vmatpush.bf16.msra.mxu0 0
          %753 = vmatpush.bf16.msra.mxu0 0
          %754 = vmatpush.bf16.msra.mxu0 0
          %755 = vmatpush.bf16.msra.mxu0 0
          %756 = vmatpush.bf16.msra.mxu0 0
          %757 = vmatpush.bf16.msra.mxu0 0
          %758 = vmatpush.bf16.msra.mxu0 %v749
          %759 = vmatmul.bf16.gmra.mxu0 %v745
          %v760 = vpop.f32.mrf.mxu0
          %v761 = vadd.f32 0.0, %v760
          %v762 = vpop.f32.mrf.mxu0
          %763 = vdwg.mxu0
          %v764 = vadd.f32 %v742, %v761
        $region77: #{decoder_llm_forward.3} parent=67 // loop_footer
          %s696 = sadd.s32 %s694, 1
        $region78: #{decoder_llm_forward.3} parent=67 // loop_footer_branch
          %693 = sbr.rel target = $region74
        $region79: #{decoder_llm_forward.3} parent=67 // loop_exit
          _
        %s765 = smul.addr %s31, 4
        %s766 = scalar_lea.vmem [#allocation2], %s765
        %v767 = vld [vmem:[%s766] sm:$0xf]
        %s768 = smul.addr %s31, 4
        %s769 = scalar_lea.vmem [#allocation3], %s768
        %v770 = vld [vmem:[%s769] sm:$0xf]
        %v772 = vsel %vm675, %v692, 0
        %v775 = vsel %vm675, %v767, 0
        %777 = vmatpush.bf16.xpose.msra.mxu0 0
        %778 = vmatpush.bf16.xpose.msra.mxu0 0
        %779 = vmatpush.bf16.xpose.msra.mxu0 0
        %780 = vmatpush.bf16.xpose.msra.mxu0 0
        %781 = vmatpush.bf16.xpose.msra.mxu0 0
        %782 = vmatpush.bf16.xpose.msra.mxu0 0
        %783 = vmatpush.bf16.xpose.msra.mxu0 0
        %784 = vmatpush.bf16.xpose.msra.mxu0 %v775
        %785 = vmatmul.bf16.gmra.mxu0 %v772
        %v786 = vpop.f32.mrf.mxu0
        %v787 = vadd.f32 0.0, %v786
        %v788 = vpop.f32.mrf.mxu0
        %789 = vdwg.mxu0
        %v790 = vsel %vm673, %v787, -1e+30
        %v791 = vsel %vm675, %v790, -inf
        %792 = vmax.xlane.f32.xlu0 %v791
        %v793 = vpop.xlane.xlu0 %792
        %v794 = vmax.f32 %v699, %v793
        %v795 = vsub.f32 %v699, %v794
        %v796 = vmul.f32 %v795, 1.442695
        %v797 = vpow.pop %v796
        %v798 = vsub.f32 %v790, %v794
        %v799 = vmul.f32 %v798, 1.442695
        %v800 = vpow.pop %v799
        %v801 = vmul.f32 %v797, %v700
        %v802 = vsel %vm675, %v800, 0.0
        %803 = vadd.xlane.f32.xlu0 %v802
        %v804 = vpop.xlane.xlu0 %803
        %v805 = vadd.f32 %v801, %v804
        %v806 = vmul.f32 %v797, %v701
        %v807 = vpack.c.bf16 %v800, %v800
        %v809 = vsel %vm675, %v807, 0
        %vm811 = vcmask 1043456
        %v813 = vsel %vm811, %v770, 0
        %815 = vmatpush.bf16.msra.mxu0 0
        %816 = vmatpush.bf16.msra.mxu0 0
        %817 = vmatpush.bf16.msra.mxu0 0
        %818 = vmatpush.bf16.msra.mxu0 0
        %819 = vmatpush.bf16.msra.mxu0 0
        %820 = vmatpush.bf16.msra.mxu0 0
        %821 = vmatpush.bf16.msra.mxu0 0
        %822 = vmatpush.bf16.msra.mxu0 %v813
        %823 = vmatmul.bf16.gmra.mxu0 %v809
        %v824 = vpop.f32.mrf.mxu0
        %v825 = vadd.f32 0.0, %v824
        %v826 = vpop.f32.mrf.mxu0
        %827 = vdwg.mxu0
        %v828 = vadd.f32 %v806, %v825
        %v829 = vrcp.pop %v805
        %v830 = vmul.f32 %v828, %v829
        %v831 = vpack.c.bf16 %v830, %v830
        %v832 = vld [vmem:[%s5] sm:$0xf]
        %834 = vrot.lane.b32.xlu0 %v674, 120
        %v835 = vpop.permute.xlu0 %834
        %v837 = vsel %vm675, %v835, 0.0
        %838 = vadd.xlane.f32.xlu0 %v837
        %v839 = vpop.xlane.xlu0 %838
        %v840 = vadd.f32 %v839, 1e-12
        %v841 = vrsqrt.pop %v840
        %v842 = vmul.f32 %v841, %v840
        %v843 = vmul.f32 %v842, %v841
        %v844 = vmul.f32 0.5, %v843
        %v845 = vsub.f32 1.5, %v844
        %v846 = vmul.f32 %v841, %v845
        %vm847 = vweird.f32 %v840
        %vm848 = vweird.f32 %v841
        %vm849 = vmor %vm847, %vm848
        %v850 = vsel %vm849, %v841, %v846
        %v851 = vmul.f32 %v666, %v850
        %v852 = vmul.f32 %v851, 10.0
        %v853 = vpack.c.bf16 %v852, %v852
        // While loop
        $region80: #{decoder_llm_forward.3} parent=67 // loop_pre_header
          _
        $region81: #{decoder_llm_forward.3} parent=67 // loop_header
          %s855 = sphi 0, %s857
          %p856 = scmp.ge.s32.totalorder %s855, %s31
          %v860 = vphi -inf, %v895
          %v861 = vphi 0.0, %v906
          %v862 = vphi 0.0, %v928
        $region82: #{decoder_llm_forward.3} parent=67 // loop_header_branch
          %859 = sbr.rel (%p856) target = $region86
        $region83: #{decoder_llm_forward.3} parent=67 // loop_body
          %s863 = sadd.s32 %s855, 1
          %s864 = smul.addr %s863, 4
          %s865 = scalar_lea.vmem [#allocation2], %s864
          %v866 = vld [vmem:[%s865] sm:$0xf]
          %s867 = smul.addr %s863, 4
          %s868 = scalar_lea.vmem [#allocation3], %s867
          %v869 = vld [vmem:[%s868] sm:$0xf]
          %871 = vrot.lane.b32.xlu0 %v853, 120
          %v872 = vpop.permute.xlu0 %871
          %v874 = vsel %vm675, %v872, 0
          %v877 = vsel %vm675, %v866, 0
          %879 = vmatpush.bf16.xpose.msra.mxu0 0
          %880 = vmatpush.bf16.xpose.msra.mxu0 0
          %881 = vmatpush.bf16.xpose.msra.mxu0 0
          %882 = vmatpush.bf16.xpose.msra.mxu0 0
          %883 = vmatpush.bf16.xpose.msra.mxu0 0
          %884 = vmatpush.bf16.xpose.msra.mxu0 0
          %885 = vmatpush.bf16.xpose.msra.mxu0 0
          %886 = vmatpush.bf16.xpose.msra.mxu0 %v877
          %887 = vmatmul.bf16.gmra.mxu0 %v874
          %v888 = vpop.f32.mrf.mxu0
          %v889 = vadd.f32 0.0, %v888
          %v890 = vpop.f32.mrf.mxu0
          %891 = vdwg.mxu0
          %v892 = vsel %vm675, %v889, -inf
          %893 = vmax.xlane.f32.xlu0 %v892
          %v894 = vpop.xlane.xlu0 %893
          %v895 = vmax.f32 %v860, %v894
          %v896 = vsub.f32 %v860, %v895
          %v897 = vmul.f32 %v896, 1.442695
          %v898 = vpow.pop %v897
          %v899 = vsub.f32 %v889, %v895
          %v900 = vmul.f32 %v899, 1.442695
          %v901 = vpow.pop %v900
          %v902 = vmul.f32 %v898, %v861
          %v903 = vsel %vm675, %v901, 0.0
          %904 = vadd.xlane.f32.xlu0 %v903
          %v905 = vpop.xlane.xlu0 %904
          %v906 = vadd.f32 %v902, %v905
          %v907 = vmul.f32 %v898, %v862
          %v908 = vpack.c.bf16 %v901, %v901
          %v910 = vsel %vm675, %v908, 0
          %v913 = vsel %vm811, %v869, 0
          %915 = vmatpush.bf16.msra.mxu0 0
          %916 = vmatpush.bf16.msra.mxu0 0
          %917 = vmatpush.bf16.msra.mxu0 0
          %918 = vmatpush.bf16.msra.mxu0 0
          %919 = vmatpush.bf16.msra.mxu0 0
          %920 = vmatpush.bf16.msra.mxu0 0
          %921 = vmatpush.bf16.msra.mxu0 0
          %922 = vmatpush.bf16.msra.mxu0 %v913
          %923 = vmatmul.bf16.gmra.mxu0 %v910
          %v924 = vpop.f32.mrf.mxu0
          %v925 = vadd.f32 0.0, %v924
          %v926 = vpop.f32.mrf.mxu0
          %927 = vdwg.mxu0
          %v928 = vadd.f32 %v907, %v925
        $region84: #{decoder_llm_forward.3} parent=67 // loop_footer
          %s857 = sadd.s32 %s855, 1
        $region85: #{decoder_llm_forward.3} parent=67 // loop_footer_branch
          %854 = sbr.rel target = $region81
        $region86: #{decoder_llm_forward.3} parent=67 // loop_exit
          _
        %s929 = sadd.s32 %s31, 1
        %s930 = smul.addr %s929, 4
        %s931 = scalar_lea.vmem [#allocation2], %s930
        %v932 = vld [vmem:[%s931] sm:$0xf]
        %s933 = smul.addr %s929, 4
        %s934 = scalar_lea.vmem [#allocation3], %s933
        %v935 = vld [vmem:[%s934] sm:$0xf]
        %937 = vrot.lane.b32.xlu0 %v853, 120
        %v938 = vpop.permute.xlu0 %937
        %v940 = vsel %vm675, %v938, 0
        %v943 = vsel %vm675, %v932, 0
        %945 = vmatpush.bf16.xpose.msra.mxu0 0
        %946 = vmatpush.bf16.xpose.msra.mxu0 0
        %947 = vmatpush.bf16.xpose.msra.mxu0 0
        %948 = vmatpush.bf16.xpose.msra.mxu0 0
        %949 = vmatpush.bf16.xpose.msra.mxu0 0
        %950 = vmatpush.bf16.xpose.msra.mxu0 0
        %951 = vmatpush.bf16.xpose.msra.mxu0 0
        %952 = vmatpush.bf16.xpose.msra.mxu0 %v943
        %953 = vmatmul.bf16.gmra.mxu0 %v940
        %v954 = vpop.f32.mrf.mxu0
        %v955 = vadd.f32 0.0, %v954
        %v956 = vpop.f32.mrf.mxu0
        %957 = vdwg.mxu0
        %v958 = vsel %vm673, %v955, -1e+30
        %v959 = vsel %vm675, %v958, -inf
        %960 = vmax.xlane.f32.xlu0 %v959
        %v961 = vpop.xlane.xlu0 %960
        %v962 = vmax.f32 %v860, %v961
        %v963 = vsub.f32 %v860, %v962
        %v964 = vmul.f32 %v963, 1.442695
        %v965 = vpow.pop %v964
        %v966 = vsub.f32 %v958, %v962
        %v967 = vmul.f32 %v966, 1.442695
        %v968 = vpow.pop %v967
        %v969 = vmul.f32 %v965, %v861
        %v970 = vsel %vm675, %v968, 0.0
        %971 = vadd.xlane.f32.xlu0 %v970
        %v972 = vpop.xlane.xlu0 %971
        %v973 = vadd.f32 %v969, %v972
        %v974 = vmul.f32 %v965, %v862
        %v975 = vpack.c.bf16 %v968, %v968
        %v977 = vsel %vm675, %v975, 0
        %v980 = vsel %vm811, %v935, 0
        %982 = vmatpush.bf16.msra.mxu0 0
        %983 = vmatpush.bf16.msra.mxu0 0
        %984 = vmatpush.bf16.msra.mxu0 0
        %985 = vmatpush.bf16.msra.mxu0 0
        %986 = vmatpush.bf16.msra.mxu0 0
        %987 = vmatpush.bf16.msra.mxu0 0
        %988 = vmatpush.bf16.msra.mxu0 0
        %989 = vmatpush.bf16.msra.mxu0 %v980
        %990 = vmatmul.bf16.gmra.mxu0 %v977
        %v991 = vpop.f32.mrf.mxu0
        %v992 = vadd.f32 0.0, %v991
        %v993 = vpop.f32.mrf.mxu0
        %994 = vdwg.mxu0
        %v995 = vadd.f32 %v974, %v992
        %v996 = vrcp.pop %v973
        %v997 = vmul.f32 %v995, %v996
        %v998 = vpack.c.bf16 %v997, %v997
        %s999 = scalar_lea.vmem %s5, 4
        %v1000 = vld [vmem:[%s999] sm:$0xf]
        %v1002 = vsel %vm675, %v998, 0
        %v1005 = vsel %vm811, %v1000, 0
        %1007 = vmatpush.bf16.msra.mxu0 0
        %1008 = vmatpush.bf16.msra.mxu0 0
        %1009 = vmatpush.bf16.msra.mxu0 0
        %1010 = vmatpush.bf16.msra.mxu0 0
        %1011 = vmatpush.bf16.msra.mxu0 0
        %1012 = vmatpush.bf16.msra.mxu0 0
        %1013 = vmatpush.bf16.msra.mxu0 0
        %1014 = vmatpush.bf16.msra.mxu0 %v1005
        %1015 = vmatmul.bf16.gmra.mxu0 %v1002
        %v1016 = vpop.f32.mrf.mxu0
        %v1017 = vadd.f32 0.0, %v1016
        %v1018 = vpop.f32.mrf.mxu0
        %1019 = vdwg.mxu0
        %v1021 = vsel %vm675, %v831, 0
        %v1024 = vsel %vm811, %v832, 0
        %1026 = vmatpush.bf16.msra.mxu0 0
        %1027 = vmatpush.bf16.msra.mxu0 0
        %1028 = vmatpush.bf16.msra.mxu0 0
        %1029 = vmatpush.bf16.msra.mxu0 0
        %1030 = vmatpush.bf16.msra.mxu0 0
        %1031 = vmatpush.bf16.msra.mxu0 0
        %1032 = vmatpush.bf16.msra.mxu0 0
        %1033 = vmatpush.bf16.msra.mxu0 %v1024
        %1034 = vmatmul.bf16.gmra.mxu0 %v1021
        %v1035 = vpop.f32.mrf.mxu0
        %v1036 = vadd.f32 %v1017, %v1035
        %v1037 = vpop.f32.mrf.mxu0
        %1038 = vdwg.mxu0
        %1039 = vrot.lane.b32.xlu0 %v674, 112
        %v1040 = vpop.permute.xlu0 %1039
        %v1042 = vsel %vm675, %v1040, 0.0
        %1043 = vadd.xlane.f32.xlu0 %v1042
        %v1044 = vpop.xlane.xlu0 %1043
        %v1045 = vadd.f32 %v1044, 1e-12
        %v1046 = vrsqrt.pop %v1045
        %v1047 = vmul.f32 %v1046, %v1045
        %v1048 = vmul.f32 %v1047, %v1046
        %v1049 = vmul.f32 0.5, %v1048
        %v1050 = vsub.f32 1.5, %v1049
        %v1051 = vmul.f32 %v1046, %v1050
        %vm1052 = vweird.f32 %v1045
        %vm1053 = vweird.f32 %v1046
        %vm1054 = vmor %vm1052, %vm1053
        %v1055 = vsel %vm1054, %v1046, %v1051
        %v1056 = vmul.f32 %v666, %v1055
        %v1057 = vmul.f32 %v1056, 10.0
        %v1058 = vpack.c.bf16 %v1057, %v1057
        // While loop
        $region87: #{decoder_llm_forward.3} parent=67 // loop_pre_header
          _
        $region88: #{decoder_llm_forward.3} parent=67 // loop_header
          %s1060 = sphi 0, %s1062
          %p1061 = scmp.ge.s32.totalorder %s1060, %s31
          %v1065 = vphi -inf, %v1100
          %v1066 = vphi 0.0, %v1111
          %v1067 = vphi 0.0, %v1133
        $region89: #{decoder_llm_forward.3} parent=67 // loop_header_branch
          %1064 = sbr.rel (%p1061) target = $region93
        $region90: #{decoder_llm_forward.3} parent=67 // loop_body
          %s1068 = sadd.s32 %s1060, 2
          %s1069 = smul.addr %s1068, 4
          %s1070 = scalar_lea.vmem [#allocation2], %s1069
          %v1071 = vld [vmem:[%s1070] sm:$0xf]
          %s1072 = smul.addr %s1068, 4
          %s1073 = scalar_lea.vmem [#allocation3], %s1072
          %v1074 = vld [vmem:[%s1073] sm:$0xf]
          %1076 = vrot.lane.b32.xlu0 %v1058, 112
          %v1077 = vpop.permute.xlu0 %1076
          %v1079 = vsel %vm675, %v1077, 0
          %v1082 = vsel %vm675, %v1071, 0
          %1084 = vmatpush.bf16.xpose.msra.mxu0 0
          %1085 = vmatpush.bf16.xpose.msra.mxu0 0
          %1086 = vmatpush.bf16.xpose.msra.mxu0 0
          %1087 = vmatpush.bf16.xpose.msra.mxu0 0
          %1088 = vmatpush.bf16.xpose.msra.mxu0 0
          %1089 = vmatpush.bf16.xpose.msra.mxu0 0
          %1090 = vmatpush.bf16.xpose.msra.mxu0 0
          %1091 = vmatpush.bf16.xpose.msra.mxu0 %v1082
          %1092 = vmatmul.bf16.gmra.mxu0 %v1079
          %v1093 = vpop.f32.mrf.mxu0
          %v1094 = vadd.f32 0.0, %v1093
          %v1095 = vpop.f32.mrf.mxu0
          %1096 = vdwg.mxu0
          %v1097 = vsel %vm675, %v1094, -inf
          %1098 = vmax.xlane.f32.xlu0 %v1097
          %v1099 = vpop.xlane.xlu0 %1098
          %v1100 = vmax.f32 %v1065, %v1099
          %v1101 = vsub.f32 %v1065, %v1100
          %v1102 = vmul.f32 %v1101, 1.442695
          %v1103 = vpow.pop %v1102
          %v1104 = vsub.f32 %v1094, %v1100
          %v1105 = vmul.f32 %v1104, 1.442695
          %v1106 = vpow.pop %v1105
          %v1107 = vmul.f32 %v1103, %v1066
          %v1108 = vsel %vm675, %v1106, 0.0
          %1109 = vadd.xlane.f32.xlu0 %v1108
          %v1110 = vpop.xlane.xlu0 %1109
          %v1111 = vadd.f32 %v1107, %v1110
          %v1112 = vmul.f32 %v1103, %v1067
          %v1113 = vpack.c.bf16 %v1106, %v1106
          %v1115 = vsel %vm675, %v1113, 0
          %v1118 = vsel %vm811, %v1074, 0
          %1120 = vmatpush.bf16.msra.mxu0 0
          %1121 = vmatpush.bf16.msra.mxu0 0
          %1122 = vmatpush.bf16.msra.mxu0 0
          %1123 = vmatpush.bf16.msra.mxu0 0
          %1124 = vmatpush.bf16.msra.mxu0 0
          %1125 = vmatpush.bf16.msra.mxu0 0
          %1126 = vmatpush.bf16.msra.mxu0 0
          %1127 = vmatpush.bf16.msra.mxu0 %v1118
          %1128 = vmatmul.bf16.gmra.mxu0 %v1115
          %v1129 = vpop.f32.mrf.mxu0
          %v1130 = vadd.f32 0.0, %v1129
          %v1131 = vpop.f32.mrf.mxu0
          %1132 = vdwg.mxu0
          %v1133 = vadd.f32 %v1112, %v1130
        $region91: #{decoder_llm_forward.3} parent=67 // loop_footer
          %s1062 = sadd.s32 %s1060, 1
        $region92: #{decoder_llm_forward.3} parent=67 // loop_footer_branch
          %1059 = sbr.rel target = $region88
        $region93: #{decoder_llm_forward.3} parent=67 // loop_exit
          _
        %s1134 = sadd.s32 %s31, 2
        %s1135 = smul.addr %s1134, 4
        %s1136 = scalar_lea.vmem [#allocation2], %s1135
        %v1137 = vld [vmem:[%s1136] sm:$0xf]
        %s1138 = smul.addr %s1134, 4
        %s1139 = scalar_lea.vmem [#allocation3], %s1138
        %v1140 = vld [vmem:[%s1139] sm:$0xf]
        %1142 = vrot.lane.b32.xlu0 %v1058, 112
        %v1143 = vpop.permute.xlu0 %1142
        %v1145 = vsel %vm675, %v1143, 0
        %v1148 = vsel %vm675, %v1137, 0
        %1150 = vmatpush.bf16.xpose.msra.mxu0 0
        %1151 = vmatpush.bf16.xpose.msra.mxu0 0
        %1152 = vmatpush.bf16.xpose.msra.mxu0 0
        %1153 = vmatpush.bf16.xpose.msra.mxu0 0
        %1154 = vmatpush.bf16.xpose.msra.mxu0 0
        %1155 = vmatpush.bf16.xpose.msra.mxu0 0
        %1156 = vmatpush.bf16.xpose.msra.mxu0 0
        %1157 = vmatpush.bf16.xpose.msra.mxu0 %v1148
        %1158 = vmatmul.bf16.gmra.mxu0 %v1145
        %v1159 = vpop.f32.mrf.mxu0
        %v1160 = vadd.f32 0.0, %v1159
        %v1161 = vpop.f32.mrf.mxu0
        %1162 = vdwg.mxu0
        %v1163 = vsel %vm673, %v1160, -1e+30
        %v1164 = vsel %vm675, %v1163, -inf
        %1165 = vmax.xlane.f32.xlu0 %v1164
        %v1166 = vpop.xlane.xlu0 %1165
        %v1167 = vmax.f32 %v1065, %v1166
        %v1168 = vsub.f32 %v1065, %v1167
        %v1169 = vmul.f32 %v1168, 1.442695
        %v1170 = vpow.pop %v1169
        %v1171 = vsub.f32 %v1163, %v1167
        %v1172 = vmul.f32 %v1171, 1.442695
        %v1173 = vpow.pop %v1172
        %v1174 = vmul.f32 %v1170, %v1066
        %v1175 = vsel %vm675, %v1173, 0.0
        %1176 = vadd.xlane.f32.xlu0 %v1175
        %v1177 = vpop.xlane.xlu0 %1176
        %v1178 = vadd.f32 %v1174, %v1177
        %v1179 = vmul.f32 %v1170, %v1067
        %v1180 = vpack.c.bf16 %v1173, %v1173
        %v1182 = vsel %vm675, %v1180, 0
        %v1185 = vsel %vm811, %v1140, 0
        %1187 = vmatpush.bf16.msra.mxu0 0
        %1188 = vmatpush.bf16.msra.mxu0 0
        %1189 = vmatpush.bf16.msra.mxu0 0
        %1190 = vmatpush.bf16.msra.mxu0 0
        %1191 = vmatpush.bf16.msra.mxu0 0
        %1192 = vmatpush.bf16.msra.mxu0 0
        %1193 = vmatpush.bf16.msra.mxu0 0
        %1194 = vmatpush.bf16.msra.mxu0 %v1185
        %1195 = vmatmul.bf16.gmra.mxu0 %v1182
        %v1196 = vpop.f32.mrf.mxu0
        %v1197 = vadd.f32 0.0, %v1196
        %v1198 = vpop.f32.mrf.mxu0
        %1199 = vdwg.mxu0
        %v1200 = vadd.f32 %v1179, %v1197
        %v1201 = vrcp.pop %v1178
        %v1202 = vmul.f32 %v1200, %v1201
        %v1203 = vpack.c.bf16 %v1202, %v1202
        %s1204 = scalar_lea.vmem %s5, 8
        %v1205 = vld [vmem:[%s1204] sm:$0xf]
        %v1207 = vsel %vm675, %v1203, 0
        %v1210 = vsel %vm811, %v1205, 0
        %1212 = vmatpush.bf16.msra.mxu0 0
        %1213 = vmatpush.bf16.msra.mxu0 0
        %1214 = vmatpush.bf16.msra.mxu0 0
        %1215 = vmatpush.bf16.msra.mxu0 0
        %1216 = vmatpush.bf16.msra.mxu0 0
        %1217 = vmatpush.bf16.msra.mxu0 0
        %1218 = vmatpush.bf16.msra.mxu0 0
        %1219 = vmatpush.bf16.msra.mxu0 %v1210
        %1220 = vmatmul.bf16.gmra.mxu0 %v1207
        %v1221 = vpop.f32.mrf.mxu0
        %v1222 = vadd.f32 0.0, %v1221
        %v1223 = vpop.f32.mrf.mxu0
        %1224 = vdwg.mxu0
        %v1225 = vadd.f32 %v1036, %v1222
        %1226 = vrot.lane.b32.xlu0 %v674, 104
        %v1227 = vpop.permute.xlu0 %1226
        %v1229 = vsel %vm675, %v1227, 0.0
        %1230 = vadd.xlane.f32.xlu0 %v1229
        %v1231 = vpop.xlane.xlu0 %1230
        %v1232 = vadd.f32 %v1231, 1e-12
        %v1233 = vrsqrt.pop %v1232
        %v1234 = vmul.f32 %v1233, %v1232
        %v1235 = vmul.f32 %v1234, %v1233
        %v1236 = vmul.f32 0.5, %v1235
        %v1237 = vsub.f32 1.5, %v1236
        %v1238 = vmul.f32 %v1233, %v1237
        %vm1239 = vweird.f32 %v1232
        %vm1240 = vweird.f32 %v1233
        %vm1241 = vmor %vm1239, %vm1240
        %v1242 = vsel %vm1241, %v1233, %v1238
        %v1243 = vmul.f32 %v666, %v1242
        %v1244 = vmul.f32 %v1243, 10.0
        %v1245 = vpack.c.bf16 %v1244, %v1244
        // While loop
        $region94: #{decoder_llm_forward.3} parent=67 // loop_pre_header
          _
        $region95: #{decoder_llm_forward.3} parent=67 // loop_header
          %s1247 = sphi 0, %s1249
          %p1248 = scmp.ge.s32.totalorder %s1247, %s31
          %v1252 = vphi -inf, %v1287
          %v1253 = vphi 0.0, %v1298
          %v1254 = vphi 0.0, %v1320
        $region96: #{decoder_llm_forward.3} parent=67 // loop_header_branch
          %1251 = sbr.rel (%p1248) target = $region100
        $region97: #{decoder_llm_forward.3} parent=67 // loop_body
          %s1255 = sadd.s32 %s1247, 3
          %s1256 = smul.addr %s1255, 4
          %s1257 = scalar_lea.vmem [#allocation2], %s1256
          %v1258 = vld [vmem:[%s1257] sm:$0xf]
          %s1259 = smul.addr %s1255, 4
          %s1260 = scalar_lea.vmem [#allocation3], %s1259
          %v1261 = vld [vmem:[%s1260] sm:$0xf]
          %1263 = vrot.lane.b32.xlu0 %v1245, 104
          %v1264 = vpop.permute.xlu0 %1263
          %v1266 = vsel %vm675, %v1264, 0
          %v1269 = vsel %vm675, %v1258, 0
          %1271 = vmatpush.bf16.xpose.msra.mxu0 0
          %1272 = vmatpush.bf16.xpose.msra.mxu0 0
          %1273 = vmatpush.bf16.xpose.msra.mxu0 0
          %1274 = vmatpush.bf16.xpose.msra.mxu0 0
          %1275 = vmatpush.bf16.xpose.msra.mxu0 0
          %1276 = vmatpush.bf16.xpose.msra.mxu0 0
          %1277 = vmatpush.bf16.xpose.msra.mxu0 0
          %1278 = vmatpush.bf16.xpose.msra.mxu0 %v1269
          %1279 = vmatmul.bf16.gmra.mxu0 %v1266
          %v1280 = vpop.f32.mrf.mxu0
          %v1281 = vadd.f32 0.0, %v1280
          %v1282 = vpop.f32.mrf.mxu0
          %1283 = vdwg.mxu0
          %v1284 = vsel %vm675, %v1281, -inf
          %1285 = vmax.xlane.f32.xlu0 %v1284
          %v1286 = vpop.xlane.xlu0 %1285
          %v1287 = vmax.f32 %v1252, %v1286
          %v1288 = vsub.f32 %v1252, %v1287
          %v1289 = vmul.f32 %v1288, 1.442695
          %v1290 = vpow.pop %v1289
          %v1291 = vsub.f32 %v1281, %v1287
          %v1292 = vmul.f32 %v1291, 1.442695
          %v1293 = vpow.pop %v1292
          %v1294 = vmul.f32 %v1290, %v1253
          %v1295 = vsel %vm675, %v1293, 0.0
          %1296 = vadd.xlane.f32.xlu0 %v1295
          %v1297 = vpop.xlane.xlu0 %1296
          %v1298 = vadd.f32 %v1294, %v1297
          %v1299 = vmul.f32 %v1290, %v1254
          %v1300 = vpack.c.bf16 %v1293, %v1293
          %v1302 = vsel %vm675, %v1300, 0
          %v1305 = vsel %vm811, %v1261, 0
          %1307 = vmatpush.bf16.msra.mxu0 0
          %1308 = vmatpush.bf16.msra.mxu0 0
          %1309 = vmatpush.bf16.msra.mxu0 0
          %1310 = vmatpush.bf16.msra.mxu0 0
          %1311 = vmatpush.bf16.msra.mxu0 0
          %1312 = vmatpush.bf16.msra.mxu0 0
          %1313 = vmatpush.bf16.msra.mxu0 0
          %1314 = vmatpush.bf16.msra.mxu0 %v1305
          %1315 = vmatmul.bf16.gmra.mxu0 %v1302
          %v1316 = vpop.f32.mrf.mxu0
          %v1317 = vadd.f32 0.0, %v1316
          %v1318 = vpop.f32.mrf.mxu0
          %1319 = vdwg.mxu0
          %v1320 = vadd.f32 %v1299, %v1317
        $region98: #{decoder_llm_forward.3} parent=67 // loop_footer
          %s1249 = sadd.s32 %s1247, 1
        $region99: #{decoder_llm_forward.3} parent=67 // loop_footer_branch
          %1246 = sbr.rel target = $region95
        $region100: #{decoder_llm_forward.3} parent=67 // loop_exit
          _
        %s1321 = sadd.s32 %s31, 3
        %s1322 = smul.addr %s1321, 4
        %s1323 = scalar_lea.vmem [#allocation2], %s1322
        %v1324 = vld [vmem:[%s1323] sm:$0xf]
        %s1325 = smul.addr %s1321, 4
        %s1326 = scalar_lea.vmem [#allocation3], %s1325
        %v1327 = vld [vmem:[%s1326] sm:$0xf]
        %1329 = vrot.lane.b32.xlu0 %v1245, 104
        %v1330 = vpop.permute.xlu0 %1329
        %v1332 = vsel %vm675, %v1330, 0
        %v1335 = vsel %vm675, %v1324, 0
        %1337 = vmatpush.bf16.xpose.msra.mxu0 0
        %1338 = vmatpush.bf16.xpose.msra.mxu0 0
        %1339 = vmatpush.bf16.xpose.msra.mxu0 0
        %1340 = vmatpush.bf16.xpose.msra.mxu0 0
        %1341 = vmatpush.bf16.xpose.msra.mxu0 0
        %1342 = vmatpush.bf16.xpose.msra.mxu0 0
        %1343 = vmatpush.bf16.xpose.msra.mxu0 0
        %1344 = vmatpush.bf16.xpose.msra.mxu0 %v1335
        %1345 = vmatmul.bf16.gmra.mxu0 %v1332
        %v1346 = vpop.f32.mrf.mxu0
        %v1347 = vadd.f32 0.0, %v1346
        %v1348 = vpop.f32.mrf.mxu0
        %1349 = vdwg.mxu0
        %v1350 = vsel %vm673, %v1347, -1e+30
        %v1351 = vsel %vm675, %v1350, -inf
        %1352 = vmax.xlane.f32.xlu0 %v1351
        %v1353 = vpop.xlane.xlu0 %1352
        %v1354 = vmax.f32 %v1252, %v1353
        %v1355 = vsub.f32 %v1252, %v1354
        %v1356 = vmul.f32 %v1355, 1.442695
        %v1357 = vpow.pop %v1356
        %v1358 = vsub.f32 %v1350, %v1354
        %v1359 = vmul.f32 %v1358, 1.442695
        %v1360 = vpow.pop %v1359
        %v1361 = vmul.f32 %v1357, %v1253
        %v1362 = vsel %vm675, %v1360, 0.0
        %1363 = vadd.xlane.f32.xlu0 %v1362
        %v1364 = vpop.xlane.xlu0 %1363
        %v1365 = vadd.f32 %v1361, %v1364
        %v1366 = vmul.f32 %v1357, %v1254
        %v1367 = vpack.c.bf16 %v1360, %v1360
        %v1369 = vsel %vm675, %v1367, 0
        %v1372 = vsel %vm811, %v1327, 0
        %1374 = vmatpush.bf16.msra.mxu0 0
        %1375 = vmatpush.bf16.msra.mxu0 0
        %1376 = vmatpush.bf16.msra.mxu0 0
        %1377 = vmatpush.bf16.msra.mxu0 0
        %1378 = vmatpush.bf16.msra.mxu0 0
        %1379 = vmatpush.bf16.msra.mxu0 0
        %1380 = vmatpush.bf16.msra.mxu0 0
        %1381 = vmatpush.bf16.msra.mxu0 %v1372
        %1382 = vmatmul.bf16.gmra.mxu0 %v1369
        %v1383 = vpop.f32.mrf.mxu0
        %v1384 = vadd.f32 0.0, %v1383
        %v1385 = vpop.f32.mrf.mxu0
        %1386 = vdwg.mxu0
        %v1387 = vadd.f32 %v1366, %v1384
        %v1388 = vrcp.pop %v1365
        %v1389 = vmul.f32 %v1387, %v1388
        %v1390 = vpack.c.bf16 %v1389, %v1389
        %s1391 = scalar_lea.vmem %s5, 12
        %v1392 = vld [vmem:[%s1391] sm:$0xf]
        %v1394 = vsel %vm675, %v1390, 0
        %v1397 = vsel %vm811, %v1392, 0
        %1399 = vmatpush.bf16.msra.mxu0 0
        %1400 = vmatpush.bf16.msra.mxu0 0
        %1401 = vmatpush.bf16.msra.mxu0 0
        %1402 = vmatpush.bf16.msra.mxu0 0
        %1403 = vmatpush.bf16.msra.mxu0 0
        %1404 = vmatpush.bf16.msra.mxu0 0
        %1405 = vmatpush.bf16.msra.mxu0 0
        %1406 = vmatpush.bf16.msra.mxu0 %v1397
        %1407 = vmatmul.bf16.gmra.mxu0 %v1394
        %v1408 = vpop.f32.mrf.mxu0
        %v1409 = vadd.f32 0.0, %v1408
        %v1410 = vpop.f32.mrf.mxu0
        %1411 = vdwg.mxu0
        %v1412 = vadd.f32 %v1225, %v1409
        %v1413 = vadd.f32 %v1412, %v634
        %v1414 = vpack.c.bf16 %v1413, %v1413
        %v1415 = vld [vmem:[%s6] sm:$0xf]
        %v1416 = vld [vmem:[%s6 + $0x4] sm:$0xf]
        %v1417 = vld [vmem:[%s6 + $0x8] sm:$0xf]
        %v1418 = vld [vmem:[%s6 + $0xc] sm:$0xf]
        %v1419 = vld [vmem:[%s7] sm:$0x1]
        %v1421 = vperm.slane %v1419, 0
        %v1427 = vunpack.c.l.b16 %v1415
        %v1428 = vunpack.c.l.b16 %v1416
        %v1429 = vunpack.c.l.b16 %v1417
        %v1430 = vunpack.c.l.b16 %v1418
        %v1431 = vpack.c.b16 %v1428, %v1427
        %v1432 = vpack.c.b16 %v1430, %v1429
        %v1436 = vsel %vm652, %v1414, 0
        %1438 = vmatpush.bf16.msra.mxu0 0
        %1439 = vmatpush.bf16.msra.mxu0 0
        %1440 = vmatpush.bf16.msra.mxu0 0
        %1441 = vmatpush.bf16.msra.mxu0 0
        %1442 = vmatpush.bf16.msra.mxu0 0
        %1443 = vmatpush.bf16.msra.mxu0 0
        %1444 = vmatpush.bf16.msra.mxu0 %v1432
        %1445 = vmatpush.bf16.msra.mxu0 %v1431
        %1446 = vmatmul.bf16.gmra.mxu0 %v1436
        %v1447 = vpop.f32.mrf.mxu0
        %v1448 = vadd.f32 %v1421, %v1447
        %v1449 = vpop.f32.mrf.mxu0
        %1450 = vdwg.mxu0
        %v1451 = vxor.u32 %v1448, 2147483648
        %v1452 = vmul.f32 %v1451, 1.442695
        %v1453 = vpow.pop %v1452
        %v1454 = vadd.f32 %v1453, 1.0
        %v1455 = vrcp.pop %v1454
        %v1456 = vmul.f32 %v1454, %v1455
        %v1457 = vsub.f32 1.0, %v1456
        %v1458 = vmul.f32 %v1455, %v1457
        %v1459 = vadd.f32 %v1455, %v1458
        %vm1460 = vweird.f32 %v1454
        %vm1461 = vweird.f32 %v1455
        %vm1462 = vmor %vm1460, %vm1461
        %v1463 = vsel %vm1462, %v1455, %v1459
        %v1464 = vand.u32 2147483647, %v1454
        %vm1465 = vcmp.eq.f32.partialorder %v1464, 8.507059e+37
        %v1466 = vand.u32 %v1454, 2147483648
        %v1467 = vor.u32 1.1754944e-38, %v1466
        %v1468 = vsel %vm1465, %v1467, %v1463
        %v1469 = vmul.f32 1.0, %v1468
        %v1470 = vmul.f32 %v1448, %v1469
        %1471 = vadd.xlane.f32.xlu0 %v1470
        %v1472 = vpop.xlane.xlu0 %1471
        %v1473 = vrcp.pop 128.0
        %v1474 = vmul.f32 128.0, %v1473
        %v1475 = vsub.f32 1.0, %v1474
        %v1476 = vmul.f32 %v1473, %v1475
        %v1477 = vadd.f32 %v1473, %v1476
        %vm1478 = vweird.f32 %v1473
        %v1479 = vsel %vm1478, %v1473, %v1477
        %v1480 = vmul.f32 %v1472, %v1479
        %v1481 = vsub.f32 %v1470, %v1480
        %v1482 = vmul.f32 %v1481, %v1481
        %1483 = vadd.xlane.f32.xlu0 %v1482
        %v1484 = vpop.xlane.xlu0 %1483
        %v1485 = vmul.f32 %v1484, %v1479
        %v1486 = vadd.f32 %v1485, 1e-05
        %v1487 = vrsqrt.pop %v1486
        %v1488 = vmul.f32 %v1487, %v1486
        %v1489 = vmul.f32 %v1488, %v1487
        %v1490 = vmul.f32 0.5, %v1489
        %v1491 = vsub.f32 1.5, %v1490
        %v1492 = vmul.f32 %v1487, %v1491
        %vm1493 = vweird.f32 %v1486
        %vm1494 = vweird.f32 %v1487
        %vm1495 = vmor %vm1493, %vm1494
        %v1496 = vsel %vm1495, %v1487, %v1492
        %v1497 = vmul.f32 %v1481, %v1496
        %v1498 = vld [vmem:[%s8] sm:$0x1]
        %v1500 = vperm.slane %v1498, 0
        %v1502 = vmul.f32 %v1497, %v1500
        %v1503 = vld [vmem:[%s9] sm:$0x1]
        %v1505 = vperm.slane %v1503, 0
        %v1507 = vadd.f32 %v1502, %v1505
        %v1508 = vpack.c.bf16 %v1507, %v1507
        %v1509 = vld [vmem:[%s10] sm:$0xf]
        %v1510 = vld [vmem:[%s10 + $0x4] sm:$0xf]
        %v1511 = vld [vmem:[%s10 + $0x8] sm:$0xf]
        %v1512 = vld [vmem:[%s10 + $0xc] sm:$0xf]
        %v1513 = vld [vmem:[%s10 + $0x10] sm:$0xf]
        %v1514 = vld [vmem:[%s10 + $0x14] sm:$0xf]
        %v1515 = vld [vmem:[%s10 + $0x18] sm:$0xf]
        %v1516 = vld [vmem:[%s10 + $0x1c] sm:$0xf]
        %v1517 = vld [vmem:[%s10 + $0x20] sm:$0xf]
        %v1518 = vld [vmem:[%s10 + $0x24] sm:$0xf]
        %v1519 = vld [vmem:[%s10 + $0x28] sm:$0xf]
        %v1520 = vld [vmem:[%s10 + $0x2c] sm:$0xf]
        %v1521 = vld [vmem:[%s10 + $0x30] sm:$0xf]
        %v1522 = vld [vmem:[%s10 + $0x34] sm:$0xf]
        %v1523 = vld [vmem:[%s10 + $0x38] sm:$0xf]
        %v1524 = vld [vmem:[%s10 + $0x3c] sm:$0xf]
        %v1525 = vld [vmem:[%s11] sm:$0x1]
        %v1527 = vperm.slane %v1525, 0
        %v1545 = vunpack.c.l.b16 %v1509
        %v1546 = vunpack.c.l.b16 %v1510
        %v1547 = vunpack.c.l.b16 %v1511
        %v1548 = vunpack.c.l.b16 %v1512
        %v1549 = vunpack.c.l.b16 %v1513
        %v1550 = vunpack.c.l.b16 %v1514
        %v1551 = vunpack.c.l.b16 %v1515
        %v1552 = vunpack.c.l.b16 %v1516
        %v1553 = vunpack.c.l.b16 %v1517
        %v1554 = vunpack.c.l.b16 %v1518
        %v1555 = vunpack.c.l.b16 %v1519
        %v1556 = vunpack.c.l.b16 %v1520
        %v1557 = vunpack.c.l.b16 %v1521
        %v1558 = vunpack.c.l.b16 %v1522
        %v1559 = vunpack.c.l.b16 %v1523
        %v1560 = vunpack.c.l.b16 %v1524
        %v1561 = vpack.c.b16 %v1546, %v1545
        %v1562 = vpack.c.b16 %v1548, %v1547
        %v1563 = vpack.c.b16 %v1550, %v1549
        %v1564 = vpack.c.b16 %v1552, %v1551
        %v1565 = vpack.c.b16 %v1554, %v1553
        %v1566 = vpack.c.b16 %v1556, %v1555
        %v1567 = vpack.c.b16 %v1558, %v1557
        %v1568 = vpack.c.b16 %v1560, %v1559
        %1577 = vmatpush.bf16.msra.mxu0 %v1568
        %1578 = vmatpush.bf16.msra.mxu0 %v1567
        %1579 = vmatpush.bf16.msra.mxu0 %v1566
        %1580 = vmatpush.bf16.msra.mxu0 %v1565
        %1581 = vmatpush.bf16.msra.mxu0 %v1564
        %1582 = vmatpush.bf16.msra.mxu0 %v1563
        %1583 = vmatpush.bf16.msra.mxu0 %v1562
        %1584 = vmatpush.bf16.msra.mxu0 %v1561
        %1585 = vmatmul.bf16.gmra.mxu0 %v1508
        %v1586 = vpop.f32.mrf.mxu0
        %v1587 = vadd.f32 %v1527, %v1586
        %v1588 = vpop.f32.mrf.mxu0
        %1589 = vdwg.mxu0
        %v1590 = vadd.f32 %v1413, %v1587
        %1591 = vst.msk [vmem:[%s439] sm:$0xff] %vm652, %v1590
        %s1592 = sand.u32 %s312, 1
        %s1593 = scalar_lea.sflag [#allocation5], %s1592
        %s1594 = sand.u32 %s312, 1
        %s1595 = smul.addr %s1594, 8
        %s1596 = scalar_lea.vmem [#allocation4], %s1595
        // Predicated region
        $region101: #{decoder_llm_forward.3} parent=67 // pred_check
          %p1597 = pneg %p322
        $region102: #{decoder_llm_forward.3} parent=67 // pred_check_branch
          %1599 = sbr.rel (%p1597) target = $region104
        $region103: #{decoder_llm_forward.3} parent=67 // pred_region
          %1601 = vsyncadd %s1593, 0
          %s1602 = sadd.s32 %s31, %s30
          %s1603 = smul.addr %s1602, 8
          %s1604 = scalar_lea.hbm %s12, %s1603
          %s1606 = sshll.u32 %s1596, 4
          %s1607 = int_to_ptr.vmem [resolvable:$true] %s1606
          %s1608 = sshll.u32 %s1604, 4
          %s1609 = int_to_ptr.hbm [resolvable:$true] %s1608
          %1611 = dma.vmem_to_hbm [thread:$0]  %s1607, 128, %s1609, %s1593
        $region104: #{decoder_llm_forward.3} parent=67 // pred_fallthru
          _
      $region68: #{decoder_llm_forward.3} parent=5 // pred_fallthru
        _
      %p1612 = scmp.le.s32.totalorder 2, %s21
      // Predicated region
      $region105: #{decoder_llm_forward.3} parent=5 // pred_check
        %p1613 = pneg %p1612
      $region106: #{decoder_llm_forward.3} parent=5 // pred_check_branch
        %1615 = sbr.rel (%p1613) target = $region108
      $region107: #{decoder_llm_forward.3} parent=5 // pred_region
        %s1616 = ssub.s32 %s21, 2
        // Predicated region
        $region109: #{decoder_llm_forward.3} parent=107 // pred_check
          %p1617 = pneg %p328
        $region110: #{decoder_llm_forward.3} parent=107 // pred_check_branch
          %1619 = sbr.rel (%p1617) target = $region112
        $region111: #{decoder_llm_forward.3} parent=107 // pred_region
          %s1620 = sand.u32 %s313, 1
          %s1621 = scalar_lea.sflag [#allocation5], %s1620
          %s1622 = sand.u32 %s313, 1
          %s1623 = smul.addr %s1622, 8
          %s1624 = scalar_lea.vmem [#allocation4], %s1623
          %1626 = dma.done %s1621, 128
        $region112: #{decoder_llm_forward.3} parent=107 // pred_fallthru
          _
      $region108: #{decoder_llm_forward.3} parent=5 // pred_fallthru
        _
    $region6: #{decoder_llm_forward.3} parent=1 // loop_footer
      %s25 = sadd.s32 1, %s21
    $region7: #{decoder_llm_forward.3} parent=1 // loop_footer_branch
      %20 = sbr.rel target = $region3
    $region8: #{decoder_llm_forward.3} parent=1 // loop_exit
      _
    %1627 = vsyncpa [#allocation5], 1
    %s1628 = scalar_lea.sflag [#allocation5], 1
    %1629 = vsyncpa %s1628, 1

</llo_original>
